<compile_context>
chip_gen: v7x
topology: tpu7x:2x2x1
jax: 0.10.0
libtpu: 0.0.40
codegen_flags: <defaults>
</compile_context>

<pallas_src>
import functools
import math

import numpy as np
import jax
import jax.numpy as jnp
from jax.experimental import pallas as pl
from jax.experimental.pallas import tpu as pltpu

EPS = 1e-6
NEG_INF = -1e9


# ----------------------------- shared math (traced inside kernel & reference) -------------------
def _layer_norm(x, alpha, bias):
    # SamLynnEvans Norm: alpha * (x - mean) / (std + eps) + bias; torch.std is unbiased (ddof=1).
    d = x.shape[-1]
    m = jnp.mean(x, axis=-1, keepdims=True)
    xc = x - m
    var = jnp.sum(xc * xc, axis=-1, keepdims=True) / (d - 1)
    return alpha * xc / (jnp.sqrt(var) + EPS) + bias      # exact divide: stays tight to the f32 reference


def _softmax_ref(x):
    x = x - jnp.max(x, axis=-1, keepdims=True)
    e = jnp.exp(x)
    return e / jnp.sum(e, axis=-1, keepdims=True)


# ----------------------------------------- Pallas kernel ---------------------------------------
def bert_layer_kernel(x_ref, mask_ref,
                      n1a_ref, n1b_ref, wqkv_ref, bqkv_ref, wo_ref, bo_ref,
                      n2a_ref, n2b_ref, w1_ref, b1_ref, w2_ref, b2_ref,
                      fna_ref, fnb_ref, hw1_ref, hb1_ref, hw2t_ref, hb2_ref,
                      out_ref, act_ref, *, heads):
    """One encoder layer per grid step (layer axis streamed); head/pool/prediction at the last step.

    The [Bt*S, D] activation slab lives in `act_ref` (VMEM scratch, persists across grid steps).
    Matmul operands use the weight dtype (f32 or bf16); accumulation is always f32.
    """
    Bt, S, D = x_ref.shape
    dk = D // heads
    l = pl.program_id(1)
    cdt = wqkv_ref.dtype                              # matmul-operand dtype (f32 or bf16)

    @pl.when(l == 0)
    def _():                                          # embed+PE slab enters VMEM once per batch tile
        act_ref[...] = x_ref[...].reshape(Bt * S, D)

    mask = mask_ref[...]                              # [Bt, 1, S]
    # additive mask: 0 keep / -1e9 pad.  Equivalent to the reference's where(mask==0, -1e9, score)
    # after max-subtraction (fully padded rows give uniform attention in both formulations).
    addmask = (mask - 1.0) * (-NEG_INF)

    x = act_ref[...]                                  # lane-dense 2-D [Bt*S, D] activations

    # ---- sublayer 1: pre-norm -> fused multi-head self-attention -> residual ----
    x2 = _layer_norm(x, n1a_ref[...], n1b_ref[...])
    qkv = jnp.dot(x2.astype(cdt), wqkv_ref[...],
                  preferred_element_type=jnp.float32) + bqkv_ref[...]      # [Bt*S, 3D], head-major packed

    head_ctx = []
    for h in range(heads):                            # rank-3 single-batch-dim einsums (proven lowering)
        base = h * 3 * dk                             # head-major packing: [q_h | k_h | v_h] contiguous
        qh = qkv[:, base:base + dk].astype(cdt).reshape(Bt, S, dk)         # 1/sqrt(dk) pre-folded into W_q
        kh = qkv[:, base + dk:base + 2 * dk].astype(cdt).reshape(Bt, S, dk)
        vh = qkv[:, base + 2 * dk:base + 3 * dk].astype(cdt).reshape(Bt, S, dk)
        sc = jnp.einsum('bqd,bkd->bqk', qh, kh, preferred_element_type=jnp.float32)
        sc = sc + addmask                             # [Bt,1,S] broadcasts over queries
        sc = sc - jnp.max(sc, axis=-1, keepdims=True)
        e = jnp.exp(sc)
        p = e * pl.reciprocal(jnp.sum(e, axis=-1, keepdims=True), approx=True)   # EUP slot
        oh = jnp.einsum('bqk,bkd->bqd', p.astype(cdt), vh, preferred_element_type=jnp.float32)
        head_ctx.append(oh.reshape(Bt * S, dk))

    ctx = jnp.concatenate(head_ctx, axis=-1)          # [Bt*S, D]; single Wo matmul
    x = x + jnp.dot(ctx.astype(cdt), wo_ref[...], preferred_element_type=jnp.float32) + bo_ref[...]

    # ---- sublayer 2: pre-norm -> feed-forward (Linear / ReLU / Linear) -> residual ----
    x2 = _layer_norm(x, n2a_ref[...], n2b_ref[...])
    h1 = jnp.dot(x2.astype(cdt), w1_ref[...], preferred_element_type=jnp.float32) + b1_ref[...]
    h1 = jnp.maximum(h1, 0.0)
    x = x + jnp.dot(h1.astype(cdt), w2_ref[...], preferred_element_type=jnp.float32) + b2_ref[...]
    act_ref[...] = x                                  # persist for the next layer grid step

    # ---- finalize (last layer only): Norm -> masked mean pool -> admetPrediction (regression) ----
    @pl.when(l == pl.num_programs(1) - 1)
    def _():
        xn = _layer_norm(x, fna_ref[...], fnb_ref[...]).reshape(Bt, S, D)
        summed = jnp.einsum('bks,bsd->bkd', mask, xn,
                            preferred_element_type=jnp.float32).reshape(Bt, D)
        cnt = jnp.sum(mask, axis=-1)                  # [Bt, 1] non-pad token counts
        mean = summed / cnt                           # exact divide (perf-review correctness note)
        h = jnp.dot(mean.astype(hw1_ref.dtype), hw1_ref[...],
                    preferred_element_type=jnp.float32) + hb1_ref[...]
        h = jnp.maximum(h, 0.0)                       # ReLU; dropout = identity (eval)
        out_ref[...] = jnp.sum(h * hw2t_ref[...], axis=-1, keepdims=True) + hb2_ref[...]


# -------------------------------------- wrapper / parameter prep -------------------------------
def prepare_params(params, *, heads, matmul_dtype=jnp.float32):
    """One-time packing at parameter-load time.

    * QKV fusion, HEAD-MAJOR column packing ([q_h|k_h|v_h] per head), 1/sqrt(d_k) folded into q.
    * Layer weights stacked on a leading layer axis (streamed over the layer grid axis).
    * Matmul weight matrices optionally pre-cast to bf16 (f32 accumulation in-kernel); biases/norms stay f32.
    """
    L = params['layers']
    d_model = params['embed'].shape[1]
    dk = d_model // heads
    scale = 1.0 / math.sqrt(dk)

    def pack_qkv_w(lyr):
        cols = []
        for h in range(heads):
            sl = slice(h * dk, (h + 1) * dk)
            cols += [lyr['wq'][:, sl] * scale, lyr['wk'][:, sl], lyr['wv'][:, sl]]
        return jnp.concatenate(cols, axis=1)          # [D, 3D] head-major

    def pack_qkv_b(lyr):
        cols = []
        for h in range(heads):
            sl = slice(h * dk, (h + 1) * dk)
            cols += [lyr['bq'][sl] * scale, lyr['bk'][sl], lyr['bv'][sl]]
        return jnp.concatenate(cols, axis=0)[None, :]  # [1, 3D]

    def stack(k):
        return jnp.stack([lyr[k] for lyr in L], axis=0)

    def mm(a):                                        # matmul-operand dtype (bf16 on v5e/v6e/v7x MXU)
        return a.astype(matmul_dtype)

    return {
        'embed': params['embed'], 'pe': params['pe'],
        'n1a': stack('n1a'), 'n1b': stack('n1b'),
        'n2a': stack('n2a'), 'n2b': stack('n2b'),
        'wqkv': mm(jnp.stack([pack_qkv_w(l) for l in L], 0)),       # [N, D, 3D]
        'bqkv': jnp.stack([pack_qkv_b(l) for l in L], 0),           # [N, 1, 3D]  (f32)
        'wo': mm(stack('wo')),
        'bo': jnp.stack([l['bo'][None, :] for l in L], 0),
        'w1': mm(stack('w1')),
        'b1': jnp.stack([l['b1'][None, :] for l in L], 0),
        'w2': mm(stack('w2')),
        'b2': jnp.stack([l['b2'][None, :] for l in L], 0),
        'fna': params['fna'], 'fnb': params['fnb'],
        'hw1': mm(params['hw1']), 'hb1': params['hb1'].reshape(1, -1),
        'hw2t': params['hw2'].reshape(1, -1), 'hb2': params['hb2'].reshape(1, 1),
        'n_layers': len(L), 'heads': heads,
    }


def transformer_bert_forward(src, src_mask, prep, *, heads, batch_tile=None):
    B, S = src.shape
    D = prep['embed'].shape[1]
    n_layers = prep['n_layers']
    if batch_tile is None:
        batch_tile = B                                # on v7x: set batch_tile = B // 2 to use both TCs
    assert B % batch_tile == 0
    n_b = B // batch_tile

    # TODO(synk): Embedder gather + PositionalEncoder (x*sqrt(d_model) + pe) kept in plain JAX (token gather).
    x = (prep['embed'][src] * math.sqrt(D) + prep['pe'][None, :S, :]).astype(jnp.float32)
    mask = src_mask.astype(jnp.float32)               # [B, 1, S]

    layer_args = (prep['n1a'], prep['n1b'], prep['wqkv'], prep['bqkv'], prep['wo'], prep['bo'],
                  prep['n2a'], prep['n2b'], prep['w1'], prep['b1'], prep['w2'], prep['b2'])
    final_args = (prep['fna'], prep['fnb'], prep['hw1'], prep['hb1'], prep['hw2t'], prep['hb2'])

    def layer_spec(a):                                # stream ONE layer slice per grid step (squeeze layer dim)
        nd = a.ndim
        return pl.BlockSpec((None,) + a.shape[1:], lambda b, l, _n=nd: (l,) + (0,) * (_n - 1))

    def inv_spec(a):                                  # grid-invariant (final norm + prediction head weights)
        nd = a.ndim
        return pl.BlockSpec(a.shape, lambda b, l, _n=nd: (0,) * _n)

    x_spec = pl.BlockSpec((batch_tile, S, D), lambda b, l: (b, 0, 0))
    mask_spec = pl.BlockSpec((batch_tile, 1, S), lambda b, l: (b, 0, 0))
    out_spec = pl.BlockSpec((batch_tile, 1), lambda b, l: (b, 0))

    kernel = functools.partial(bert_layer_kernel, heads=heads)
    return pl.pallas_call(
        kernel,
        out_shape=jax.ShapeDtypeStruct((B, 1), jnp.float32),
        grid_spec=pltpu.PrefetchScalarGridSpec(
            num_scalar_prefetch=0,
            grid=(n_b, n_layers),                     # (parallel batch tiles, streamed layers)
            in_specs=[x_spec, mask_spec]
                     + [layer_spec(a) for a in layer_args]
                     + [inv_spec(a) for a in final_args],
            out_specs=out_spec,
            scratch_shapes=[pltpu.VMEM((batch_tile * S, D), jnp.float32)]),   # resident activation slab
        compiler_params=pltpu.CompilerParams(
            dimension_semantics=("parallel", "arbitrary"),
            vmem_limit_bytes=48 * 1024 * 1024),       # headroom below v7x's 64 MiB physical VMEM
    )(x, mask, *layer_args, *final_args)


# ----------------------------------- pure-JAX reference (checking) -----------------------------
def ref_forward(src, src_mask, params, *, heads):
    B, S = src.shape
    D = params['embed'].shape[1]
    dk = D // heads
    x = params['embed'][src] * math.sqrt(D) + params['pe'][None, :S, :]
    mask = src_mask.astype(jnp.float32)
    for L in params['layers']:
        x2 = _layer_norm(x, L['n1a'], L['n1b'])
        q = jnp.einsum('bsd,de->bse', x2, L['wq']) + L['bq']
        k = jnp.einsum('bsd,de->bse', x2, L['wk']) + L['bk']
        v = jnp.einsum('bsd,de->bse', x2, L['wv']) + L['bv']
        qh = q.reshape(B, S, heads, dk).transpose(0, 2, 1, 3)
        kh = k.reshape(B, S, heads, dk).transpose(0, 2, 1, 3)
        vh = v.reshape(B, S, heads, dk).transpose(0, 2, 1, 3)
        sc = jnp.einsum('bhqd,bhkd->bhqk', qh, kh) / math.sqrt(dk)
        sc = jnp.where(mask[:, None, :, :] == 0.0, NEG_INF, sc)
        p = _softmax_ref(sc)
        oh = jnp.einsum('bhqk,bhkd->bhqd', p, vh)
        o = oh.transpose(0, 2, 1, 3).reshape(B, S, D)
        x = x + jnp.einsum('bsd,de->bse', o, L['wo']) + L['bo']
        x2 = _layer_norm(x, L['n2a'], L['n2b'])
        h1 = jnp.maximum(jnp.einsum('bsd,df->bsf', x2, L['w1']) + L['b1'], 0.0)
        x = x + jnp.einsum('bsf,fd->bsd', h1, L['w2']) + L['b2']
    x = _layer_norm(x, params['fna'], params['fnb'])
    m = jnp.transpose(mask, (0, 2, 1))
    mean = jnp.sum(x * m, axis=1) / jnp.sum(m, axis=1)
    h = jnp.maximum(mean @ params['hw1'] + params['hb1'], 0.0)
    return h @ params['hw2'] + params['hb2']


# --------------------------------------- deterministic init ------------------------------------
def init_params(key, vocab, d_model, n_layers, heads, d_ff, hidden, max_seq):
    keys = list(jax.random.split(key, 8 + n_layers * 16))
    ki = iter(keys)

    def nrm(shape, scale):
        return jax.random.normal(next(ki), shape, dtype=jnp.float32) * scale

    params = {'embed': nrm((vocab, d_model), 0.1)}
    pe = np.zeros((max_seq, d_model), np.float32)
    position = np.arange(max_seq, dtype=np.float32)[:, None]
    div = np.exp(np.arange(0, d_model, 2, dtype=np.float32) * (-math.log(10000.0) / d_model))
    pe[:, 0::2] = np.sin(position * div)
    pe[:, 1::2] = np.cos(position * div)
    params['pe'] = jnp.asarray(pe)

    layers = []
    for _ in range(n_layers):
        s = 1.0 / math.sqrt(d_model)
        layers.append({
            'n1a': 1.0 + nrm((1, d_model), 0.05), 'n1b': nrm((1, d_model), 0.05),
            'wq': nrm((d_model, d_model), s), 'bq': nrm((d_model,), 0.02),
            'wk': nrm((d_model, d_model), s), 'bk': nrm((d_model,), 0.02),
            'wv': nrm((d_model, d_model), s), 'bv': nrm((d_model,), 0.02),
            'wo': nrm((d_model, d_model), s), 'bo': nrm((d_model,), 0.02),
            'n2a': 1.0 + nrm((1, d_model), 0.05), 'n2b': nrm((1, d_model), 0.05),
            'w1': nrm((d_model, d_ff), s), 'b1': nrm((d_ff,), 0.02),
            'w2': nrm((d_ff, d_model), 1.0 / math.sqrt(d_ff)), 'b2': nrm((d_model,), 0.02),
        })
    params['layers'] = layers
    params['fna'] = 1.0 + nrm((1, d_model), 0.05)
    params['fnb'] = nrm((1, d_model), 0.05)
    params['hw1'] = nrm((d_model, hidden), 1.0 / math.sqrt(d_model))
    params['hb1'] = nrm((hidden,), 0.02)
    params['hw2'] = nrm((hidden, 1), 1.0 / math.sqrt(hidden))
    params['hb2'] = nrm((1,), 0.02)
    return params


if __name__ == "__main__":
    # TODO(synk): dropout layers are eval-mode identities; task_type='regression' (no sigmoid on the head).
    B, S, VOCAB = 2, 8, 20
    D_MODEL, HEADS, D_FF, N_LAYERS, HIDDEN = 32, 4, 64, 2, 32   # heads=4 so d_k = 8

    key = jax.random.PRNGKey(0)
    k_tok, k_par = jax.random.split(key)
    src = jax.random.randint(k_tok, (B, S), 1, VOCAB, dtype=jnp.int32)
    lengths = jnp.array([S, 5], dtype=jnp.int32)
    src_mask = (jnp.arange(S)[None, :] < lengths[:, None]).astype(jnp.float32)[:, None, :]  # [B,1,S]

    params = init_params(k_par, VOCAB, D_MODEL, N_LAYERS, HEADS, D_FF, HIDDEN, max_seq=64)
    ref = ref_forward(src, src_mask, params, heads=HEADS)

    # f32 matmul operands: tight check against the f32 reference.
    prep32 = prepare_params(params, heads=HEADS, matmul_dtype=jnp.float32)
    out32 = jax.block_until_ready(transformer_bert_forward(src, src_mask, prep32, heads=HEADS))
    assert out32.shape == (B, 1), out32.shape
    assert np.all(np.isfinite(np.asarray(out32)))
    np.testing.assert_allclose(np.asarray(out32), np.asarray(ref), rtol=2e-3, atol=2e-3)

    # bf16 matmul operands, f32 accumulation (production setting for v5e/v6e/v7x MXU): loose check —
    # the difference vs the f32 reference is dominated by bf16 operand rounding, not the kernel.
    prep16 = prepare_params(params, heads=HEADS, matmul_dtype=jnp.bfloat16)
    out16 = jax.block_until_ready(transformer_bert_forward(src, src_mask, prep16, heads=HEADS))
    assert np.all(np.isfinite(np.asarray(out16)))
    np.testing.assert_allclose(np.asarray(out16), np.asarray(ref), rtol=1e-1, atol=1e-1)

    print("KERNEL_OK")
</pallas_src>

<mosaic_0001>
module attributes {stable_mosaic.version = 11 : i64} {
  func.func @bert_layer_kernel(%arg0: i32, %arg1: i32, %arg2: memref<2x8x32xf32, #tpu.memory_space<vmem>>, %arg3: memref<2x1x8xf32, #tpu.memory_space<vmem>>, %arg4: memref<1x1x32xf32, #tpu.memory_space<vmem>>, %arg5: memref<1x1x32xf32, #tpu.memory_space<vmem>>, %arg6: memref<1x32x96xf32, #tpu.memory_space<vmem>>, %arg7: memref<1x1x96xf32, #tpu.memory_space<vmem>>, %arg8: memref<1x32x32xf32, #tpu.memory_space<vmem>>, %arg9: memref<1x1x32xf32, #tpu.memory_space<vmem>>, %arg10: memref<1x1x32xf32, #tpu.memory_space<vmem>>, %arg11: memref<1x1x32xf32, #tpu.memory_space<vmem>>, %arg12: memref<1x32x64xf32, #tpu.memory_space<vmem>>, %arg13: memref<1x1x64xf32, #tpu.memory_space<vmem>>, %arg14: memref<1x64x32xf32, #tpu.memory_space<vmem>>, %arg15: memref<1x1x32xf32, #tpu.memory_space<vmem>>, %arg16: memref<1x32xf32, #tpu.memory_space<vmem>>, %arg17: memref<1x32xf32, #tpu.memory_space<vmem>>, %arg18: memref<32x32xf32, #tpu.memory_space<vmem>>, %arg19: memref<1x32xf32, #tpu.memory_space<vmem>>, %arg20: memref<1x32xf32, #tpu.memory_space<vmem>>, %arg21: memref<1x1xf32, #tpu.memory_space<vmem>>, %arg22: memref<2x1xf32, #tpu.memory_space<vmem>>, %arg23: memref<16x32xf32, #tpu.memory_space<vmem>>) attributes {dimension_semantics = [#tpu.dimension_semantics<parallel>, #tpu.dimension_semantics<arbitrary>], iteration_bounds = array<i64: 1, 2>, scalar_prefetch = 0 : i64, scratch_operands = 1 : i64, tpu.core_type = #tpu.core_type<tc>, window_params = [{transform_indices = @transform_0, window_bounds = array<i64: 2, 8, 32>}, {transform_indices = @transform_1, window_bounds = array<i64: 2, 1, 8>}, {transform_indices = @transform_2, window_bounds = array<i64: 1, 1, 32>}, {transform_indices = @transform_3, window_bounds = array<i64: 1, 1, 32>}, {transform_indices = @transform_4, window_bounds = array<i64: 1, 32, 96>}, {transform_indices = @transform_5, window_bounds = array<i64: 1, 1, 96>}, {transform_indices = @transform_6, window_bounds = array<i64: 1, 32, 32>}, {transform_indices = @transform_7, window_bounds = array<i64: 1, 1, 32>}, {transform_indices = @transform_8, window_bounds = array<i64: 1, 1, 32>}, {transform_indices = @transform_9, window_bounds = array<i64: 1, 1, 32>}, {transform_indices = @transform_10, window_bounds = array<i64: 1, 32, 64>}, {transform_indices = @transform_11, window_bounds = array<i64: 1, 1, 64>}, {transform_indices = @transform_12, window_bounds = array<i64: 1, 64, 32>}, {transform_indices = @transform_13, window_bounds = array<i64: 1, 1, 32>}, {pipeline_mode = #tpu.pipeline_mode<synchronous>, transform_indices = @transform_14, window_bounds = array<i64: 1, 32>}, {pipeline_mode = #tpu.pipeline_mode<synchronous>, transform_indices = @transform_15, window_bounds = array<i64: 1, 32>}, {pipeline_mode = #tpu.pipeline_mode<synchronous>, transform_indices = @transform_16, window_bounds = array<i64: 32, 32>}, {pipeline_mode = #tpu.pipeline_mode<synchronous>, transform_indices = @transform_17, window_bounds = array<i64: 1, 32>}, {pipeline_mode = #tpu.pipeline_mode<synchronous>, transform_indices = @transform_18, window_bounds = array<i64: 1, 32>}, {pipeline_mode = #tpu.pipeline_mode<synchronous>, transform_indices = @transform_19, window_bounds = array<i64: 1, 1>}, {transform_indices = @transform_20, window_bounds = array<i64: 2, 1>}]} {
    %c0_i32 = arith.constant 0 : i32
    %0 = arith.cmpi eq, %arg1, %c0_i32 : i32
    %1 = arith.extui %0 : i1 to i32
    %c0_i32_0 = arith.constant 0 : i32
    %2 = arith.cmpi ne, %1, %c0_i32_0 : i32
    scf.if %2 {
      %c0_76 = arith.constant 0 : index
      %c0_77 = arith.constant 0 : index
      %c0_78 = arith.constant 0 : index
      %178 = vector.load %arg2[%c0_76, %c0_77, %c0_78] : memref<2x8x32xf32, #tpu.memory_space<vmem>>, vector<2x8x32xf32>
      %179 = vector.shape_cast %178 : vector<2x8x32xf32> to vector<16x32xf32>
      %c0_79 = arith.constant 0 : index
      %c0_80 = arith.constant 0 : index
      %180 = vector.load %arg23[%c0_79, %c0_80] : memref<16x32xf32, #tpu.memory_space<vmem>>, vector<16x32xf32>
      tpu.vector_store %arg23[%c0_79, %c0_80], %179 {strides = array<i32>} : memref<16x32xf32, #tpu.memory_space<vmem>>, vector<16x32xf32>,
    } else {
    }
    %c0 = arith.constant 0 : index
    %c0_1 = arith.constant 0 : index
    %c0_2 = arith.constant 0 : index
    %3 = vector.load %arg3[%c0, %c0_1, %c0_2] : memref<2x1x8xf32, #tpu.memory_space<vmem>>, vector<2x1x8xf32>
    %cst = arith.constant 1.000000e+00 : f32
    %4 = vector.broadcast %cst : f32 to vector<2x1x8xf32>
    %5 = arith.subf %3, %4 : vector<2x1x8xf32>
    %cst_3 = arith.constant 1.000000e+09 : f32
    %6 = vector.broadcast %cst_3 : f32 to vector<2x1x8xf32>
    %7 = arith.mulf %5, %6 : vector<2x1x8xf32>
    %c0_4 = arith.constant 0 : index
    %c0_5 = arith.constant 0 : index
    %8 = vector.load %arg23[%c0_4, %c0_5] : memref<16x32xf32, #tpu.memory_space<vmem>>, vector<16x32xf32>
    %c0_6 = arith.constant 0 : index
    %c0_7 = arith.constant 0 : index
    %c0_8 = arith.constant 0 : index
    %9 = vector.load %arg4[%c0_6, %c0_7, %c0_8] : memref<1x1x32xf32, #tpu.memory_space<vmem>>, vector<1x1x32xf32>
    %10 = vector.shape_cast %9 : vector<1x1x32xf32> to vector<1x32xf32>
    %c0_9 = arith.constant 0 : index
    %c0_10 = arith.constant 0 : index
    %c0_11 = arith.constant 0 : index
    %11 = vector.load %arg5[%c0_9, %c0_10, %c0_11] : memref<1x1x32xf32, #tpu.memory_space<vmem>>, vector<1x1x32xf32>
    %12 = vector.shape_cast %11 : vector<1x1x32xf32> to vector<1x32xf32>
    %cst_12 = arith.constant dense<0.000000e+00> : vector<16xf32>
    %13 = vector.multi_reduction <add>, %8, %cst_12 [1] : vector<16x32xf32> to vector<16xf32>
    %14 = vector.shape_cast %13 : vector<16xf32> to vector<16x1xf32>
    %cst_13 = arith.constant 3.200000e+01 : f32
    %15 = vector.broadcast %cst_13 : f32 to vector<16x1xf32>
    %16 = arith.divf %14, %15 : vector<16x1xf32>
    %17 = vector.broadcast %16 : vector<16x1xf32> to vector<16x32xf32>
    %18 = arith.subf %8, %17 : vector<16x32xf32>
    %19 = arith.mulf %18, %18 : vector<16x32xf32>
    %cst_14 = arith.constant dense<0.000000e+00> : vector<16xf32>
    %20 = vector.multi_reduction <add>, %19, %cst_14 [1] : vector<16x32xf32> to vector<16xf32>
    %21 = vector.shape_cast %20 : vector<16xf32> to vector<16x1xf32>
    %cst_15 = arith.constant 3.100000e+01 : f32
    %22 = vector.broadcast %cst_15 : f32 to vector<16x1xf32>
    %23 = arith.divf %21, %22 : vector<16x1xf32>
    %24 = vector.broadcast %10 : vector<1x32xf32> to vector<16x32xf32>
    %25 = arith.mulf %24, %18 : vector<16x32xf32>
    %26 = math.sqrt %23 : vector<16x1xf32>
    %cst_16 = arith.constant 9.99999997E-7 : f32
    %27 = vector.broadcast %cst_16 : f32 to vector<16x1xf32>
    %28 = arith.addf %26, %27 : vector<16x1xf32>
    %29 = vector.broadcast %28 : vector<16x1xf32> to vector<16x32xf32>
    %30 = arith.divf %25, %29 : vector<16x32xf32>
    %31 = vector.broadcast %12 : vector<1x32xf32> to vector<16x32xf32>
    %32 = arith.addf %30, %31 : vector<16x32xf32>
    %c0_17 = arith.constant 0 : index
    %c0_18 = arith.constant 0 : index
    %c0_19 = arith.constant 0 : index
    %33 = vector.load %arg6[%c0_17, %c0_18, %c0_19] : memref<1x32x96xf32, #tpu.memory_space<vmem>>, vector<1x32x96xf32>
    %34 = vector.shape_cast %33 : vector<1x32x96xf32> to vector<32x96xf32>
    %cst_20 = arith.constant dense<0.000000e+00> : vector<16x96xf32>
    %35 = tpu.matmul %32, %34, %cst_20 {dimension_numbers = #tpu.dot_dimension_numbers<[1], [0], [0], [1], [0, 0, 1, 1], [], []>} : vector<16x32xf32>, vector<32x96xf32>, vector<16x96xf32> -> vector<16x96xf32>
    %c0_21 = arith.constant 0 : index
    %c0_22 = arith.constant 0 : index
    %c0_23 = arith.constant 0 : index
    %36 = vector.load %arg7[%c0_21, %c0_22, %c0_23] : memref<1x1x96xf32, #tpu.memory_space<vmem>>, vector<1x1x96xf32>
    %37 = vector.shape_cast %36 : vector<1x1x96xf32> to vector<1x96xf32>
    %38 = vector.broadcast %37 : vector<1x96xf32> to vector<16x96xf32>
    %39 = arith.addf %35, %38 : vector<16x96xf32>
    %40 = vector.extract_strided_slice %39 {offsets = [0, 0], sizes = [16, 8], strides = [1, 1]} : vector<16x96xf32> to vector<16x8xf32>
    %41 = vector.shape_cast %40 : vector<16x8xf32> to vector<2x8x8xf32>
    %42 = vector.extract_strided_slice %39 {offsets = [0, 8], sizes = [16, 8], strides = [1, 1]} : vector<16x96xf32> to vector<16x8xf32>
    %43 = vector.shape_cast %42 : vector<16x8xf32> to vector<2x8x8xf32>
    %44 = vector.extract_strided_slice %39 {offsets = [0, 16], sizes = [16, 8], strides = [1, 1]} : vector<16x96xf32> to vector<16x8xf32>
    %45 = vector.shape_cast %44 : vector<16x8xf32> to vector<2x8x8xf32>
    "tpu.trace_start"() <{level = 10 : i32, message = "bqd,bkd->bqk"}> : () -> ()
    %cst_24 = arith.constant dense<0.000000e+00> : vector<2x8x8xf32>
    %46 = tpu.matmul %41, %43, %cst_24 {dimension_numbers = #tpu.dot_dimension_numbers<[2], [2], [1], [1], [0, 0, 0, 1, 1, 1], [0], [0]>} : vector<2x8x8xf32>, vector<2x8x8xf32>, vector<2x8x8xf32> -> vector<2x8x8xf32>
    "tpu.trace_stop"() : () -> ()
    %47 = vector.broadcast %7 : vector<2x1x8xf32> to vector<2x8x8xf32>
    %48 = arith.addf %46, %47 : vector<2x8x8xf32>
    %cst_25 = arith.constant dense<0xFF800000> : vector<2x8xf32>
    %49 = vector.multi_reduction <maximumf>, %48, %cst_25 [2] : vector<2x8x8xf32> to vector<2x8xf32>
    %50 = vector.shape_cast %49 : vector<2x8xf32> to vector<2x8x1xf32>
    %51 = vector.broadcast %50 : vector<2x8x1xf32> to vector<2x8x8xf32>
    %52 = arith.subf %48, %51 : vector<2x8x8xf32>
    %53 = math.exp %52 : vector<2x8x8xf32>
    %cst_26 = arith.constant dense<0.000000e+00> : vector<2x8xf32>
    %54 = vector.multi_reduction <add>, %53, %cst_26 [2] : vector<2x8x8xf32> to vector<2x8xf32>
    %55 = vector.shape_cast %54 : vector<2x8xf32> to vector<2x8x1xf32>
    %56 = tpu.reciprocal %55 {approx = true} : vector<2x8x1xf32> -> vector<2x8x1xf32>
    %57 = vector.broadcast %56 : vector<2x8x1xf32> to vector<2x8x8xf32>
    %58 = arith.mulf %53, %57 : vector<2x8x8xf32>
    "tpu.trace_start"() <{level = 10 : i32, message = "bqk,bkd->bqd"}> : () -> ()
    %cst_27 = arith.constant dense<0.000000e+00> : vector<2x8x8xf32>
    %59 = tpu.matmul %58, %45, %cst_27 {dimension_numbers = #tpu.dot_dimension_numbers<[2], [1], [1], [2], [0, 0, 0, 1, 1, 2], [0], [0]>} : vector<2x8x8xf32>, vector<2x8x8xf32>, vector<2x8x8xf32> -> vector<2x8x8xf32>
    "tpu.trace_stop"() : () -> ()
    %60 = vector.shape_cast %59 : vector<2x8x8xf32> to vector<16x8xf32>
    %61 = vector.extract_strided_slice %39 {offsets = [0, 24], sizes = [16, 8], strides = [1, 1]} : vector<16x96xf32> to vector<16x8xf32>
    %62 = vector.shape_cast %61 : vector<16x8xf32> to vector<2x8x8xf32>
    %63 = vector.extract_strided_slice %39 {offsets = [0, 32], sizes = [16, 8], strides = [1, 1]} : vector<16x96xf32> to vector<16x8xf32>
    %64 = vector.shape_cast %63 : vector<16x8xf32> to vector<2x8x8xf32>
    %65 = vector.extract_strided_slice %39 {offsets = [0, 40], sizes = [16, 8], strides = [1, 1]} : vector<16x96xf32> to vector<16x8xf32>
    %66 = vector.shape_cast %65 : vector<16x8xf32> to vector<2x8x8xf32>
    "tpu.trace_start"() <{level = 10 : i32, message = "bqd,bkd->bqk"}> : () -> ()
    %cst_28 = arith.constant dense<0.000000e+00> : vector<2x8x8xf32>
    %67 = tpu.matmul %62, %64, %cst_28 {dimension_numbers = #tpu.dot_dimension_numbers<[2], [2], [1], [1], [0, 0, 0, 1, 1, 1], [0], [0]>} : vector<2x8x8xf32>, vector<2x8x8xf32>, vector<2x8x8xf32> -> vector<2x8x8xf32>
    "tpu.trace_stop"() : () -> ()
    %68 = vector.broadcast %7 : vector<2x1x8xf32> to vector<2x8x8xf32>
    %69 = arith.addf %67, %68 : vector<2x8x8xf32>
    %cst_29 = arith.constant dense<0xFF800000> : vector<2x8xf32>
    %70 = vector.multi_reduction <maximumf>, %69, %cst_29 [2] : vector<2x8x8xf32> to vector<2x8xf32>
    %71 = vector.shape_cast %70 : vector<2x8xf32> to vector<2x8x1xf32>
    %72 = vector.broadcast %71 : vector<2x8x1xf32> to vector<2x8x8xf32>
    %73 = arith.subf %69, %72 : vector<2x8x8xf32>
    %74 = math.exp %73 : vector<2x8x8xf32>
    %cst_30 = arith.constant dense<0.000000e+00> : vector<2x8xf32>
    %75 = vector.multi_reduction <add>, %74, %cst_30 [2] : vector<2x8x8xf32> to vector<2x8xf32>
    %76 = vector.shape_cast %75 : vector<2x8xf32> to vector<2x8x1xf32>
    %77 = tpu.reciprocal %76 {approx = true} : vector<2x8x1xf32> -> vector<2x8x1xf32>
    %78 = vector.broadcast %77 : vector<2x8x1xf32> to vector<2x8x8xf32>
    %79 = arith.mulf %74, %78 : vector<2x8x8xf32>
    "tpu.trace_start"() <{level = 10 : i32, message = "bqk,bkd->bqd"}> : () -> ()
    %cst_31 = arith.constant dense<0.000000e+00> : vector<2x8x8xf32>
    %80 = tpu.matmul %79, %66, %cst_31 {dimension_numbers = #tpu.dot_dimension_numbers<[2], [1], [1], [2], [0, 0, 0, 1, 1, 2], [0], [0]>} : vector<2x8x8xf32>, vector<2x8x8xf32>, vector<2x8x8xf32> -> vector<2x8x8xf32>
    "tpu.trace_stop"() : () -> ()
    %81 = vector.shape_cast %80 : vector<2x8x8xf32> to vector<16x8xf32>
    %82 = vector.extract_strided_slice %39 {offsets = [0, 48], sizes = [16, 8], strides = [1, 1]} : vector<16x96xf32> to vector<16x8xf32>
    %83 = vector.shape_cast %82 : vector<16x8xf32> to vector<2x8x8xf32>
    %84 = vector.extract_strided_slice %39 {offsets = [0, 56], sizes = [16, 8], strides = [1, 1]} : vector<16x96xf32> to vector<16x8xf32>
    %85 = vector.shape_cast %84 : vector<16x8xf32> to vector<2x8x8xf32>
    %86 = vector.extract_strided_slice %39 {offsets = [0, 64], sizes = [16, 8], strides = [1, 1]} : vector<16x96xf32> to vector<16x8xf32>
    %87 = vector.shape_cast %86 : vector<16x8xf32> to vector<2x8x8xf32>
    "tpu.trace_start"() <{level = 10 : i32, message = "bqd,bkd->bqk"}> : () -> ()
    %cst_32 = arith.constant dense<0.000000e+00> : vector<2x8x8xf32>
    %88 = tpu.matmul %83, %85, %cst_32 {dimension_numbers = #tpu.dot_dimension_numbers<[2], [2], [1], [1], [0, 0, 0, 1, 1, 1], [0], [0]>} : vector<2x8x8xf32>, vector<2x8x8xf32>, vector<2x8x8xf32> -> vector<2x8x8xf32>
    "tpu.trace_stop"() : () -> ()
    %89 = vector.broadcast %7 : vector<2x1x8xf32> to vector<2x8x8xf32>
    %90 = arith.addf %88, %89 : vector<2x8x8xf32>
    %cst_33 = arith.constant dense<0xFF800000> : vector<2x8xf32>
    %91 = vector.multi_reduction <maximumf>, %90, %cst_33 [2] : vector<2x8x8xf32> to vector<2x8xf32>
    %92 = vector.shape_cast %91 : vector<2x8xf32> to vector<2x8x1xf32>
    %93 = vector.broadcast %92 : vector<2x8x1xf32> to vector<2x8x8xf32>
    %94 = arith.subf %90, %93 : vector<2x8x8xf32>
    %95 = math.exp %94 : vector<2x8x8xf32>
    %cst_34 = arith.constant dense<0.000000e+00> : vector<2x8xf32>
    %96 = vector.multi_reduction <add>, %95, %cst_34 [2] : vector<2x8x8xf32> to vector<2x8xf32>
    %97 = vector.shape_cast %96 : vector<2x8xf32> to vector<2x8x1xf32>
    %98 = tpu.reciprocal %97 {approx = true} : vector<2x8x1xf32> -> vector<2x8x1xf32>
    %99 = vector.broadcast %98 : vector<2x8x1xf32> to vector<2x8x8xf32>
    %100 = arith.mulf %95, %99 : vector<2x8x8xf32>
    "tpu.trace_start"() <{level = 10 : i32, message = "bqk,bkd->bqd"}> : () -> ()
    %cst_35 = arith.constant dense<0.000000e+00> : vector<2x8x8xf32>
    %101 = tpu.matmul %100, %87, %cst_35 {dimension_numbers = #tpu.dot_dimension_numbers<[2], [1], [1], [2], [0, 0, 0, 1, 1, 2], [0], [0]>} : vector<2x8x8xf32>, vector<2x8x8xf32>, vector<2x8x8xf32> -> vector<2x8x8xf32>
    "tpu.trace_stop"() : () -> ()
    %102 = vector.shape_cast %101 : vector<2x8x8xf32> to vector<16x8xf32>
    %103 = vector.extract_strided_slice %39 {offsets = [0, 72], sizes = [16, 8], strides = [1, 1]} : vector<16x96xf32> to vector<16x8xf32>
    %104 = vector.shape_cast %103 : vector<16x8xf32> to vector<2x8x8xf32>
    %105 = vector.extract_strided_slice %39 {offsets = [0, 80], sizes = [16, 8], strides = [1, 1]} : vector<16x96xf32> to vector<16x8xf32>
    %106 = vector.shape_cast %105 : vector<16x8xf32> to vector<2x8x8xf32>
    %107 = vector.extract_strided_slice %39 {offsets = [0, 88], sizes = [16, 8], strides = [1, 1]} : vector<16x96xf32> to vector<16x8xf32>
    %108 = vector.shape_cast %107 : vector<16x8xf32> to vector<2x8x8xf32>
    "tpu.trace_start"() <{level = 10 : i32, message = "bqd,bkd->bqk"}> : () -> ()
    %cst_36 = arith.constant dense<0.000000e+00> : vector<2x8x8xf32>
    %109 = tpu.matmul %104, %106, %cst_36 {dimension_numbers = #tpu.dot_dimension_numbers<[2], [2], [1], [1], [0, 0, 0, 1, 1, 1], [0], [0]>} : vector<2x8x8xf32>, vector<2x8x8xf32>, vector<2x8x8xf32> -> vector<2x8x8xf32>
    "tpu.trace_stop"() : () -> ()
    %110 = vector.broadcast %7 : vector<2x1x8xf32> to vector<2x8x8xf32>
    %111 = arith.addf %109, %110 : vector<2x8x8xf32>
    %cst_37 = arith.constant dense<0xFF800000> : vector<2x8xf32>
    %112 = vector.multi_reduction <maximumf>, %111, %cst_37 [2] : vector<2x8x8xf32> to vector<2x8xf32>
    %113 = vector.shape_cast %112 : vector<2x8xf32> to vector<2x8x1xf32>
    %114 = vector.broadcast %113 : vector<2x8x1xf32> to vector<2x8x8xf32>
    %115 = arith.subf %111, %114 : vector<2x8x8xf32>
    %116 = math.exp %115 : vector<2x8x8xf32>
    %cst_38 = arith.constant dense<0.000000e+00> : vector<2x8xf32>
    %117 = vector.multi_reduction <add>, %116, %cst_38 [2] : vector<2x8x8xf32> to vector<2x8xf32>
    %118 = vector.shape_cast %117 : vector<2x8xf32> to vector<2x8x1xf32>
    %119 = tpu.reciprocal %118 {approx = true} : vector<2x8x1xf32> -> vector<2x8x1xf32>
    %120 = vector.broadcast %119 : vector<2x8x1xf32> to vector<2x8x8xf32>
    %121 = arith.mulf %116, %120 : vector<2x8x8xf32>
    "tpu.trace_start"() <{level = 10 : i32, message = "bqk,bkd->bqd"}> : () -> ()
    %cst_39 = arith.constant dense<0.000000e+00> : vector<2x8x8xf32>
    %122 = tpu.matmul %121, %108, %cst_39 {dimension_numbers = #tpu.dot_dimension_numbers<[2], [1], [1], [2], [0, 0, 0, 1, 1, 2], [0], [0]>} : vector<2x8x8xf32>, vector<2x8x8xf32>, vector<2x8x8xf32> -> vector<2x8x8xf32>
    "tpu.trace_stop"() : () -> ()
    %123 = vector.shape_cast %122 : vector<2x8x8xf32> to vector<16x8xf32>
    %124 = tpu.concatenate %60, %81, %102, %123 in 1 : vector<16x8xf32>, vector<16x8xf32>, vector<16x8xf32>, vector<16x8xf32> -> vector<16x32xf32>
    %c0_40 = arith.constant 0 : index
    %c0_41 = arith.constant 0 : index
    %c0_42 = arith.constant 0 : index
    %125 = vector.load %arg8[%c0_40, %c0_41, %c0_42] : memref<1x32x32xf32, #tpu.memory_space<vmem>>, vector<1x32x32xf32>
    %126 = vector.shape_cast %125 : vector<1x32x32xf32> to vector<32x32xf32>
    %cst_43 = arith.constant dense<0.000000e+00> : vector<16x32xf32>
    %127 = tpu.matmul %124, %126, %cst_43 {dimension_numbers = #tpu.dot_dimension_numbers<[1], [0], [0], [1], [0, 0, 1, 1], [], []>} : vector<16x32xf32>, vector<32x32xf32>, vector<16x32xf32> -> vector<16x32xf32>
    %128 = arith.addf %8, %127 : vector<16x32xf32>
    %c0_44 = arith.constant 0 : index
    %c0_45 = arith.constant 0 : index
    %c0_46 = arith.constant 0 : index
    %129 = vector.load %arg9[%c0_44, %c0_45, %c0_46] : memref<1x1x32xf32, #tpu.memory_space<vmem>>, vector<1x1x32xf32>
    %130 = vector.shape_cast %129 : vector<1x1x32xf32> to vector<1x32xf32>
    %131 = vector.broadcast %130 : vector<1x32xf32> to vector<16x32xf32>
    %132 = arith.addf %128, %131 : vector<16x32xf32>
    %c0_47 = arith.constant 0 : index
    %c0_48 = arith.constant 0 : index
    %c0_49 = arith.constant 0 : index
    %133 = vector.load %arg10[%c0_47, %c0_48, %c0_49] : memref<1x1x32xf32, #tpu.memory_space<vmem>>, vector<1x1x32xf32>
    %134 = vector.shape_cast %133 : vector<1x1x32xf32> to vector<1x32xf32>
    %c0_50 = arith.constant 0 : index
    %c0_51 = arith.constant 0 : index
    %c0_52 = arith.constant 0 : index
    %135 = vector.load %arg11[%c0_50, %c0_51, %c0_52] : memref<1x1x32xf32, #tpu.memory_space<vmem>>, vector<1x1x32xf32>
    %136 = vector.shape_cast %135 : vector<1x1x32xf32> to vector<1x32xf32>
    %cst_53 = arith.constant dense<0.000000e+00> : vector<16xf32>
    %137 = vector.multi_reduction <add>, %132, %cst_53 [1] : vector<16x32xf32> to vector<16xf32>
    %138 = vector.shape_cast %137 : vector<16xf32> to vector<16x1xf32>
    %cst_54 = arith.constant 3.200000e+01 : f32
    %139 = vector.broadcast %cst_54 : f32 to vector<16x1xf32>
    %140 = arith.divf %138, %139 : vector<16x1xf32>
    %141 = vector.broadcast %140 : vector<16x1xf32> to vector<16x32xf32>
    %142 = arith.subf %132, %141 : vector<16x32xf32>
    %143 = arith.mulf %142, %142 : vector<16x32xf32>
    %cst_55 = arith.constant dense<0.000000e+00> : vector<16xf32>
    %144 = vector.multi_reduction <add>, %143, %cst_55 [1] : vector<16x32xf32> to vector<16xf32>
    %145 = vector.shape_cast %144 : vector<16xf32> to vector<16x1xf32>
    %cst_56 = arith.constant 3.100000e+01 : f32
    %146 = vector.broadcast %cst_56 : f32 to vector<16x1xf32>
    %147 = arith.divf %145, %146 : vector<16x1xf32>
    %148 = vector.broadcast %134 : vector<1x32xf32> to vector<16x32xf32>
    %149 = arith.mulf %148, %142 : vector<16x32xf32>
    %150 = math.sqrt %147 : vector<16x1xf32>
    %cst_57 = arith.constant 9.99999997E-7 : f32
    %151 = vector.broadcast %cst_57 : f32 to vector<16x1xf32>
    %152 = arith.addf %150, %151 : vector<16x1xf32>
    %153 = vector.broadcast %152 : vector<16x1xf32> to vector<16x32xf32>
    %154 = arith.divf %149, %153 : vector<16x32xf32>
    %155 = vector.broadcast %136 : vector<1x32xf32> to vector<16x32xf32>
    %156 = arith.addf %154, %155 : vector<16x32xf32>
    %c0_58 = arith.constant 0 : index
    %c0_59 = arith.constant 0 : index
    %c0_60 = arith.constant 0 : index
    %157 = vector.load %arg12[%c0_58, %c0_59, %c0_60] : memref<1x32x64xf32, #tpu.memory_space<vmem>>, vector<1x32x64xf32>
    %158 = vector.shape_cast %157 : vector<1x32x64xf32> to vector<32x64xf32>
    %cst_61 = arith.constant dense<0.000000e+00> : vector<16x64xf32>
    %159 = tpu.matmul %156, %158, %cst_61 {dimension_numbers = #tpu.dot_dimension_numbers<[1], [0], [0], [1], [0, 0, 1, 1], [], []>} : vector<16x32xf32>, vector<32x64xf32>, vector<16x64xf32> -> vector<16x64xf32>
    %c0_62 = arith.constant 0 : index
    %c0_63 = arith.constant 0 : index
    %c0_64 = arith.constant 0 : index
    %160 = vector.load %arg13[%c0_62, %c0_63, %c0_64] : memref<1x1x64xf32, #tpu.memory_space<vmem>>, vector<1x1x64xf32>
    %161 = vector.shape_cast %160 : vector<1x1x64xf32> to vector<1x64xf32>
    %162 = vector.broadcast %161 : vector<1x64xf32> to vector<16x64xf32>
    %163 = arith.addf %159, %162 : vector<16x64xf32>
    %cst_65 = arith.constant 0.000000e+00 : f32
    %164 = vector.broadcast %cst_65 : f32 to vector<16x64xf32>
    %165 = arith.maximumf %163, %164 : vector<16x64xf32>
    %c0_66 = arith.constant 0 : index
    %c0_67 = arith.constant 0 : index
    %c0_68 = arith.constant 0 : index
    %166 = vector.load %arg14[%c0_66, %c0_67, %c0_68] : memref<1x64x32xf32, #tpu.memory_space<vmem>>, vector<1x64x32xf32>
    %167 = vector.shape_cast %166 : vector<1x64x32xf32> to vector<64x32xf32>
    %cst_69 = arith.constant dense<0.000000e+00> : vector<16x32xf32>
    %168 = tpu.matmul %165, %167, %cst_69 {dimension_numbers = #tpu.dot_dimension_numbers<[1], [0], [0], [1], [0, 0, 1, 1], [], []>} : vector<16x64xf32>, vector<64x32xf32>, vector<16x32xf32> -> vector<16x32xf32>
    %169 = arith.addf %132, %168 : vector<16x32xf32>
    %c0_70 = arith.constant 0 : index
    %c0_71 = arith.constant 0 : index
    %c0_72 = arith.constant 0 : index
    %170 = vector.load %arg15[%c0_70, %c0_71, %c0_72] : memref<1x1x32xf32, #tpu.memory_space<vmem>>, vector<1x1x32xf32>
    %171 = vector.shape_cast %170 : vector<1x1x32xf32> to vector<1x32xf32>
    %172 = vector.broadcast %171 : vector<1x32xf32> to vector<16x32xf32>
    %173 = arith.addf %169, %172 : vector<16x32xf32>
    %c0_73 = arith.constant 0 : index
    %c0_74 = arith.constant 0 : index
    %174 = vector.load %arg23[%c0_73, %c0_74] : memref<16x32xf32, #tpu.memory_space<vmem>>, vector<16x32xf32>
    tpu.vector_store %arg23[%c0_73, %c0_74], %173 {strides = array<i32>} : memref<16x32xf32, #tpu.memory_space<vmem>>, vector<16x32xf32>,
    %c1_i32 = arith.constant 1 : i32
    %175 = arith.cmpi eq, %arg1, %c1_i32 : i32
    %176 = arith.extui %175 : i1 to i32
    %c0_i32_75 = arith.constant 0 : i32
    %177 = arith.cmpi ne, %176, %c0_i32_75 : i32
    scf.if %177 {
      %c0_76 = arith.constant 0 : index
      %c0_77 = arith.constant 0 : index
      %178 = vector.load %arg16[%c0_76, %c0_77] : memref<1x32xf32, #tpu.memory_space<vmem>>, vector<1x32xf32>
      %c0_78 = arith.constant 0 : index
      %c0_79 = arith.constant 0 : index
      %179 = vector.load %arg17[%c0_78, %c0_79] : memref<1x32xf32, #tpu.memory_space<vmem>>, vector<1x32xf32>
      %cst_80 = arith.constant dense<0.000000e+00> : vector<16xf32>
      %180 = vector.multi_reduction <add>, %173, %cst_80 [1] : vector<16x32xf32> to vector<16xf32>
      %181 = vector.shape_cast %180 : vector<16xf32> to vector<16x1xf32>
      %cst_81 = arith.constant 3.200000e+01 : f32
      %182 = vector.broadcast %cst_81 : f32 to vector<16x1xf32>
      %183 = arith.divf %181, %182 : vector<16x1xf32>
      %184 = vector.broadcast %183 : vector<16x1xf32> to vector<16x32xf32>
      %185 = arith.subf %173, %184 : vector<16x32xf32>
      %186 = arith.mulf %185, %185 : vector<16x32xf32>
      %cst_82 = arith.constant dense<0.000000e+00> : vector<16xf32>
      %187 = vector.multi_reduction <add>, %186, %cst_82 [1] : vector<16x32xf32> to vector<16xf32>
      %188 = vector.shape_cast %187 : vector<16xf32> to vector<16x1xf32>
      %cst_83 = arith.constant 3.100000e+01 : f32
      %189 = vector.broadcast %cst_83 : f32 to vector<16x1xf32>
      %190 = arith.divf %188, %189 : vector<16x1xf32>
      %191 = vector.broadcast %178 : vector<1x32xf32> to vector<16x32xf32>
      %192 = arith.mulf %191, %185 : vector<16x32xf32>
      %193 = math.sqrt %190 : vector<16x1xf32>
      %cst_84 = arith.constant 9.99999997E-7 : f32
      %194 = vector.broadcast %cst_84 : f32 to vector<16x1xf32>
      %195 = arith.addf %193, %194 : vector<16x1xf32>
      %196 = vector.broadcast %195 : vector<16x1xf32> to vector<16x32xf32>
      %197 = arith.divf %192, %196 : vector<16x32xf32>
      %198 = vector.broadcast %179 : vector<1x32xf32> to vector<16x32xf32>
      %199 = arith.addf %197, %198 : vector<16x32xf32>
      %200 = vector.shape_cast %199 : vector<16x32xf32> to vector<2x8x32xf32>
      "tpu.trace_start"() <{level = 10 : i32, message = "bks,bsd->bkd"}> : () -> ()
      %cst_85 = arith.constant dense<0.000000e+00> : vector<2x1x32xf32>
      %201 = tpu.matmul %3, %200, %cst_85 {dimension_numbers = #tpu.dot_dimension_numbers<[2], [1], [1], [2], [0, 0, 0, 1, 1, 2], [0], [0]>} : vector<2x1x8xf32>, vector<2x8x32xf32>, vector<2x1x32xf32> -> vector<2x1x32xf32>
      "tpu.trace_stop"() : () -> ()
      %202 = vector.shape_cast %201 : vector<2x1x32xf32> to vector<2x32xf32>
      %cst_86 = arith.constant dense<0.000000e+00> : vector<2x1xf32>
      %203 = vector.multi_reduction <add>, %3, %cst_86 [2] : vector<2x1x8xf32> to vector<2x1xf32>
      %204 = vector.broadcast %203 : vector<2x1xf32> to vector<2x32xf32>
      %205 = arith.divf %202, %204 : vector<2x32xf32>
      %c0_87 = arith.constant 0 : index
      %c0_88 = arith.constant 0 : index
      %206 = vector.load %arg18[%c0_87, %c0_88] : memref<32x32xf32, #tpu.memory_space<vmem>>, vector<32x32xf32>
      %cst_89 = arith.constant dense<0.000000e+00> : vector<2x32xf32>
      %207 = tpu.matmul %205, %206, %cst_89 {dimension_numbers = #tpu.dot_dimension_numbers<[1], [0], [0], [1], [0, 0, 1, 1], [], []>} : vector<2x32xf32>, vector<32x32xf32>, vector<2x32xf32> -> vector<2x32xf32>
      %c0_90 = arith.constant 0 : index
      %c0_91 = arith.constant 0 : index
      %208 = vector.load %arg19[%c0_90, %c0_91] : memref<1x32xf32, #tpu.memory_space<vmem>>, vector<1x32xf32>
      %209 = vector.broadcast %208 : vector<1x32xf32> to vector<2x32xf32>
      %210 = arith.addf %207, %209 : vector<2x32xf32>
      %cst_92 = arith.constant 0.000000e+00 : f32
      %211 = vector.broadcast %cst_92 : f32 to vector<2x32xf32>
      %212 = arith.maximumf %210, %211 : vector<2x32xf32>
      %c0_93 = arith.constant 0 : index
      %c0_94 = arith.constant 0 : index
      %213 = vector.load %arg20[%c0_93, %c0_94] : memref<1x32xf32, #tpu.memory_space<vmem>>, vector<1x32xf32>
      %214 = vector.broadcast %213 : vector<1x32xf32> to vector<2x32xf32>
      %215 = arith.mulf %212, %214 : vector<2x32xf32>
      %cst_95 = arith.constant dense<0.000000e+00> : vector<2xf32>
      %216 = vector.multi_reduction <add>, %215, %cst_95 [1] : vector<2x32xf32> to vector<2xf32>
      %217 = vector.shape_cast %216 : vector<2xf32> to vector<2x1xf32>
      %c0_96 = arith.constant 0 : index
      %c0_97 = arith.constant 0 : index
      %218 = vector.load %arg21[%c0_96, %c0_97] : memref<1x1xf32, #tpu.memory_space<vmem>>, vector<1x1xf32>
      %219 = vector.broadcast %218 : vector<1x1xf32> to vector<2x1xf32>
      %220 = arith.addf %217, %219 : vector<2x1xf32>
      %c0_98 = arith.constant 0 : index
      %c0_99 = arith.constant 0 : index
      %221 = vector.load %arg22[%c0_98, %c0_99] : memref<2x1xf32, #tpu.memory_space<vmem>>, vector<2x1xf32>
      tpu.vector_store %arg22[%c0_98, %c0_99], %220 {strides = array<i32>} : memref<2x1xf32, #tpu.memory_space<vmem>>, vector<2x1xf32>,
    } else {
    }
    return
  }
  func.func @transform_0(%arg0: i32, %arg1: i32) -> (i32, i32, i32) {
    %c0_i32 = arith.constant 0 : i32
    %c0_i32_0 = arith.constant 0 : i32
    %c0_i32_1 = arith.constant 0 : i32
    return %arg0, %c0_i32, %c0_i32_0 : i32, i32, i32
  }
  func.func @transform_1(%arg0: i32, %arg1: i32) -> (i32, i32, i32) {
    %c0_i32 = arith.constant 0 : i32
    %c0_i32_0 = arith.constant 0 : i32
    %c0_i32_1 = arith.constant 0 : i32
    return %arg0, %c0_i32, %c0_i32_0 : i32, i32, i32
  }
  func.func @transform_2(%arg0: i32, %arg1: i32) -> (i32, i32, i32) {
    %c0_i32 = arith.constant 0 : i32
    %c0_i32_0 = arith.constant 0 : i32
    %c0_i32_1 = arith.constant 0 : i32
    return %arg1, %c0_i32, %c0_i32_0 : i32, i32, i32
  }
  func.func @transform_3(%arg0: i32, %arg1: i32) -> (i32, i32, i32) {
    %c0_i32 = arith.constant 0 : i32
    %c0_i32_0 = arith.constant 0 : i32
    %c0_i32_1 = arith.constant 0 : i32
    return %arg1, %c0_i32, %c0_i32_0 : i32, i32, i32
  }
  func.func @transform_4(%arg0: i32, %arg1: i32) -> (i32, i32, i32) {
    %c0_i32 = arith.constant 0 : i32
    %c0_i32_0 = arith.constant 0 : i32
    %c0_i32_1 = arith.constant 0 : i32
    return %arg1, %c0_i32, %c0_i32_0 : i32, i32, i32
  }
  func.func @transform_5(%arg0: i32, %arg1: i32) -> (i32, i32, i32) {
    %c0_i32 = arith.constant 0 : i32
    %c0_i32_0 = arith.constant 0 : i32
    %c0_i32_1 = arith.constant 0 : i32
    return %arg1, %c0_i32, %c0_i32_0 : i32, i32, i32
  }
  func.func @transform_6(%arg0: i32, %arg1: i32) -> (i32, i32, i32) {
    %c0_i32 = arith.constant 0 : i32
    %c0_i32_0 = arith.constant 0 : i32
    %c0_i32_1 = arith.constant 0 : i32
    return %arg1, %c0_i32, %c0_i32_0 : i32, i32, i32
  }
  func.func @transform_7(%arg0: i32, %arg1: i32) -> (i32, i32, i32) {
    %c0_i32 = arith.constant 0 : i32
    %c0_i32_0 = arith.constant 0 : i32
    %c0_i32_1 = arith.constant 0 : i32
    return %arg1, %c0_i32, %c0_i32_0 : i32, i32, i32
  }
  func.func @transform_8(%arg0: i32, %arg1: i32) -> (i32, i32, i32) {
    %c0_i32 = arith.constant 0 : i32
    %c0_i32_0 = arith.constant 0 : i32
    %c0_i32_1 = arith.constant 0 : i32
    return %arg1, %c0_i32, %c0_i32_0 : i32, i32, i32
  }
  func.func @transform_9(%arg0: i32, %arg1: i32) -> (i32, i32, i32) {
    %c0_i32 = arith.constant 0 : i32
    %c0_i32_0 = arith.constant 0 : i32
    %c0_i32_1 = arith.constant 0 : i32
    return %arg1, %c0_i32, %c0_i32_0 : i32, i32, i32
  }
  func.func @transform_10(%arg0: i32, %arg1: i32) -> (i32, i32, i32) {
    %c0_i32 = arith.constant 0 : i32
    %c0_i32_0 = arith.constant 0 : i32
    %c0_i32_1 = arith.constant 0 : i32
    return %arg1, %c0_i32, %c0_i32_0 : i32, i32, i32
  }
  func.func @transform_11(%arg0: i32, %arg1: i32) -> (i32, i32, i32) {
    %c0_i32 = arith.constant 0 : i32
    %c0_i32_0 = arith.constant 0 : i32
    %c0_i32_1 = arith.constant 0 : i32
    return %arg1, %c0_i32, %c0_i32_0 : i32, i32, i32
  }
  func.func @transform_12(%arg0: i32, %arg1: i32) -> (i32, i32, i32) {
    %c0_i32 = arith.constant 0 : i32
    %c0_i32_0 = arith.constant 0 : i32
    %c0_i32_1 = arith.constant 0 : i32
    return %arg1, %c0_i32, %c0_i32_0 : i32, i32, i32
  }
  func.func @transform_13(%arg0: i32, %arg1: i32) -> (i32, i32, i32) {
    %c0_i32 = arith.constant 0 : i32
    %c0_i32_0 = arith.constant 0 : i32
    %c0_i32_1 = arith.constant 0 : i32
    return %arg1, %c0_i32, %c0_i32_0 : i32, i32, i32
  }
  func.func @transform_14(%arg0: i32, %arg1: i32) -> (i32, i32) {
    %c0_i32 = arith.constant 0 : i32
    %c0_i32_0 = arith.constant 0 : i32
    %c0_i32_1 = arith.constant 0 : i32
    return %c0_i32, %c0_i32_0 : i32, i32
  }
  func.func @transform_15(%arg0: i32, %arg1: i32) -> (i32, i32) {
    %c0_i32 = arith.constant 0 : i32
    %c0_i32_0 = arith.constant 0 : i32
    %c0_i32_1 = arith.constant 0 : i32
    return %c0_i32, %c0_i32_0 : i32, i32
  }
  func.func @transform_16(%arg0: i32, %arg1: i32) -> (i32, i32) {
    %c0_i32 = arith.constant 0 : i32
    %c0_i32_0 = arith.constant 0 : i32
    %c0_i32_1 = arith.constant 0 : i32
    return %c0_i32, %c0_i32_0 : i32, i32
  }
  func.func @transform_17(%arg0: i32, %arg1: i32) -> (i32, i32) {
    %c0_i32 = arith.constant 0 : i32
    %c0_i32_0 = arith.constant 0 : i32
    %c0_i32_1 = arith.constant 0 : i32
    return %c0_i32, %c0_i32_0 : i32, i32
  }
  func.func @transform_18(%arg0: i32, %arg1: i32) -> (i32, i32) {
    %c0_i32 = arith.constant 0 : i32
    %c0_i32_0 = arith.constant 0 : i32
    %c0_i32_1 = arith.constant 0 : i32
    return %c0_i32, %c0_i32_0 : i32, i32
  }
  func.func @transform_19(%arg0: i32, %arg1: i32) -> (i32, i32) {
    %c0_i32 = arith.constant 0 : i32
    %c0_i32_0 = arith.constant 0 : i32
    %c0_i32_1 = arith.constant 0 : i32
    return %c0_i32, %c0_i32_0 : i32, i32
  }
  func.func @transform_20(%arg0: i32, %arg1: i32) -> (i32, i32) {
    %c0_i32 = arith.constant 0 : i32
    %c0_i32_0 = arith.constant 0 : i32
    return %arg0, %c0_i32 : i32, i32
  }
}

</mosaic_0001>

<llo_original>
// kernel: tpu_custom_call.1
$region0: #{tpu_custom_call.1}
  #allocation0 [shape = 'u32[]', space=smem, size = 0x4, offset = 0x4, fixed_abs, tag = 'smem constant byte address 0x4 - core index']
  #allocation1 [shape = 'u32[144,128]{1,0:T(1,128)}', space=vmem, size = 0x12000, scoped, tag = 'internal scratch']
  #allocation2 [shape = 'f32[16,32]{1,0:T(8,128)}', space=vmem, size = 0x2000, scoped, tag = 'scratch operand']
  #allocation3 [shape = 'f32[1,1]{1,0:T(1,128)S(1)}', space=vmem, size = 0x200, scoped, tag = 'scoped memory for tpu_custom_call.1']
  %s0 = inlined_call_operand.hbm [shape: f32[2,8,32], index: 0, kind: input, shape index: {}]
  %s1 = inlined_call_operand.vmem [shape: f32[2,1,8], index: 1, kind: input, shape index: {}]
  %s2 = inlined_call_operand.hbm [shape: f32[2,1,32], index: 2, kind: input, shape index: {}]
  %s3 = inlined_call_operand.hbm [shape: f32[2,1,32], index: 3, kind: input, shape index: {}]
  %s4 = inlined_call_operand.vmem [shape: f32[2,32,96], index: 4, kind: input, shape index: {}]
  %s5 = inlined_call_operand.hbm [shape: f32[2,1,96], index: 5, kind: input, shape index: {}]
  %s6 = inlined_call_operand.vmem [shape: f32[2,32,32], index: 6, kind: input, shape index: {}]
  %s7 = inlined_call_operand.hbm [shape: f32[2,1,32], index: 7, kind: input, shape index: {}]
  %s8 = inlined_call_operand.hbm [shape: f32[2,1,32], index: 8, kind: input, shape index: {}]
  %s9 = inlined_call_operand.vmem [shape: f32[2,1,32], index: 9, kind: input, shape index: {}]
  %s10 = inlined_call_operand.vmem [shape: f32[2,32,64], index: 10, kind: input, shape index: {}]
  %s11 = inlined_call_operand.vmem [shape: f32[2,1,64], index: 11, kind: input, shape index: {}]
  %s12 = inlined_call_operand.vmem [shape: f32[2,64,32], index: 12, kind: input, shape index: {}]
  %s13 = inlined_call_operand.vmem [shape: f32[2,1,32], index: 13, kind: input, shape index: {}]
  %s14 = inlined_call_operand.vmem [shape: f32[1,32], index: 14, kind: input, shape index: {}]
  %s15 = inlined_call_operand.vmem [shape: f32[1,32], index: 15, kind: input, shape index: {}]
  %s16 = inlined_call_operand.vmem [shape: f32[32,32], index: 16, kind: input, shape index: {}]
  %s17 = inlined_call_operand.vmem [shape: f32[1,32], index: 17, kind: input, shape index: {}]
  %s18 = inlined_call_operand.vmem [shape: f32[1,32], index: 18, kind: input, shape index: {}]
  %s19 = inlined_call_operand.<no memory space> [shape: f32[1,1], index: 19, kind: input, shape index: {}]
  %s20 = inlined_call_operand.vmem [shape: f32[2,1], index: 20, kind: output, shape index: {}]
  %s21 = sld [smem:[#allocation0]]
  $region145: #{tpu_custom_call.1} parent=0
    _
  %s23 = ssub.s32 1, %s21
  %s24 = scalar_select 0, %s23, %s21
  %v25 = vstv %s19
  %26 = vst [vmem:[#allocation3] sm:$0x1] %v25
  $region1: #{tpu_custom_call.1} parent=0
    #allocation4 [shape = 'u8[8192]{0}', space=vmem, size = 0x2000, scoped, tag = 'input window, operand 0, single buffered']
    #allocation5 [shape = 's32[2]{0}', space=sflag, size = 0x8, scoped, tag = 'scoped memory for tpu_custom_call.1']
    #allocation6 [shape = 'u8[1024]{0}', space=vmem, size = 0x400, scoped, tag = 'input window, operand 2']
    #allocation7 [shape = 's32[2]{0}', space=sflag, size = 0x8, scoped, tag = 'scoped memory for tpu_custom_call.1']
    #allocation8 [shape = 'u8[1024]{0}', space=vmem, size = 0x400, scoped, tag = 'input window, operand 3']
    #allocation9 [shape = 'u8[1024]{0}', space=vmem, size = 0x400, scoped, tag = 'input window, operand 5']
    #allocation10 [shape = 's32[2]{0}', space=sflag, size = 0x8, scoped, tag = 'scoped memory for tpu_custom_call.1']
    #allocation11 [shape = 'u8[1024]{0}', space=vmem, size = 0x400, scoped, tag = 'input window, operand 7']
    #allocation12 [shape = 'u8[1024]{0}', space=vmem, size = 0x400, scoped, tag = 'input window, operand 8']
    #allocation13 [shape = 's32[2]{0}', space=sflag, size = 0x8, scoped, tag = 'scoped memory for tpu_custom_call.1']
    %27 = vsyncpa [#allocation5], 0
    %28 = vsyncpa [#allocation7], 0
    %s29 = scalar_lea.sflag [#allocation7], 1
    %30 = vsyncpa %s29, 0
    %31 = vsyncpa [#allocation10], 0
    %s32 = scalar_lea.sflag [#allocation10], 1
    %33 = vsyncpa %s32, 0
    %34 = vsyncpa [#allocation13], 0
    %s35 = scalar_lea.sflag [#allocation13], 1
    %36 = vsyncpa %s35, 0
    loop: start=0, step=1, limit=4
    $region2: #{tpu_custom_call.1} parent=1 // loop_pre_header
      _
    $region3: #{tpu_custom_call.1} parent=1 // loop_header
      %s38 = sphi 0, %s42
      %p39 = scmp.ge.s32.totalorder %s38, 4
      %s45 = sphi 0, %s57
      %s46 = sphi 0, %s53
      %s47 = sphi 0, %s45
      %s48 = sphi 0, %s46
      %s49 = sphi 0, %s47
      %s50 = sphi 0, %s48
      %s60 = sphi 0, %s62
      %s63 = sphi 0, %s60
      %s64 = sphi 0, %s63
      %s80 = sphi 0, %s64
      %s86 = sphi 0, %s88
      %s89 = sphi 0, %s86
      %s90 = sphi 0, %s89
      %s106 = sphi 0, %s90
      %s112 = sphi 0, %s114
      %s115 = sphi 0, %s112
      %s116 = sphi 0, %s115
      %s132 = sphi 0, %s116
      %s138 = sphi 0, %s140
      %s141 = sphi 0, %s138
      %s142 = sphi 0, %s141
      %s158 = sphi 0, %s142
      %s164 = sphi 0, %s166
      %s167 = sphi 0, %s164
      %s168 = sphi 0, %s167
      %s184 = sphi 0, %s168
      %s190 = sphi 0, %s192
      %s193 = sphi 0, %s190
      %s194 = sphi 0, %s193
      %s210 = sphi 0, %s194
      %s216 = sphi 0, %s218
      %s219 = sphi 0, %s216
      %s220 = sphi 0, %s219
      %s236 = sphi 0, %s220
      %s242 = sphi 0, %s244
      %s245 = sphi 0, %s242
      %s246 = sphi 0, %s245
      %s262 = sphi 0, %s246
      %s268 = sphi 0, %s270
      %s271 = sphi 0, %s268
      %s272 = sphi 0, %s271
      %s288 = sphi 0, %s272
      %s294 = sphi 0, %s296
      %s297 = sphi 0, %s294
      %s298 = sphi 0, %s297
      %s314 = sphi 0, %s298
      %s320 = sphi 0, %s322
      %s323 = sphi 0, %s320
      %s324 = sphi 0, %s323
      %s340 = sphi 0, %s324
      %s346 = sphi 0, %s348
      %s349 = sphi 0, %s346
      %s350 = sphi 0, %s349
      %s366 = sphi 0, %s350
      %s372 = sphi 0, %s374
      %s375 = sphi 0, %s372
      %s376 = sphi 0, %s375
      %s392 = sphi 0, %s376
      %s398 = sphi 0, %s400
      %s401 = sphi 0, %s398
      %s402 = sphi 0, %s401
      %s418 = sphi 0, %s402
      %s422 = sphi 0, %s422
      %s424 = sphi 0, %s422
      %s425 = sphi 0, %s424
      %s439 = sphi 0, %s425
      %s443 = sphi 0, %s443
      %s445 = sphi 0, %s443
      %s446 = sphi 0, %s445
      %s460 = sphi 0, %s446
      %s464 = sphi 0, %s464
      %s466 = sphi 0, %s464
      %s467 = sphi 0, %s466
      %s481 = sphi 0, %s467
      %s485 = sphi 0, %s485
      %s487 = sphi 0, %s485
      %s488 = sphi 0, %s487
      %s502 = sphi 0, %s488
      %s506 = sphi 0, %s506
      %s508 = sphi 0, %s506
      %s509 = sphi 0, %s508
      %s523 = sphi 0, %s509
      %s527 = sphi 0, %s527
      %s529 = sphi 0, %s527
      %s530 = sphi 0, %s529
      %s544 = sphi 0, %s530
      %s550 = sphi 0, %s552
      %s553 = sphi 0, %s550
      %s554 = sphi 0, %s553
      %s570 = sphi 0, %s554
    $region4: #{tpu_custom_call.1} parent=1 // loop_header_branch
      %41 = sbr.rel (%p39) target = $region8
    $region5: #{tpu_custom_call.1} parent=1 // loop_body
      %s43 = ssub.s32 %s38, 1
      %s44 = ssub.s32 %s38, 2
      %s51 = sadd.s32 1, %s46
      %p52 = scmp.ge.s32.totalorder %s51, 2
      %s53 = scalar_select %p52, 0, %s51
      %s54 = sadd.s32 1, %s45
      %s55 = scalar_select %p52, %s54, %s45
      %p56 = scmp.ge.s32.totalorder %s55, 1
      %s57 = scalar_select %p56, 0, %s55
      %s58 = ssub.s32 %s45, %s57
      %p59 = scmp.eq.s32.totalorder %s58, 0
      %s61 = sadd.s32 %s60, 1
      %s62 = scalar_select %p59, %s60, %s61
      %p65 = pneg %p59
      %p66 = scmp.eq.s32.totalorder %s38, 1
      %p67 = por %p65, %p66
      %p68 = scmp.ne.s32.totalorder %s60, %s63
      %p69 = scmp.eq.s32.totalorder %s38, 0
      %p70 = por %p68, %p69
      %p71 = scmp.ne.s32.totalorder %s60, %s63
      %p72 = scmp.eq.s32.totalorder %s43, 1
      %p73 = por %p71, %p72
      %p74 = scmp.ne.s32.totalorder %s63, %s64
      %p75 = scmp.eq.s32.totalorder %s43, 0
      %p76 = por %p74, %p75
      %p77 = scmp.ne.s32.totalorder %s63, %s64
      %p78 = scmp.eq.s32.totalorder %s44, 1
      %p79 = por %p77, %p78
      %p81 = scmp.ne.s32.totalorder %s64, %s80
      %p82 = scmp.eq.s32.totalorder %s44, 0
      %p83 = por %p81, %p82
      %s84 = ssub.s32 %s45, %s57
      %p85 = scmp.eq.s32.totalorder %s84, 0
      %s87 = sadd.s32 %s86, 1
      %s88 = scalar_select %p85, %s86, %s87
      %p91 = pneg %p85
      %p92 = scmp.eq.s32.totalorder %s38, 1
      %p93 = por %p91, %p92
      %p94 = scmp.ne.s32.totalorder %s86, %s89
      %p95 = scmp.eq.s32.totalorder %s38, 0
      %p96 = por %p94, %p95
      %p97 = scmp.ne.s32.totalorder %s86, %s89
      %p98 = scmp.eq.s32.totalorder %s43, 1
      %p99 = por %p97, %p98
      %p100 = scmp.ne.s32.totalorder %s89, %s90
      %p101 = scmp.eq.s32.totalorder %s43, 0
      %p102 = por %p100, %p101
      %p103 = scmp.ne.s32.totalorder %s89, %s90
      %p104 = scmp.eq.s32.totalorder %s44, 1
      %p105 = por %p103, %p104
      %p107 = scmp.ne.s32.totalorder %s90, %s106
      %p108 = scmp.eq.s32.totalorder %s44, 0
      %p109 = por %p107, %p108
      %s110 = ssub.s32 %s46, %s53
      %p111 = scmp.eq.s32.totalorder %s110, 0
      %s113 = sadd.s32 %s112, 1
      %s114 = scalar_select %p111, %s112, %s113
      %p117 = pneg %p111
      %p118 = scmp.eq.s32.totalorder %s38, 1
      %p119 = por %p117, %p118
      %p120 = scmp.ne.s32.totalorder %s112, %s115
      %p121 = scmp.eq.s32.totalorder %s38, 0
      %p122 = por %p120, %p121
      %p123 = scmp.ne.s32.totalorder %s112, %s115
      %p124 = scmp.eq.s32.totalorder %s43, 1
      %p125 = por %p123, %p124
      %p126 = scmp.ne.s32.totalorder %s115, %s116
      %p127 = scmp.eq.s32.totalorder %s43, 0
      %p128 = por %p126, %p127
      %p129 = scmp.ne.s32.totalorder %s115, %s116
      %p130 = scmp.eq.s32.totalorder %s44, 1
      %p131 = por %p129, %p130
      %p133 = scmp.ne.s32.totalorder %s116, %s132
      %p134 = scmp.eq.s32.totalorder %s44, 0
      %p135 = por %p133, %p134
      %s136 = ssub.s32 %s46, %s53
      %p137 = scmp.eq.s32.totalorder %s136, 0
      %s139 = sadd.s32 %s138, 1
      %s140 = scalar_select %p137, %s138, %s139
      %p143 = pneg %p137
      %p144 = scmp.eq.s32.totalorder %s38, 1
      %p145 = por %p143, %p144
      %p146 = scmp.ne.s32.totalorder %s138, %s141
      %p147 = scmp.eq.s32.totalorder %s38, 0
      %p148 = por %p146, %p147
      %p149 = scmp.ne.s32.totalorder %s138, %s141
      %p150 = scmp.eq.s32.totalorder %s43, 1
      %p151 = por %p149, %p150
      %p152 = scmp.ne.s32.totalorder %s141, %s142
      %p153 = scmp.eq.s32.totalorder %s43, 0
      %p154 = por %p152, %p153
      %p155 = scmp.ne.s32.totalorder %s141, %s142
      %p156 = scmp.eq.s32.totalorder %s44, 1
      %p157 = por %p155, %p156
      %p159 = scmp.ne.s32.totalorder %s142, %s158
      %p160 = scmp.eq.s32.totalorder %s44, 0
      %p161 = por %p159, %p160
      %s162 = ssub.s32 %s46, %s53
      %p163 = scmp.eq.s32.totalorder %s162, 0
      %s165 = sadd.s32 %s164, 1
      %s166 = scalar_select %p163, %s164, %s165
      %p169 = pneg %p163
      %p170 = scmp.eq.s32.totalorder %s38, 1
      %p171 = por %p169, %p170
      %p172 = scmp.ne.s32.totalorder %s164, %s167
      %p173 = scmp.eq.s32.totalorder %s38, 0
      %p174 = por %p172, %p173
      %p175 = scmp.ne.s32.totalorder %s164, %s167
      %p176 = scmp.eq.s32.totalorder %s43, 1
      %p177 = por %p175, %p176
      %p178 = scmp.ne.s32.totalorder %s167, %s168
      %p179 = scmp.eq.s32.totalorder %s43, 0
      %p180 = por %p178, %p179
      %p181 = scmp.ne.s32.totalorder %s167, %s168
      %p182 = scmp.eq.s32.totalorder %s44, 1
      %p183 = por %p181, %p182
      %p185 = scmp.ne.s32.totalorder %s168, %s184
      %p186 = scmp.eq.s32.totalorder %s44, 0
      %p187 = por %p185, %p186
      %s188 = ssub.s32 %s46, %s53
      %p189 = scmp.eq.s32.totalorder %s188, 0
      %s191 = sadd.s32 %s190, 1
      %s192 = scalar_select %p189, %s190, %s191
      %p195 = pneg %p189
      %p196 = scmp.eq.s32.totalorder %s38, 1
      %p197 = por %p195, %p196
      %p198 = scmp.ne.s32.totalorder %s190, %s193
      %p199 = scmp.eq.s32.totalorder %s38, 0
      %p200 = por %p198, %p199
      %p201 = scmp.ne.s32.totalorder %s190, %s193
      %p202 = scmp.eq.s32.totalorder %s43, 1
      %p203 = por %p201, %p202
      %p204 = scmp.ne.s32.totalorder %s193, %s194
      %p205 = scmp.eq.s32.totalorder %s43, 0
      %p206 = por %p204, %p205
      %p207 = scmp.ne.s32.totalorder %s193, %s194
      %p208 = scmp.eq.s32.totalorder %s44, 1
      %p209 = por %p207, %p208
      %p211 = scmp.ne.s32.totalorder %s194, %s210
      %p212 = scmp.eq.s32.totalorder %s44, 0
      %p213 = por %p211, %p212
      %s214 = ssub.s32 %s46, %s53
      %p215 = scmp.eq.s32.totalorder %s214, 0
      %s217 = sadd.s32 %s216, 1
      %s218 = scalar_select %p215, %s216, %s217
      %p221 = pneg %p215
      %p222 = scmp.eq.s32.totalorder %s38, 1
      %p223 = por %p221, %p222
      %p224 = scmp.ne.s32.totalorder %s216, %s219
      %p225 = scmp.eq.s32.totalorder %s38, 0
      %p226 = por %p224, %p225
      %p227 = scmp.ne.s32.totalorder %s216, %s219
      %p228 = scmp.eq.s32.totalorder %s43, 1
      %p229 = por %p227, %p228
      %p230 = scmp.ne.s32.totalorder %s219, %s220
      %p231 = scmp.eq.s32.totalorder %s43, 0
      %p232 = por %p230, %p231
      %p233 = scmp.ne.s32.totalorder %s219, %s220
      %p234 = scmp.eq.s32.totalorder %s44, 1
      %p235 = por %p233, %p234
      %p237 = scmp.ne.s32.totalorder %s220, %s236
      %p238 = scmp.eq.s32.totalorder %s44, 0
      %p239 = por %p237, %p238
      %s240 = ssub.s32 %s46, %s53
      %p241 = scmp.eq.s32.totalorder %s240, 0
      %s243 = sadd.s32 %s242, 1
      %s244 = scalar_select %p241, %s242, %s243
      %p247 = pneg %p241
      %p248 = scmp.eq.s32.totalorder %s38, 1
      %p249 = por %p247, %p248
      %p250 = scmp.ne.s32.totalorder %s242, %s245
      %p251 = scmp.eq.s32.totalorder %s38, 0
      %p252 = por %p250, %p251
      %p253 = scmp.ne.s32.totalorder %s242, %s245
      %p254 = scmp.eq.s32.totalorder %s43, 1
      %p255 = por %p253, %p254
      %p256 = scmp.ne.s32.totalorder %s245, %s246
      %p257 = scmp.eq.s32.totalorder %s43, 0
      %p258 = por %p256, %p257
      %p259 = scmp.ne.s32.totalorder %s245, %s246
      %p260 = scmp.eq.s32.totalorder %s44, 1
      %p261 = por %p259, %p260
      %p263 = scmp.ne.s32.totalorder %s246, %s262
      %p264 = scmp.eq.s32.totalorder %s44, 0
      %p265 = por %p263, %p264
      %s266 = ssub.s32 %s46, %s53
      %p267 = scmp.eq.s32.totalorder %s266, 0
      %s269 = sadd.s32 %s268, 1
      %s270 = scalar_select %p267, %s268, %s269
      %p273 = pneg %p267
      %p274 = scmp.eq.s32.totalorder %s38, 1
      %p275 = por %p273, %p274
      %p276 = scmp.ne.s32.totalorder %s268, %s271
      %p277 = scmp.eq.s32.totalorder %s38, 0
      %p278 = por %p276, %p277
      %p279 = scmp.ne.s32.totalorder %s268, %s271
      %p280 = scmp.eq.s32.totalorder %s43, 1
      %p281 = por %p279, %p280
      %p282 = scmp.ne.s32.totalorder %s271, %s272
      %p283 = scmp.eq.s32.totalorder %s43, 0
      %p284 = por %p282, %p283
      %p285 = scmp.ne.s32.totalorder %s271, %s272
      %p286 = scmp.eq.s32.totalorder %s44, 1
      %p287 = por %p285, %p286
      %p289 = scmp.ne.s32.totalorder %s272, %s288
      %p290 = scmp.eq.s32.totalorder %s44, 0
      %p291 = por %p289, %p290
      %s292 = ssub.s32 %s46, %s53
      %p293 = scmp.eq.s32.totalorder %s292, 0
      %s295 = sadd.s32 %s294, 1
      %s296 = scalar_select %p293, %s294, %s295
      %p299 = pneg %p293
      %p300 = scmp.eq.s32.totalorder %s38, 1
      %p301 = por %p299, %p300
      %p302 = scmp.ne.s32.totalorder %s294, %s297
      %p303 = scmp.eq.s32.totalorder %s38, 0
      %p304 = por %p302, %p303
      %p305 = scmp.ne.s32.totalorder %s294, %s297
      %p306 = scmp.eq.s32.totalorder %s43, 1
      %p307 = por %p305, %p306
      %p308 = scmp.ne.s32.totalorder %s297, %s298
      %p309 = scmp.eq.s32.totalorder %s43, 0
      %p310 = por %p308, %p309
      %p311 = scmp.ne.s32.totalorder %s297, %s298
      %p312 = scmp.eq.s32.totalorder %s44, 1
      %p313 = por %p311, %p312
      %p315 = scmp.ne.s32.totalorder %s298, %s314
      %p316 = scmp.eq.s32.totalorder %s44, 0
      %p317 = por %p315, %p316
      %s318 = ssub.s32 %s46, %s53
      %p319 = scmp.eq.s32.totalorder %s318, 0
      %s321 = sadd.s32 %s320, 1
      %s322 = scalar_select %p319, %s320, %s321
      %p325 = pneg %p319
      %p326 = scmp.eq.s32.totalorder %s38, 1
      %p327 = por %p325, %p326
      %p328 = scmp.ne.s32.totalorder %s320, %s323
      %p329 = scmp.eq.s32.totalorder %s38, 0
      %p330 = por %p328, %p329
      %p331 = scmp.ne.s32.totalorder %s320, %s323
      %p332 = scmp.eq.s32.totalorder %s43, 1
      %p333 = por %p331, %p332
      %p334 = scmp.ne.s32.totalorder %s323, %s324
      %p335 = scmp.eq.s32.totalorder %s43, 0
      %p336 = por %p334, %p335
      %p337 = scmp.ne.s32.totalorder %s323, %s324
      %p338 = scmp.eq.s32.totalorder %s44, 1
      %p339 = por %p337, %p338
      %p341 = scmp.ne.s32.totalorder %s324, %s340
      %p342 = scmp.eq.s32.totalorder %s44, 0
      %p343 = por %p341, %p342
      %s344 = ssub.s32 %s46, %s53
      %p345 = scmp.eq.s32.totalorder %s344, 0
      %s347 = sadd.s32 %s346, 1
      %s348 = scalar_select %p345, %s346, %s347
      %p351 = pneg %p345
      %p352 = scmp.eq.s32.totalorder %s38, 1
      %p353 = por %p351, %p352
      %p354 = scmp.ne.s32.totalorder %s346, %s349
      %p355 = scmp.eq.s32.totalorder %s38, 0
      %p356 = por %p354, %p355
      %p357 = scmp.ne.s32.totalorder %s346, %s349
      %p358 = scmp.eq.s32.totalorder %s43, 1
      %p359 = por %p357, %p358
      %p360 = scmp.ne.s32.totalorder %s349, %s350
      %p361 = scmp.eq.s32.totalorder %s43, 0
      %p362 = por %p360, %p361
      %p363 = scmp.ne.s32.totalorder %s349, %s350
      %p364 = scmp.eq.s32.totalorder %s44, 1
      %p365 = por %p363, %p364
      %p367 = scmp.ne.s32.totalorder %s350, %s366
      %p368 = scmp.eq.s32.totalorder %s44, 0
      %p369 = por %p367, %p368
      %s370 = ssub.s32 %s46, %s53
      %p371 = scmp.eq.s32.totalorder %s370, 0
      %s373 = sadd.s32 %s372, 1
      %s374 = scalar_select %p371, %s372, %s373
      %p377 = pneg %p371
      %p378 = scmp.eq.s32.totalorder %s38, 1
      %p379 = por %p377, %p378
      %p380 = scmp.ne.s32.totalorder %s372, %s375
      %p381 = scmp.eq.s32.totalorder %s38, 0
      %p382 = por %p380, %p381
      %p383 = scmp.ne.s32.totalorder %s372, %s375
      %p384 = scmp.eq.s32.totalorder %s43, 1
      %p385 = por %p383, %p384
      %p386 = scmp.ne.s32.totalorder %s375, %s376
      %p387 = scmp.eq.s32.totalorder %s43, 0
      %p388 = por %p386, %p387
      %p389 = scmp.ne.s32.totalorder %s375, %s376
      %p390 = scmp.eq.s32.totalorder %s44, 1
      %p391 = por %p389, %p390
      %p393 = scmp.ne.s32.totalorder %s376, %s392
      %p394 = scmp.eq.s32.totalorder %s44, 0
      %p395 = por %p393, %p394
      %s396 = ssub.s32 %s46, %s53
      %p397 = scmp.eq.s32.totalorder %s396, 0
      %s399 = sadd.s32 %s398, 1
      %s400 = scalar_select %p397, %s398, %s399
      %p403 = pneg %p397
      %p404 = scmp.eq.s32.totalorder %s38, 1
      %p405 = por %p403, %p404
      %p406 = scmp.ne.s32.totalorder %s398, %s401
      %p407 = scmp.eq.s32.totalorder %s38, 0
      %p408 = por %p406, %p407
      %p409 = scmp.ne.s32.totalorder %s398, %s401
      %p410 = scmp.eq.s32.totalorder %s43, 1
      %p411 = por %p409, %p410
      %p412 = scmp.ne.s32.totalorder %s401, %s402
      %p413 = scmp.eq.s32.totalorder %s43, 0
      %p414 = por %p412, %p413
      %p415 = scmp.ne.s32.totalorder %s401, %s402
      %p416 = scmp.eq.s32.totalorder %s44, 1
      %p417 = por %p415, %p416
      %p419 = scmp.ne.s32.totalorder %s402, %s418
      %p420 = scmp.eq.s32.totalorder %s44, 0
      %p421 = por %p419, %p420
      %s423 = sadd.s32 %s422, 1
      %p426 = scmp.eq.s32.totalorder %s38, 1
      %p427 = scmp.ne.s32.totalorder %s422, %s424
      %p428 = scmp.eq.s32.totalorder %s38, 0
      %p429 = por %p427, %p428
      %p430 = scmp.ne.s32.totalorder %s422, %s424
      %p431 = scmp.eq.s32.totalorder %s43, 1
      %p432 = por %p430, %p431
      %p433 = scmp.ne.s32.totalorder %s424, %s425
      %p434 = scmp.eq.s32.totalorder %s43, 0
      %p435 = por %p433, %p434
      %p436 = scmp.ne.s32.totalorder %s424, %s425
      %p437 = scmp.eq.s32.totalorder %s44, 1
      %p438 = por %p436, %p437
      %p440 = scmp.ne.s32.totalorder %s425, %s439
      %p441 = scmp.eq.s32.totalorder %s44, 0
      %p442 = por %p440, %p441
      %s444 = sadd.s32 %s443, 1
      %p447 = scmp.eq.s32.totalorder %s38, 1
      %p448 = scmp.ne.s32.totalorder %s443, %s445
      %p449 = scmp.eq.s32.totalorder %s38, 0
      %p450 = por %p448, %p449
      %p451 = scmp.ne.s32.totalorder %s443, %s445
      %p452 = scmp.eq.s32.totalorder %s43, 1
      %p453 = por %p451, %p452
      %p454 = scmp.ne.s32.totalorder %s445, %s446
      %p455 = scmp.eq.s32.totalorder %s43, 0
      %p456 = por %p454, %p455
      %p457 = scmp.ne.s32.totalorder %s445, %s446
      %p458 = scmp.eq.s32.totalorder %s44, 1
      %p459 = por %p457, %p458
      %p461 = scmp.ne.s32.totalorder %s446, %s460
      %p462 = scmp.eq.s32.totalorder %s44, 0
      %p463 = por %p461, %p462
      %s465 = sadd.s32 %s464, 1
      %p468 = scmp.eq.s32.totalorder %s38, 1
      %p469 = scmp.ne.s32.totalorder %s464, %s466
      %p470 = scmp.eq.s32.totalorder %s38, 0
      %p471 = por %p469, %p470
      %p472 = scmp.ne.s32.totalorder %s464, %s466
      %p473 = scmp.eq.s32.totalorder %s43, 1
      %p474 = por %p472, %p473
      %p475 = scmp.ne.s32.totalorder %s466, %s467
      %p476 = scmp.eq.s32.totalorder %s43, 0
      %p477 = por %p475, %p476
      %p478 = scmp.ne.s32.totalorder %s466, %s467
      %p479 = scmp.eq.s32.totalorder %s44, 1
      %p480 = por %p478, %p479
      %p482 = scmp.ne.s32.totalorder %s467, %s481
      %p483 = scmp.eq.s32.totalorder %s44, 0
      %p484 = por %p482, %p483
      %s486 = sadd.s32 %s485, 1
      %p489 = scmp.eq.s32.totalorder %s38, 1
      %p490 = scmp.ne.s32.totalorder %s485, %s487
      %p491 = scmp.eq.s32.totalorder %s38, 0
      %p492 = por %p490, %p491
      %p493 = scmp.ne.s32.totalorder %s485, %s487
      %p494 = scmp.eq.s32.totalorder %s43, 1
      %p495 = por %p493, %p494
      %p496 = scmp.ne.s32.totalorder %s487, %s488
      %p497 = scmp.eq.s32.totalorder %s43, 0
      %p498 = por %p496, %p497
      %p499 = scmp.ne.s32.totalorder %s487, %s488
      %p500 = scmp.eq.s32.totalorder %s44, 1
      %p501 = por %p499, %p500
      %p503 = scmp.ne.s32.totalorder %s488, %s502
      %p504 = scmp.eq.s32.totalorder %s44, 0
      %p505 = por %p503, %p504
      %s507 = sadd.s32 %s506, 1
      %p510 = scmp.eq.s32.totalorder %s38, 1
      %p511 = scmp.ne.s32.totalorder %s506, %s508
      %p512 = scmp.eq.s32.totalorder %s38, 0
      %p513 = por %p511, %p512
      %p514 = scmp.ne.s32.totalorder %s506, %s508
      %p515 = scmp.eq.s32.totalorder %s43, 1
      %p516 = por %p514, %p515
      %p517 = scmp.ne.s32.totalorder %s508, %s509
      %p518 = scmp.eq.s32.totalorder %s43, 0
      %p519 = por %p517, %p518
      %p520 = scmp.ne.s32.totalorder %s508, %s509
      %p521 = scmp.eq.s32.totalorder %s44, 1
      %p522 = por %p520, %p521
      %p524 = scmp.ne.s32.totalorder %s509, %s523
      %p525 = scmp.eq.s32.totalorder %s44, 0
      %p526 = por %p524, %p525
      %s528 = sadd.s32 %s527, 1
      %p531 = scmp.eq.s32.totalorder %s38, 1
      %p532 = scmp.ne.s32.totalorder %s527, %s529
      %p533 = scmp.eq.s32.totalorder %s38, 0
      %p534 = por %p532, %p533
      %p535 = scmp.ne.s32.totalorder %s527, %s529
      %p536 = scmp.eq.s32.totalorder %s43, 1
      %p537 = por %p535, %p536
      %p538 = scmp.ne.s32.totalorder %s529, %s530
      %p539 = scmp.eq.s32.totalorder %s43, 0
      %p540 = por %p538, %p539
      %p541 = scmp.ne.s32.totalorder %s529, %s530
      %p542 = scmp.eq.s32.totalorder %s44, 1
      %p543 = por %p541, %p542
      %p545 = scmp.ne.s32.totalorder %s530, %s544
      %p546 = scmp.eq.s32.totalorder %s44, 0
      %p547 = por %p545, %p546
      %s548 = ssub.s32 %s45, %s57
      %p549 = scmp.eq.s32.totalorder %s548, 0
      %s551 = sadd.s32 %s550, 1
      %s552 = scalar_select %p549, %s550, %s551
      %p555 = pneg %p549
      %p556 = scmp.eq.s32.totalorder %s38, 1
      %p557 = por %p555, %p556
      %p558 = scmp.ne.s32.totalorder %s550, %s553
      %p559 = scmp.eq.s32.totalorder %s38, 0
      %p560 = por %p558, %p559
      %p561 = scmp.ne.s32.totalorder %s550, %s553
      %p562 = scmp.eq.s32.totalorder %s43, 1
      %p563 = por %p561, %p562
      %p564 = scmp.ne.s32.totalorder %s553, %s554
      %p565 = scmp.eq.s32.totalorder %s43, 0
      %p566 = por %p564, %p565
      %p567 = scmp.ne.s32.totalorder %s553, %s554
      %p568 = scmp.eq.s32.totalorder %s44, 1
      %p569 = por %p567, %p568
      %p571 = scmp.ne.s32.totalorder %s554, %s570
      %p572 = scmp.eq.s32.totalorder %s44, 0
      %p573 = por %p571, %p572
      %p574 = scmp.le.s32.totalorder 1, %s38
      %p575 = scmp.lt.s32.totalorder %s38, 3
      %p576 = pnand %p574, %p575
      %p577 = pneg %p576
      // Predicated region
      $region9: #{tpu_custom_call.1} parent=5 // pred_check
        _
      $region10: #{tpu_custom_call.1} parent=5 // pred_check_branch
        %579 = sbr.rel (%p576) target = $region12
      $region11: #{tpu_custom_call.1} parent=5 // pred_region
        %s580 = ssub.s32 %s38, 1
        // Predicated region
        $region13: #{tpu_custom_call.1} parent=11 // pred_check
          %p581 = pneg %p76
        $region14: #{tpu_custom_call.1} parent=11 // pred_check_branch
          %583 = sbr.rel (%p581) target = $region16
        $region15: #{tpu_custom_call.1} parent=11 // pred_region
          %s584 = smul.u32 2, %s47
          %s586 = ssub.s32 256, 256
          %587 = vsyncadd [#allocation5], %s586
          %s588 = smul.addr %s584, 128
          %s589 = scalar_lea.hbm %s0, %s588
          %s590 = sshll.u32 [#allocation4], 4
          %s591 = int_to_ptr.vmem [resolvable:$true] %s590
          %596 = dma.hbm_to_vmem [thread:$0]  %s589, 256, %s591, [#allocation5], 128, 128, 8
        $region16: #{tpu_custom_call.1} parent=11 // pred_fallthru
          _
        // Predicated region
        $region17: #{tpu_custom_call.1} parent=11 // pred_check
          %p597 = pneg %p102
        $region18: #{tpu_custom_call.1} parent=11 // pred_check_branch
          %599 = sbr.rel (%p597) target = $region20
        $region19: #{tpu_custom_call.1} parent=11 // pred_region
          %s600 = smul.u32 2, %s47
          %p601 = scmp.lt.s32.totalorder %s600, 1
          %s602 = scalar_select %p601, %s600, 1
          %s603 = scalar_lea.vmem %s1, %s602
          %s604 = smul.u32 2, %s47
        $region20: #{tpu_custom_call.1} parent=11 // pred_fallthru
          _
        // Predicated region
        $region21: #{tpu_custom_call.1} parent=11 // pred_check
          %p605 = pneg %p435
        $region22: #{tpu_custom_call.1} parent=11 // pred_check_branch
          %607 = sbr.rel (%p605) target = $region24
        $region23: #{tpu_custom_call.1} parent=11 // pred_region
          _
        $region24: #{tpu_custom_call.1} parent=11 // pred_fallthru
          _
        // Predicated region
        $region25: #{tpu_custom_call.1} parent=11 // pred_check
          %p608 = pneg %p456
        $region26: #{tpu_custom_call.1} parent=11 // pred_check_branch
          %610 = sbr.rel (%p608) target = $region28
        $region27: #{tpu_custom_call.1} parent=11 // pred_region
          _
        $region28: #{tpu_custom_call.1} parent=11 // pred_fallthru
          _
        // Predicated region
        $region29: #{tpu_custom_call.1} parent=11 // pred_check
          %p611 = pneg %p477
        $region30: #{tpu_custom_call.1} parent=11 // pred_check_branch
          %613 = sbr.rel (%p611) target = $region32
        $region31: #{tpu_custom_call.1} parent=11 // pred_region
          _
        $region32: #{tpu_custom_call.1} parent=11 // pred_fallthru
          _
        // Predicated region
        $region33: #{tpu_custom_call.1} parent=11 // pred_check
          %p614 = pneg %p498
        $region34: #{tpu_custom_call.1} parent=11 // pred_check_branch
          %616 = sbr.rel (%p614) target = $region36
        $region35: #{tpu_custom_call.1} parent=11 // pred_region
          _
        $region36: #{tpu_custom_call.1} parent=11 // pred_fallthru
          _
        // Predicated region
        $region37: #{tpu_custom_call.1} parent=11 // pred_check
          %p617 = pneg %p519
        $region38: #{tpu_custom_call.1} parent=11 // pred_check_branch
          %619 = sbr.rel (%p617) target = $region40
        $region39: #{tpu_custom_call.1} parent=11 // pred_region
          _
        $region40: #{tpu_custom_call.1} parent=11 // pred_fallthru
          _
        // Predicated region
        $region41: #{tpu_custom_call.1} parent=11 // pred_check
          %p620 = pneg %p540
        $region42: #{tpu_custom_call.1} parent=11 // pred_check_branch
          %622 = sbr.rel (%p620) target = $region44
        $region43: #{tpu_custom_call.1} parent=11 // pred_region
          _
        $region44: #{tpu_custom_call.1} parent=11 // pred_fallthru
          _
      $region12: #{tpu_custom_call.1} parent=5 // pred_fallthru
        _
      %p623 = scmp.lt.s32.totalorder %s38, 2
      // Predicated region
      $region45: #{tpu_custom_call.1} parent=5 // pred_check
        %p624 = pneg %p623
      $region46: #{tpu_custom_call.1} parent=5 // pred_check_branch
        %626 = sbr.rel (%p624) target = $region48
      $region47: #{tpu_custom_call.1} parent=5 // pred_region
        // Predicated region
        $region49: #{tpu_custom_call.1} parent=47 // pred_check
          %p627 = pneg %p122
        $region50: #{tpu_custom_call.1} parent=47 // pred_check_branch
          %629 = sbr.rel (%p627) target = $region52
        $region51: #{tpu_custom_call.1} parent=47 // pred_region
          %s630 = sand.u32 %s38, 1
          %s631 = scalar_lea.sflag [#allocation7], %s630
          %s632 = sand.u32 %s112, 1
          %s633 = scalar_lea.vmem [#allocation6], %s632
          %s635 = ssub.s32 16, 16
          %636 = vsyncadd %s631, %s635
          %s637 = smul.addr %s46, 16
          %s638 = scalar_lea.hbm %s2, %s637
          %s640 = sshll.u32 %s633, 4
          %s641 = int_to_ptr.vmem [resolvable:$true] %s640
          %643 = dma.hbm_to_vmem [thread:$0]  %s638, 16, %s641, %s631
        $region52: #{tpu_custom_call.1} parent=47 // pred_fallthru
          _
        // Predicated region
        $region53: #{tpu_custom_call.1} parent=47 // pred_check
          %p644 = pneg %p148
        $region54: #{tpu_custom_call.1} parent=47 // pred_check_branch
          %646 = sbr.rel (%p644) target = $region56
        $region55: #{tpu_custom_call.1} parent=47 // pred_region
          %s647 = sand.u32 %s38, 1
          %s648 = scalar_lea.sflag [#allocation7], %s647
          %s649 = sand.u32 %s138, 1
          %s650 = scalar_lea.vmem [#allocation8], %s649
          %s652 = ssub.s32 16, 16
          %653 = vsyncadd %s648, %s652
          %s654 = smul.addr %s46, 16
          %s655 = scalar_lea.hbm %s3, %s654
          %s657 = sshll.u32 %s650, 4
          %s658 = int_to_ptr.vmem [resolvable:$true] %s657
          %660 = dma.hbm_to_vmem [thread:$0]  %s655, 16, %s658, %s648
        $region56: #{tpu_custom_call.1} parent=47 // pred_fallthru
          _
        // Predicated region
        $region57: #{tpu_custom_call.1} parent=47 // pred_check
          %p661 = pneg %p174
        $region58: #{tpu_custom_call.1} parent=47 // pred_check_branch
          %663 = sbr.rel (%p661) target = $region60
        $region59: #{tpu_custom_call.1} parent=47 // pred_region
          %p664 = scmp.lt.s32.totalorder %s46, 1
          %s665 = scalar_select %p664, %s46, 1
          %s666 = smul.addr %s665, 4
          %s667 = smul.addr %s666, 8
          %s668 = scalar_lea.vmem %s4, %s667
        $region60: #{tpu_custom_call.1} parent=47 // pred_fallthru
          _
        // Predicated region
        $region61: #{tpu_custom_call.1} parent=47 // pred_check
          %p669 = pneg %p200
        $region62: #{tpu_custom_call.1} parent=47 // pred_check_branch
          %671 = sbr.rel (%p669) target = $region64
        $region63: #{tpu_custom_call.1} parent=47 // pred_region
          %s672 = sand.u32 %s38, 1
          %s673 = scalar_lea.sflag [#allocation10], %s672
          %s674 = sand.u32 %s190, 1
          %s675 = scalar_lea.vmem [#allocation9], %s674
          %s677 = ssub.s32 16, 16
          %678 = vsyncadd %s673, %s677
          %s679 = smul.addr %s46, 16
          %s680 = scalar_lea.hbm %s5, %s679
          %s682 = sshll.u32 %s675, 4
          %s683 = int_to_ptr.vmem [resolvable:$true] %s682
          %685 = dma.hbm_to_vmem [thread:$0]  %s680, 16, %s683, %s673
        $region64: #{tpu_custom_call.1} parent=47 // pred_fallthru
          _
        // Predicated region
        $region65: #{tpu_custom_call.1} parent=47 // pred_check
          %p686 = pneg %p226
        $region66: #{tpu_custom_call.1} parent=47 // pred_check_branch
          %688 = sbr.rel (%p686) target = $region68
        $region67: #{tpu_custom_call.1} parent=47 // pred_region
          %p689 = scmp.lt.s32.totalorder %s46, 1
          %s690 = scalar_select %p689, %s46, 1
          %s691 = smul.addr %s690, 4
          %s692 = smul.addr %s691, 8
          %s693 = scalar_lea.vmem %s6, %s692
        $region68: #{tpu_custom_call.1} parent=47 // pred_fallthru
          _
        // Predicated region
        $region69: #{tpu_custom_call.1} parent=47 // pred_check
          %p694 = pneg %p252
        $region70: #{tpu_custom_call.1} parent=47 // pred_check_branch
          %696 = sbr.rel (%p694) target = $region72
        $region71: #{tpu_custom_call.1} parent=47 // pred_region
          %s697 = sand.u32 %s38, 1
          %s698 = scalar_lea.sflag [#allocation10], %s697
          %s699 = sand.u32 %s242, 1
          %s700 = scalar_lea.vmem [#allocation11], %s699
          %s702 = ssub.s32 16, 16
          %703 = vsyncadd %s698, %s702
          %s704 = smul.addr %s46, 16
          %s705 = scalar_lea.hbm %s7, %s704
          %s707 = sshll.u32 %s700, 4
          %s708 = int_to_ptr.vmem [resolvable:$true] %s707
          %710 = dma.hbm_to_vmem [thread:$0]  %s705, 16, %s708, %s698
        $region72: #{tpu_custom_call.1} parent=47 // pred_fallthru
          _
        // Predicated region
        $region73: #{tpu_custom_call.1} parent=47 // pred_check
          %p711 = pneg %p278
        $region74: #{tpu_custom_call.1} parent=47 // pred_check_branch
          %713 = sbr.rel (%p711) target = $region76
        $region75: #{tpu_custom_call.1} parent=47 // pred_region
          %s714 = sand.u32 %s268, 1
          %s715 = scalar_lea.sflag [#allocation13], %s714
          %s716 = sand.u32 %s268, 1
          %s717 = scalar_lea.vmem [#allocation12], %s716
          %s719 = ssub.s32 16, 16
          %720 = vsyncadd %s715, %s719
          %s721 = smul.addr %s46, 16
          %s722 = scalar_lea.hbm %s8, %s721
          %s724 = sshll.u32 %s717, 4
          %s725 = int_to_ptr.vmem [resolvable:$true] %s724
          %727 = dma.hbm_to_vmem [thread:$0]  %s722, 16, %s725, %s715
        $region76: #{tpu_custom_call.1} parent=47 // pred_fallthru
          _
        // Predicated region
        $region77: #{tpu_custom_call.1} parent=47 // pred_check
          %p728 = pneg %p304
        $region78: #{tpu_custom_call.1} parent=47 // pred_check_branch
          %730 = sbr.rel (%p728) target = $region80
        $region79: #{tpu_custom_call.1} parent=47 // pred_region
          %p731 = scmp.lt.s32.totalorder %s46, 1
          %s732 = scalar_select %p731, %s46, 1
          %s733 = scalar_lea.vmem %s9, %s732
        $region80: #{tpu_custom_call.1} parent=47 // pred_fallthru
          _
        // Predicated region
        $region81: #{tpu_custom_call.1} parent=47 // pred_check
          %p734 = pneg %p330
        $region82: #{tpu_custom_call.1} parent=47 // pred_check_branch
          %736 = sbr.rel (%p734) target = $region84
        $region83: #{tpu_custom_call.1} parent=47 // pred_region
          %p737 = scmp.lt.s32.totalorder %s46, 1
          %s738 = scalar_select %p737, %s46, 1
          %s739 = smul.addr %s738, 4
          %s740 = smul.addr %s739, 8
          %s741 = scalar_lea.vmem %s10, %s740
        $region84: #{tpu_custom_call.1} parent=47 // pred_fallthru
          _
        // Predicated region
        $region85: #{tpu_custom_call.1} parent=47 // pred_check
          %p742 = pneg %p356
        $region86: #{tpu_custom_call.1} parent=47 // pred_check_branch
          %744 = sbr.rel (%p742) target = $region88
        $region87: #{tpu_custom_call.1} parent=47 // pred_region
          %p745 = scmp.lt.s32.totalorder %s46, 1
          %s746 = scalar_select %p745, %s46, 1
          %s747 = scalar_lea.vmem %s11, %s746
        $region88: #{tpu_custom_call.1} parent=47 // pred_fallthru
          _
        // Predicated region
        $region89: #{tpu_custom_call.1} parent=47 // pred_check
          %p748 = pneg %p382
        $region90: #{tpu_custom_call.1} parent=47 // pred_check_branch
          %750 = sbr.rel (%p748) target = $region92
        $region91: #{tpu_custom_call.1} parent=47 // pred_region
          %p751 = scmp.lt.s32.totalorder %s46, 1
          %s752 = scalar_select %p751, %s46, 1
          %s753 = smul.addr %s752, 8
          %s754 = smul.addr %s753, 8
          %s755 = scalar_lea.vmem %s12, %s754
        $region92: #{tpu_custom_call.1} parent=47 // pred_fallthru
          _
        // Predicated region
        $region93: #{tpu_custom_call.1} parent=47 // pred_check
          %p756 = pneg %p408
        $region94: #{tpu_custom_call.1} parent=47 // pred_check_branch
          %758 = sbr.rel (%p756) target = $region96
        $region95: #{tpu_custom_call.1} parent=47 // pred_region
          %p759 = scmp.lt.s32.totalorder %s46, 1
          %s760 = scalar_select %p759, %s46, 1
          %s761 = scalar_lea.vmem %s13, %s760
        $region96: #{tpu_custom_call.1} parent=47 // pred_fallthru
          _
      $region48: #{tpu_custom_call.1} parent=5 // pred_fallthru
        _
      %p762 = scmp.le.s32.totalorder 1, %s38
      %p763 = scmp.lt.s32.totalorder %s38, 3
      %p764 = pnand %p762, %p763
      %p765 = pneg %p764
      // Predicated region
      $region97: #{tpu_custom_call.1} parent=5 // pred_check
        _
      $region98: #{tpu_custom_call.1} parent=5 // pred_check_branch
        %767 = sbr.rel (%p764) target = $region100
      $region99: #{tpu_custom_call.1} parent=5 // pred_region
        %s768 = ssub.s32 %s38, 1
        // Predicated region
        $region101: #{tpu_custom_call.1} parent=99 // pred_check
          %p769 = pneg %p76
        $region102: #{tpu_custom_call.1} parent=99 // pred_check_branch
          %771 = sbr.rel (%p769) target = $region104
        $region103: #{tpu_custom_call.1} parent=99 // pred_region
          %772 = dma.done [#allocation5], 256
        $region104: #{tpu_custom_call.1} parent=99 // pred_fallthru
          _
        %s773 = sand.u32 %s43, 1
        %s774 = scalar_lea.sflag [#allocation7], %s773
        %s775 = sand.u32 %s115, 1
        %s776 = scalar_lea.vmem [#allocation6], %s775
        // Predicated region
        $region105: #{tpu_custom_call.1} parent=99 // pred_check
          %p777 = pneg %p128
        $region106: #{tpu_custom_call.1} parent=99 // pred_check_branch
          %779 = sbr.rel (%p777) target = $region108
        $region107: #{tpu_custom_call.1} parent=99 // pred_region
          %780 = dma.done %s774, 16
        $region108: #{tpu_custom_call.1} parent=99 // pred_fallthru
          _
        %s781 = sand.u32 %s43, 1
        %s782 = scalar_lea.sflag [#allocation7], %s781
        %s783 = sand.u32 %s141, 1
        %s784 = scalar_lea.vmem [#allocation8], %s783
        // Predicated region
        $region109: #{tpu_custom_call.1} parent=99 // pred_check
          %p785 = pneg %p154
        $region110: #{tpu_custom_call.1} parent=99 // pred_check_branch
          %787 = sbr.rel (%p785) target = $region112
        $region111: #{tpu_custom_call.1} parent=99 // pred_region
          %788 = dma.done %s782, 16
        $region112: #{tpu_custom_call.1} parent=99 // pred_fallthru
          _
        %s789 = sand.u32 %s43, 1
        %s790 = scalar_lea.sflag [#allocation10], %s789
        %s791 = sand.u32 %s193, 1
        %s792 = scalar_lea.vmem [#allocation9], %s791
        // Predicated region
        $region113: #{tpu_custom_call.1} parent=99 // pred_check
          %p793 = pneg %p206
        $region114: #{tpu_custom_call.1} parent=99 // pred_check_branch
          %795 = sbr.rel (%p793) target = $region116
        $region115: #{tpu_custom_call.1} parent=99 // pred_region
          %796 = dma.done %s790, 16
        $region116: #{tpu_custom_call.1} parent=99 // pred_fallthru
          _
        %s797 = sand.u32 %s43, 1
        %s798 = scalar_lea.sflag [#allocation10], %s797
        %s799 = sand.u32 %s245, 1
        %s800 = scalar_lea.vmem [#allocation11], %s799
        // Predicated region
        $region117: #{tpu_custom_call.1} parent=99 // pred_check
          %p801 = pneg %p258
        $region118: #{tpu_custom_call.1} parent=99 // pred_check_branch
          %803 = sbr.rel (%p801) target = $region120
        $region119: #{tpu_custom_call.1} parent=99 // pred_region
          %804 = dma.done %s798, 16
        $region120: #{tpu_custom_call.1} parent=99 // pred_fallthru
          _
        %s805 = sand.u32 %s271, 1
        %s806 = scalar_lea.sflag [#allocation13], %s805
        %s807 = sand.u32 %s271, 1
        %s808 = scalar_lea.vmem [#allocation12], %s807
        // Predicated region
        $region121: #{tpu_custom_call.1} parent=99 // pred_check
          %p809 = pneg %p284
        $region122: #{tpu_custom_call.1} parent=99 // pred_check_branch
          %811 = sbr.rel (%p809) target = $region124
        $region123: #{tpu_custom_call.1} parent=99 // pred_region
          %812 = dma.done %s806, 16
        $region124: #{tpu_custom_call.1} parent=99 // pred_fallthru
          _
        %p813 = pneg %p76
        %p814 = pneg %p73
        %s815 = smul.u32 2, %s47
        %p816 = scmp.lt.s32.totalorder %s815, 1
        %s817 = scalar_select %p816, %s815, 1
        %s818 = scalar_lea.vmem %s1, %s817
        %p819 = pneg %p102
        %p820 = pneg %p99
        %s821 = sand.u32 %s43, 1
        %s822 = scalar_lea.sflag [#allocation7], %s821
        %s823 = sand.u32 %s115, 1
        %s824 = scalar_lea.vmem [#allocation6], %s823
        %p825 = pneg %p128
        %p826 = pneg %p125
        %s827 = sand.u32 %s43, 1
        %s828 = scalar_lea.sflag [#allocation7], %s827
        %s829 = sand.u32 %s141, 1
        %s830 = scalar_lea.vmem [#allocation8], %s829
        %p831 = pneg %p154
        %p832 = pneg %p151
        %p833 = scmp.lt.s32.totalorder %s48, 1
        %s834 = scalar_select %p833, %s48, 1
        %s835 = smul.addr %s834, 4
        %s836 = smul.addr %s835, 8
        %s837 = scalar_lea.vmem %s4, %s836
        %p838 = pneg %p180
        %p839 = pneg %p177
        %s840 = sand.u32 %s43, 1
        %s841 = scalar_lea.sflag [#allocation10], %s840
        %s842 = sand.u32 %s193, 1
        %s843 = scalar_lea.vmem [#allocation9], %s842
        %p844 = pneg %p206
        %p845 = pneg %p203
        %p846 = scmp.lt.s32.totalorder %s48, 1
        %s847 = scalar_select %p846, %s48, 1
        %s848 = smul.addr %s847, 4
        %s849 = smul.addr %s848, 8
        %s850 = scalar_lea.vmem %s6, %s849
        %p851 = pneg %p232
        %p852 = pneg %p229
        %s853 = sand.u32 %s43, 1
        %s854 = scalar_lea.sflag [#allocation10], %s853
        %s855 = sand.u32 %s245, 1
        %s856 = scalar_lea.vmem [#allocation11], %s855
        %p857 = pneg %p258
        %p858 = pneg %p255
        %s859 = sand.u32 %s271, 1
        %s860 = scalar_lea.sflag [#allocation13], %s859
        %s861 = sand.u32 %s271, 1
        %s862 = scalar_lea.vmem [#allocation12], %s861
        %p863 = pneg %p284
        %p864 = pneg %p281
        %p865 = scmp.lt.s32.totalorder %s48, 1
        %s866 = scalar_select %p865, %s48, 1
        %s867 = scalar_lea.vmem %s9, %s866
        %p868 = pneg %p310
        %p869 = pneg %p307
        %p870 = scmp.lt.s32.totalorder %s48, 1
        %s871 = scalar_select %p870, %s48, 1
        %s872 = smul.addr %s871, 4
        %s873 = smul.addr %s872, 8
        %s874 = scalar_lea.vmem %s10, %s873
        %p875 = pneg %p336
        %p876 = pneg %p333
        %p877 = scmp.lt.s32.totalorder %s48, 1
        %s878 = scalar_select %p877, %s48, 1
        %s879 = scalar_lea.vmem %s11, %s878
        %p880 = pneg %p362
        %p881 = pneg %p359
        %p882 = scmp.lt.s32.totalorder %s48, 1
        %s883 = scalar_select %p882, %s48, 1
        %s884 = smul.addr %s883, 8
        %s885 = smul.addr %s884, 8
        %s886 = scalar_lea.vmem %s12, %s885
        %p887 = pneg %p388
        %p888 = pneg %p385
        %p889 = scmp.lt.s32.totalorder %s48, 1
        %s890 = scalar_select %p889, %s48, 1
        %s891 = scalar_lea.vmem %s13, %s890
        %p892 = pneg %p414
        %p893 = pneg %p411
        %p894 = pneg %p435
        %p895 = pneg %p432
        %p896 = pneg %p456
        %p897 = pneg %p453
        %p898 = pneg %p477
        %p899 = pneg %p474
        %p900 = pneg %p498
        %p901 = pneg %p495
        %p902 = pneg %p519
        %p903 = pneg %p516
        %p904 = pneg %p540
        %p905 = pneg %p537
        %p906 = pneg %p566
        %p907 = pneg %p563
        %p908 = scmp.lt.s32.totalorder %s47, 0
        %s909 = scalar_select %p908, %s47, 0
        %s910 = smul.addr %s909, 2
        %s911 = scalar_lea.vmem %s20, %s910
        %s912 = smul.u32 2, %s47
        %s913 = smul.u32 2, %s47
        %p914 = scmp.lt.s32.totalorder %s913, 1
        %s915 = scalar_select %p914, %s913, 1
        %s916 = scalar_lea.vmem %s1, %s915
        %s917 = smul.u32 2, %s47
        %p918 = scmp.lt.s32.totalorder %s48, 1
        %s919 = scalar_select %p918, %s48, 1
        %s920 = smul.addr %s919, 4
        %s921 = smul.addr %s920, 8
        %s922 = scalar_lea.vmem %s4, %s921
        %p923 = scmp.lt.s32.totalorder %s48, 1
        %s924 = scalar_select %p923, %s48, 1
        %s925 = smul.addr %s924, 4
        %s926 = smul.addr %s925, 8
        %s927 = scalar_lea.vmem %s6, %s926
        %p928 = scmp.lt.s32.totalorder %s48, 1
        %s929 = scalar_select %p928, %s48, 1
        %s930 = scalar_lea.vmem %s9, %s929
        %p931 = scmp.lt.s32.totalorder %s48, 1
        %s932 = scalar_select %p931, %s48, 1
        %s933 = smul.addr %s932, 4
        %s934 = smul.addr %s933, 8
        %s935 = scalar_lea.vmem %s10, %s934
        %p936 = scmp.lt.s32.totalorder %s48, 1
        %s937 = scalar_select %p936, %s48, 1
        %s938 = scalar_lea.vmem %s11, %s937
        %p939 = scmp.lt.s32.totalorder %s48, 1
        %s940 = scalar_select %p939, %s48, 1
        %s941 = smul.addr %s940, 8
        %s942 = smul.addr %s941, 8
        %s943 = scalar_lea.vmem %s12, %s942
        %p944 = scmp.lt.s32.totalorder %s48, 1
        %s945 = scalar_select %p944, %s48, 1
        %s946 = scalar_lea.vmem %s13, %s945
        %p947 = scmp.lt.s32.totalorder %s47, 0
        %s948 = scalar_select %p947, %s47, 0
        %s949 = smul.addr %s948, 2
        %s950 = scalar_lea.vmem %s20, %s949
        %p951 = scmp.eq.s32.totalorder %s48, 0
        // Predicated region
        $region125: #{tpu_custom_call.1} parent=99 // pred_check
          %p952 = pneg %p951
        $region126: #{tpu_custom_call.1} parent=99 // pred_check_branch
          %954 = sbr.rel (%p952) target = $region128
        $region127: #{tpu_custom_call.1} parent=99 // pred_region
          %v955 = vld [vmem:[#allocation4] sm:$0xff]
          %v956 = vld [vmem:[#allocation4 + $0x8] sm:$0xff]
          %vm957 = vcmask 261120
          %958 = vst.msk [vmem:[#allocation2] sm:$0xff] %vm957, %v955
          %959 = vst.msk [vmem:[#allocation2 + $0x8] sm:$0xff] %vm957, %v956
        $region128: #{tpu_custom_call.1} parent=99 // pred_fallthru
          _
        %v960 = vld [vmem:[%s916] sm:$0x1]
        %v961 = vld [vmem:[%s916 + $0x1] sm:$0x1]
        %v962 = vsub.f32 %v960, 1.0
        %v963 = vsub.f32 %v961, 1.0
        %v964 = vmul.f32 %v962, 1e+09
        %v965 = vmul.f32 %v963, 1e+09
        %v966 = vld [vmem:[#allocation2] sm:$0xff]
        %v967 = vld [vmem:[#allocation2 + $0x8] sm:$0xff]
        %v968 = vld [vmem:[%s776] sm:$0x1]
        %v969 = vld [vmem:[%s784] sm:$0x1]
        %vm970 = vcmask 261120
        %v971 = vsel %vm970, %v966, 0.0
        %972 = vadd.xlane.f32.xlu0 %v971
        %v973 = vpop.xlane.xlu0 %972
        %v974 = vsel %vm970, %v967, 0.0
        %975 = vadd.xlane.f32.xlu0 %v974
        %v976 = vpop.xlane.xlu0 %975
        %v977 = vrcp.pop 32.0
        %v978 = vmul.f32 %v973, %v977
        %v979 = vmul.f32 %v976, %v977
        %v980 = vsub.f32 %v966, %v978
        %v981 = vsub.f32 %v967, %v979
        %v982 = vmul.f32 %v980, %v980
        %v983 = vmul.f32 %v981, %v981
        %v984 = vsel %vm970, %v982, 0.0
        %985 = vadd.xlane.f32.xlu0 %v984
        %v986 = vpop.xlane.xlu0 %985
        %v987 = vsel %vm970, %v983, 0.0
        %988 = vadd.xlane.f32.xlu0 %v987
        %v989 = vpop.xlane.xlu0 %988
        %v990 = vrcp.pop 31.0
        %v991 = vmul.f32 %v986, %v990
        %v992 = vmul.f32 %v989, %v990
        %v994 = vlaneseq
        %v995 = vshrl.u32 %v994, 7
        %v996 = vsub.s32 0, %v995
        %v997 = vrot.slane %v968, %v996
        %v999 = vmul.f32 %v997, %v980
        %v1000 = vmul.f32 %v997, %v981
        %v1001 = vrsqrt.pop %v991
        %v1002 = vmul.f32 %v991, %v1001
        %vm1003 = vcmp.eq.f32.partialorder %v991, inf
        %v1004 = vsel %vm1003, %v991, %v1002
        %vm1005 = vcmp.eq.f32.partialorder %v991, 0.0
        %v1006 = vand.u32 %v991, 2147483648
        %v1007 = vsel %vm1005, %v1006, %v1004
        %v1008 = vrsqrt.pop %v992
        %v1009 = vmul.f32 %v992, %v1008
        %vm1010 = vcmp.eq.f32.partialorder %v992, inf
        %v1011 = vsel %vm1010, %v992, %v1009
        %vm1012 = vcmp.eq.f32.partialorder %v992, 0.0
        %v1013 = vand.u32 %v992, 2147483648
        %v1014 = vsel %vm1012, %v1013, %v1011
        %v1015 = vadd.f32 %v1007, 1e-06
        %v1016 = vadd.f32 %v1014, 1e-06
        %v1017 = vrcp.pop %v1015
        %v1018 = vmul.f32 %v999, %v1017
        %v1019 = vrcp.pop %v1016
        %v1020 = vmul.f32 %v1000, %v1019
        %v1022 = vlaneseq
        %v1023 = vshrl.u32 %v1022, 7
        %v1024 = vsub.s32 0, %v1023
        %v1025 = vrot.slane %v969, %v1024
        %v1027 = vadd.f32 %v1018, %v1025
        %v1028 = vadd.f32 %v1020, %v1025
        %v1029 = vld [vmem:[%s922] sm:$0xff]
        %v1030 = vld [vmem:[%s922 + $0x8] sm:$0xff]
        %v1031 = vld [vmem:[%s922 + $0x10] sm:$0xff]
        %v1032 = vld [vmem:[%s922 + $0x18] sm:$0xff]
        %v1033 = vld [vmem:[%s792] sm:$0x1]
        %v1035 = vlaneseq
        %v1036 = vshrl.u32 %v1035, 7
        %v1037 = vsub.s32 0, %v1036
        %v1038 = vrot.slane %v1033, %v1037
        %v1041 = vsel %vm970, %v1027, 0
        %v1044 = vsel %vm970, %v1028, 0
        %1046 = vmatprep.subr.mxu0 0.0
        %1047 = vmatpush1.msra.mxu0 %v1029
        %1048 = vmatprep.subr.mxu0 0.0
        %1049 = vmatpush1.msra.mxu0 %v1030
        %1050 = vmatprep.subr.mxu0 0.0
        %1051 = vmatpush1.msra.mxu0 %v1031
        %1052 = vmatprep.subr.mxu0 0.0
        %1053 = vmatpush1.msra.mxu0 %v1032
        %1054 = vmatprep.subr.mxu0 0.0
        %1055 = vmatpush1.msra.mxu0 0.0
        %1056 = vmatprep.subr.mxu0 0.0
        %1057 = vmatpush1.msra.mxu0 0.0
        %1058 = vmatprep.subr.mxu0 0.0
        %1059 = vmatpush1.msra.mxu0 0.0
        %1060 = vmatprep.subr.mxu0 0.0
        %1061 = vmatpush1.msra.mxu0 0.0
        %1062 = vmatprep.subr.mxu0 0.0
        %1063 = vmatpush1.msra.mxu0 0.0
        %1064 = vmatprep.subr.mxu0 0.0
        %1065 = vmatpush1.msra.mxu0 0.0
        %1066 = vmatprep.subr.mxu0 0.0
        %1067 = vmatpush1.msra.mxu0 0.0
        %1068 = vmatprep.subr.mxu0 0.0
        %1069 = vmatpush1.msra.mxu0 0.0
        %1070 = vmatprep.subr.mxu0 0.0
        %1071 = vmatpush1.msra.mxu0 0.0
        %1072 = vmatprep.subr.mxu0 0.0
        %1073 = vmatpush1.msra.mxu0 0.0
        %1074 = vmatprep.subr.mxu0 0.0
        %1075 = vmatpush1.msra.mxu0 0.0
        %1076 = vmatprep.subr.mxu0 0.0
        %1077 = vmatpush1.msra.mxu0 0.0
        %1078 = vmatprep.subr.mxu0 0.0
        %1079 = vmatpush1.msra.mxu0 0.0
        %1080 = vmatprep.subr.mxu0 0.0
        %1081 = vmatpush1.msra.mxu0 0.0
        %1082 = vmatprep.subr.mxu0 0.0
        %1083 = vmatpush1.msra.mxu0 0.0
        %1084 = vmatprep.subr.mxu0 0.0
        %1085 = vmatpush1.msra.mxu0 0.0
        %1086 = vmatprep.subr.mxu0 0.0
        %1087 = vmatpush1.msra.mxu0 0.0
        %1088 = vmatprep.subr.mxu0 0.0
        %1089 = vmatpush1.msra.mxu0 0.0
        %1090 = vmatprep.subr.mxu0 0.0
        %1091 = vmatpush1.msra.mxu0 0.0
        %1092 = vmatprep.subr.mxu0 0.0
        %1093 = vmatpush1.msra.mxu0 0.0
        %1094 = vmatprep.subr.mxu0 0.0
        %1095 = vmatpush1.msra.mxu0 0.0
        %1096 = vmatprep.subr.mxu0 0.0
        %1097 = vmatpush1.msra.mxu0 0.0
        %1098 = vmatprep.subr.mxu0 0.0
        %1099 = vmatpush1.msra.mxu0 0.0
        %1100 = vmatprep.subr.mxu0 0.0
        %1101 = vmatpush1.msra.mxu0 0.0
        %1102 = vmatprep.subr.mxu0 0.0
        %1103 = vmatpush1.msra.mxu0 0.0
        %1104 = vmatprep.subr.mxu0 0.0
        %1105 = vmatpush1.msra.mxu0 0.0
        %1106 = vmatprep.subr.mxu0 0.0
        %1107 = vmatpush1.msra.mxu0 0.0
        %1108 = vmatprep.subr.mxu0 0.0
        %1109 = vmatpush1.msra.mxu0 0.0
        %1110 = vmatprep.mubr.f32.mxu0 0.0
        %1111 = vmatmul.mubr.f32.gmra.mrb[0].mxu0 %v1041
        %v1112 = vpop.f32.mrb[0].mxu0
        %v1113 = vadd.f32 %v1038, %v1112
        %v1114 = vpop.f32.mrb[0].mxu0
        %1115 = vmatprep.mubr.f32.mxu0 0.0
        %1116 = vmatmul.mubr.f32.gmra.mrb[0].mxu0 %v1044
        %v1117 = vpop.f32.mrb[0].mxu0
        %v1118 = vadd.f32 %v1038, %v1117
        %v1119 = vpop.f32.mrb[0].mxu0
        %1120 = vdwg.mxu0
        %v1123 = vlaneseq
        %v1124 = vshrl.u32 %v1123, 7
        %v1125 = vsub.s32 0, %v1124
        %v1126 = vrot.slane %v964, %v1125
        %v1127 = vlaneseq
        %v1128 = vshrl.u32 %v1127, 7
        %v1129 = vsub.s32 0, %v1128
        %v1130 = vrot.slane %v965, %v1129
        %1134 = vrot.lane.b32.xlu0 %v1113, 120
        %v1135 = vpop.permute.xlu0 %1134
        %vm1136 = vcmask 64512
        %v1137 = vsel %vm1136, %v1113, 0
        %v1139 = vsel %vm1136, %v1135, 0
        %1141 = vmatprep.subr.mxu0 0.0
        %1142 = vmatpush1.xpose.msra.mxu0 %v1139
        %1143 = vmatprep.subr.mxu0 0.0
        %1144 = vmatpush1.xpose.msra.mxu0 0.0
        %1145 = vmatprep.subr.mxu0 0.0
        %1146 = vmatpush1.xpose.msra.mxu0 0.0
        %1147 = vmatprep.subr.mxu0 0.0
        %1148 = vmatpush1.xpose.msra.mxu0 0.0
        %1149 = vmatprep.subr.mxu0 0.0
        %1150 = vmatpush1.xpose.msra.mxu0 0.0
        %1151 = vmatprep.subr.mxu0 0.0
        %1152 = vmatpush1.xpose.msra.mxu0 0.0
        %1153 = vmatprep.subr.mxu0 0.0
        %1154 = vmatpush1.xpose.msra.mxu0 0.0
        %1155 = vmatprep.subr.mxu0 0.0
        %1156 = vmatpush1.xpose.msra.mxu0 0.0
        %1157 = vmatprep.subr.mxu0 0.0
        %1158 = vmatpush1.xpose.msra.mxu0 0.0
        %1159 = vmatprep.subr.mxu0 0.0
        %1160 = vmatpush1.xpose.msra.mxu0 0.0
        %1161 = vmatprep.subr.mxu0 0.0
        %1162 = vmatpush1.xpose.msra.mxu0 0.0
        %1163 = vmatprep.subr.mxu0 0.0
        %1164 = vmatpush1.xpose.msra.mxu0 0.0
        %1165 = vmatprep.subr.mxu0 0.0
        %1166 = vmatpush1.xpose.msra.mxu0 0.0
        %1167 = vmatprep.subr.mxu0 0.0
        %1168 = vmatpush1.xpose.msra.mxu0 0.0
        %1169 = vmatprep.subr.mxu0 0.0
        %1170 = vmatpush1.xpose.msra.mxu0 0.0
        %1171 = vmatprep.subr.mxu0 0.0
        %1172 = vmatpush1.xpose.msra.mxu0 0.0
        %1173 = vmatprep.subr.mxu0 0.0
        %1174 = vmatpush1.xpose.msra.mxu0 0.0
        %1175 = vmatprep.subr.mxu0 0.0
        %1176 = vmatpush1.xpose.msra.mxu0 0.0
        %1177 = vmatprep.subr.mxu0 0.0
        %1178 = vmatpush1.xpose.msra.mxu0 0.0
        %1179 = vmatprep.subr.mxu0 0.0
        %1180 = vmatpush1.xpose.msra.mxu0 0.0
        %1181 = vmatprep.subr.mxu0 0.0
        %1182 = vmatpush1.xpose.msra.mxu0 0.0
        %1183 = vmatprep.subr.mxu0 0.0
        %1184 = vmatpush1.xpose.msra.mxu0 0.0
        %1185 = vmatprep.subr.mxu0 0.0
        %1186 = vmatpush1.xpose.msra.mxu0 0.0
        %1187 = vmatprep.subr.mxu0 0.0
        %1188 = vmatpush1.xpose.msra.mxu0 0.0
        %1189 = vmatprep.subr.mxu0 0.0
        %1190 = vmatpush1.xpose.msra.mxu0 0.0
        %1191 = vmatprep.subr.mxu0 0.0
        %1192 = vmatpush1.xpose.msra.mxu0 0.0
        %1193 = vmatprep.subr.mxu0 0.0
        %1194 = vmatpush1.xpose.msra.mxu0 0.0
        %1195 = vmatprep.subr.mxu0 0.0
        %1196 = vmatpush1.xpose.msra.mxu0 0.0
        %1197 = vmatprep.subr.mxu0 0.0
        %1198 = vmatpush1.xpose.msra.mxu0 0.0
        %1199 = vmatprep.subr.mxu0 0.0
        %1200 = vmatpush1.xpose.msra.mxu0 0.0
        %1201 = vmatprep.subr.mxu0 0.0
        %1202 = vmatpush1.xpose.msra.mxu0 0.0
        %1203 = vmatprep.subr.mxu0 0.0
        %1204 = vmatpush1.xpose.msra.mxu0 0.0
        %1205 = vmatprep.mubr.f32.mxu0 0.0
        %1206 = vmatmul.mubr.f32.gmra.mrb[0].mxu0 %v1137
        %v1207 = vpop.f32.mrb[0].mxu0
        %v1208 = vadd.f32 %v1126, %v1207
        %v1209 = vpop.f32.mrb[0].mxu0
        %1210 = vdwg.mxu0
        %1212 = vrot.lane.b32.xlu0 %v1118, 120
        %v1213 = vpop.permute.xlu0 %1212
        %v1214 = vsel %vm1136, %v1118, 0
        %v1216 = vsel %vm1136, %v1213, 0
        %1218 = vmatprep.subr.mxu0 0.0
        %1219 = vmatpush1.xpose.msra.mxu0 %v1216
        %1220 = vmatprep.subr.mxu0 0.0
        %1221 = vmatpush1.xpose.msra.mxu0 0.0
        %1222 = vmatprep.subr.mxu0 0.0
        %1223 = vmatpush1.xpose.msra.mxu0 0.0
        %1224 = vmatprep.subr.mxu0 0.0
        %1225 = vmatpush1.xpose.msra.mxu0 0.0
        %1226 = vmatprep.subr.mxu0 0.0
        %1227 = vmatpush1.xpose.msra.mxu0 0.0
        %1228 = vmatprep.subr.mxu0 0.0
        %1229 = vmatpush1.xpose.msra.mxu0 0.0
        %1230 = vmatprep.subr.mxu0 0.0
        %1231 = vmatpush1.xpose.msra.mxu0 0.0
        %1232 = vmatprep.subr.mxu0 0.0
        %1233 = vmatpush1.xpose.msra.mxu0 0.0
        %1234 = vmatprep.subr.mxu0 0.0
        %1235 = vmatpush1.xpose.msra.mxu0 0.0
        %1236 = vmatprep.subr.mxu0 0.0
        %1237 = vmatpush1.xpose.msra.mxu0 0.0
        %1238 = vmatprep.subr.mxu0 0.0
        %1239 = vmatpush1.xpose.msra.mxu0 0.0
        %1240 = vmatprep.subr.mxu0 0.0
        %1241 = vmatpush1.xpose.msra.mxu0 0.0
        %1242 = vmatprep.subr.mxu0 0.0
        %1243 = vmatpush1.xpose.msra.mxu0 0.0
        %1244 = vmatprep.subr.mxu0 0.0
        %1245 = vmatpush1.xpose.msra.mxu0 0.0
        %1246 = vmatprep.subr.mxu0 0.0
        %1247 = vmatpush1.xpose.msra.mxu0 0.0
        %1248 = vmatprep.subr.mxu0 0.0
        %1249 = vmatpush1.xpose.msra.mxu0 0.0
        %1250 = vmatprep.subr.mxu0 0.0
        %1251 = vmatpush1.xpose.msra.mxu0 0.0
        %1252 = vmatprep.subr.mxu0 0.0
        %1253 = vmatpush1.xpose.msra.mxu0 0.0
        %1254 = vmatprep.subr.mxu0 0.0
        %1255 = vmatpush1.xpose.msra.mxu0 0.0
        %1256 = vmatprep.subr.mxu0 0.0
        %1257 = vmatpush1.xpose.msra.mxu0 0.0
        %1258 = vmatprep.subr.mxu0 0.0
        %1259 = vmatpush1.xpose.msra.mxu0 0.0
        %1260 = vmatprep.subr.mxu0 0.0
        %1261 = vmatpush1.xpose.msra.mxu0 0.0
        %1262 = vmatprep.subr.mxu0 0.0
        %1263 = vmatpush1.xpose.msra.mxu0 0.0
        %1264 = vmatprep.subr.mxu0 0.0
        %1265 = vmatpush1.xpose.msra.mxu0 0.0
        %1266 = vmatprep.subr.mxu0 0.0
        %1267 = vmatpush1.xpose.msra.mxu0 0.0
        %1268 = vmatprep.subr.mxu0 0.0
        %1269 = vmatpush1.xpose.msra.mxu0 0.0
        %1270 = vmatprep.subr.mxu0 0.0
        %1271 = vmatpush1.xpose.msra.mxu0 0.0
        %1272 = vmatprep.subr.mxu0 0.0
        %1273 = vmatpush1.xpose.msra.mxu0 0.0
        %1274 = vmatprep.subr.mxu0 0.0
        %1275 = vmatpush1.xpose.msra.mxu0 0.0
        %1276 = vmatprep.subr.mxu0 0.0
        %1277 = vmatpush1.xpose.msra.mxu0 0.0
        %1278 = vmatprep.subr.mxu0 0.0
        %1279 = vmatpush1.xpose.msra.mxu0 0.0
        %1280 = vmatprep.subr.mxu0 0.0
        %1281 = vmatpush1.xpose.msra.mxu0 0.0
        %1282 = vmatprep.mubr.f32.mxu0 0.0
        %1283 = vmatmul.mubr.f32.gmra.mrb[0].mxu0 %v1214
        %v1284 = vpop.f32.mrb[0].mxu0
        %v1285 = vadd.f32 %v1130, %v1284
        %v1286 = vpop.f32.mrb[0].mxu0
        %1287 = vdwg.mxu0
        %v1288 = vsel %vm1136, %v1208, -inf
        %1289 = vmax.xlane.f32.xlu0 %v1288
        %v1290 = vpop.xlane.xlu0 %1289
        %v1291 = vsel %vm1136, %v1285, -inf
        %1292 = vmax.xlane.f32.xlu0 %v1291
        %v1293 = vpop.xlane.xlu0 %1292
        %v1294 = vsub.f32 %v1208, %v1290
        %v1295 = vsub.f32 %v1285, %v1293
        %v1296 = vmul.f32 %v1294, 1.442695
        %v1297 = vpow.pop %v1296
        %v1298 = vmul.f32 %v1295, 1.442695
        %v1299 = vpow.pop %v1298
        %v1300 = vsel %vm1136, %v1297, 0.0
        %1301 = vadd.xlane.f32.xlu0 %v1300
        %v1302 = vpop.xlane.xlu0 %1301
        %v1303 = vsel %vm1136, %v1299, 0.0
        %1304 = vadd.xlane.f32.xlu0 %v1303
        %v1305 = vpop.xlane.xlu0 %1304
        %v1306 = vrcp.pop %v1302
        %v1307 = vrcp.pop %v1305
        %v1308 = vmul.f32 %v1297, %v1306
        %v1309 = vmul.f32 %v1299, %v1307
        %1310 = vrot.lane.b32.xlu0 %v1113, 112
        %v1311 = vpop.permute.xlu0 %1310
        %v1314 = vsel %vm1136, %v1308, 0
        %1316 = vmatprep.subr.mxu0 0.0
        %1317 = vmatpush1.msra.mxu0 %v1311
        %1318 = vmatprep.subr.mxu0 0.0
        %1319 = vmatpush1.msra.mxu0 0.0
        %1320 = vmatprep.subr.mxu0 0.0
        %1321 = vmatpush1.msra.mxu0 0.0
        %1322 = vmatprep.subr.mxu0 0.0
        %1323 = vmatpush1.msra.mxu0 0.0
        %1324 = vmatprep.subr.mxu0 0.0
        %1325 = vmatpush1.msra.mxu0 0.0
        %1326 = vmatprep.subr.mxu0 0.0
        %1327 = vmatpush1.msra.mxu0 0.0
        %1328 = vmatprep.subr.mxu0 0.0
        %1329 = vmatpush1.msra.mxu0 0.0
        %1330 = vmatprep.subr.mxu0 0.0
        %1331 = vmatpush1.msra.mxu0 0.0
        %1332 = vmatprep.subr.mxu0 0.0
        %1333 = vmatpush1.msra.mxu0 0.0
        %1334 = vmatprep.subr.mxu0 0.0
        %1335 = vmatpush1.msra.mxu0 0.0
        %1336 = vmatprep.subr.mxu0 0.0
        %1337 = vmatpush1.msra.mxu0 0.0
        %1338 = vmatprep.subr.mxu0 0.0
        %1339 = vmatpush1.msra.mxu0 0.0
        %1340 = vmatprep.subr.mxu0 0.0
        %1341 = vmatpush1.msra.mxu0 0.0
        %1342 = vmatprep.subr.mxu0 0.0
        %1343 = vmatpush1.msra.mxu0 0.0
        %1344 = vmatprep.subr.mxu0 0.0
        %1345 = vmatpush1.msra.mxu0 0.0
        %1346 = vmatprep.subr.mxu0 0.0
        %1347 = vmatpush1.msra.mxu0 0.0
        %1348 = vmatprep.subr.mxu0 0.0
        %1349 = vmatpush1.msra.mxu0 0.0
        %1350 = vmatprep.subr.mxu0 0.0
        %1351 = vmatpush1.msra.mxu0 0.0
        %1352 = vmatprep.subr.mxu0 0.0
        %1353 = vmatpush1.msra.mxu0 0.0
        %1354 = vmatprep.subr.mxu0 0.0
        %1355 = vmatpush1.msra.mxu0 0.0
        %1356 = vmatprep.subr.mxu0 0.0
        %1357 = vmatpush1.msra.mxu0 0.0
        %1358 = vmatprep.subr.mxu0 0.0
        %1359 = vmatpush1.msra.mxu0 0.0
        %1360 = vmatprep.subr.mxu0 0.0
        %1361 = vmatpush1.msra.mxu0 0.0
        %1362 = vmatprep.subr.mxu0 0.0
        %1363 = vmatpush1.msra.mxu0 0.0
        %1364 = vmatprep.subr.mxu0 0.0
        %1365 = vmatpush1.msra.mxu0 0.0
        %1366 = vmatprep.subr.mxu0 0.0
        %1367 = vmatpush1.msra.mxu0 0.0
        %1368 = vmatprep.subr.mxu0 0.0
        %1369 = vmatpush1.msra.mxu0 0.0
        %1370 = vmatprep.subr.mxu0 0.0
        %1371 = vmatpush1.msra.mxu0 0.0
        %1372 = vmatprep.subr.mxu0 0.0
        %1373 = vmatpush1.msra.mxu0 0.0
        %1374 = vmatprep.subr.mxu0 0.0
        %1375 = vmatpush1.msra.mxu0 0.0
        %1376 = vmatprep.subr.mxu0 0.0
        %1377 = vmatpush1.msra.mxu0 0.0
        %1378 = vmatprep.subr.mxu0 0.0
        %1379 = vmatpush1.msra.mxu0 0.0
        %1380 = vmatprep.mubr.f32.mxu0 0.0
        %1381 = vmatmul.mubr.f32.gmra.mrb[0].mxu0 %v1314
        %v1382 = vpop.f32.mrb[0].mxu0
        %v1383 = vadd.f32 0.0, %v1382
        %v1384 = vpop.f32.mrb[0].mxu0
        %1385 = vdwg.mxu0
        %1386 = vrot.lane.b32.xlu0 %v1118, 112
        %v1387 = vpop.permute.xlu0 %1386
        %v1390 = vsel %vm1136, %v1309, 0
        %1392 = vmatprep.subr.mxu0 0.0
        %1393 = vmatpush1.msra.mxu0 %v1387
        %1394 = vmatprep.subr.mxu0 0.0
        %1395 = vmatpush1.msra.mxu0 0.0
        %1396 = vmatprep.subr.mxu0 0.0
        %1397 = vmatpush1.msra.mxu0 0.0
        %1398 = vmatprep.subr.mxu0 0.0
        %1399 = vmatpush1.msra.mxu0 0.0
        %1400 = vmatprep.subr.mxu0 0.0
        %1401 = vmatpush1.msra.mxu0 0.0
        %1402 = vmatprep.subr.mxu0 0.0
        %1403 = vmatpush1.msra.mxu0 0.0
        %1404 = vmatprep.subr.mxu0 0.0
        %1405 = vmatpush1.msra.mxu0 0.0
        %1406 = vmatprep.subr.mxu0 0.0
        %1407 = vmatpush1.msra.mxu0 0.0
        %1408 = vmatprep.subr.mxu0 0.0
        %1409 = vmatpush1.msra.mxu0 0.0
        %1410 = vmatprep.subr.mxu0 0.0
        %1411 = vmatpush1.msra.mxu0 0.0
        %1412 = vmatprep.subr.mxu0 0.0
        %1413 = vmatpush1.msra.mxu0 0.0
        %1414 = vmatprep.subr.mxu0 0.0
        %1415 = vmatpush1.msra.mxu0 0.0
        %1416 = vmatprep.subr.mxu0 0.0
        %1417 = vmatpush1.msra.mxu0 0.0
        %1418 = vmatprep.subr.mxu0 0.0
        %1419 = vmatpush1.msra.mxu0 0.0
        %1420 = vmatprep.subr.mxu0 0.0
        %1421 = vmatpush1.msra.mxu0 0.0
        %1422 = vmatprep.subr.mxu0 0.0
        %1423 = vmatpush1.msra.mxu0 0.0
        %1424 = vmatprep.subr.mxu0 0.0
        %1425 = vmatpush1.msra.mxu0 0.0
        %1426 = vmatprep.subr.mxu0 0.0
        %1427 = vmatpush1.msra.mxu0 0.0
        %1428 = vmatprep.subr.mxu0 0.0
        %1429 = vmatpush1.msra.mxu0 0.0
        %1430 = vmatprep.subr.mxu0 0.0
        %1431 = vmatpush1.msra.mxu0 0.0
        %1432 = vmatprep.subr.mxu0 0.0
        %1433 = vmatpush1.msra.mxu0 0.0
        %1434 = vmatprep.subr.mxu0 0.0
        %1435 = vmatpush1.msra.mxu0 0.0
        %1436 = vmatprep.subr.mxu0 0.0
        %1437 = vmatpush1.msra.mxu0 0.0
        %1438 = vmatprep.subr.mxu0 0.0
        %1439 = vmatpush1.msra.mxu0 0.0
        %1440 = vmatprep.subr.mxu0 0.0
        %1441 = vmatpush1.msra.mxu0 0.0
        %1442 = vmatprep.subr.mxu0 0.0
        %1443 = vmatpush1.msra.mxu0 0.0
        %1444 = vmatprep.subr.mxu0 0.0
        %1445 = vmatpush1.msra.mxu0 0.0
        %1446 = vmatprep.subr.mxu0 0.0
        %1447 = vmatpush1.msra.mxu0 0.0
        %1448 = vmatprep.subr.mxu0 0.0
        %1449 = vmatpush1.msra.mxu0 0.0
        %1450 = vmatprep.subr.mxu0 0.0
        %1451 = vmatpush1.msra.mxu0 0.0
        %1452 = vmatprep.subr.mxu0 0.0
        %1453 = vmatpush1.msra.mxu0 0.0
        %1454 = vmatprep.subr.mxu0 0.0
        %1455 = vmatpush1.msra.mxu0 0.0
        %1456 = vmatprep.mubr.f32.mxu0 0.0
        %1457 = vmatmul.mubr.f32.gmra.mrb[0].mxu0 %v1390
        %v1458 = vpop.f32.mrb[0].mxu0
        %v1459 = vadd.f32 0.0, %v1458
        %v1460 = vpop.f32.mrb[0].mxu0
        %1461 = vdwg.mxu0
        %1462 = vrot.lane.b32.xlu0 %v1113, 104
        %v1463 = vpop.permute.xlu0 %1462
        %1464 = vrot.lane.b32.xlu0 %v1113, 96
        %v1465 = vpop.permute.xlu0 %1464
        %v1466 = vsel %vm1136, %v1463, 0
        %v1468 = vsel %vm1136, %v1465, 0
        %1470 = vmatprep.subr.mxu0 0.0
        %1471 = vmatpush1.xpose.msra.mxu0 %v1468
        %1472 = vmatprep.subr.mxu0 0.0
        %1473 = vmatpush1.xpose.msra.mxu0 0.0
        %1474 = vmatprep.subr.mxu0 0.0
        %1475 = vmatpush1.xpose.msra.mxu0 0.0
        %1476 = vmatprep.subr.mxu0 0.0
        %1477 = vmatpush1.xpose.msra.mxu0 0.0
        %1478 = vmatprep.subr.mxu0 0.0
        %1479 = vmatpush1.xpose.msra.mxu0 0.0
        %1480 = vmatprep.subr.mxu0 0.0
        %1481 = vmatpush1.xpose.msra.mxu0 0.0
        %1482 = vmatprep.subr.mxu0 0.0
        %1483 = vmatpush1.xpose.msra.mxu0 0.0
        %1484 = vmatprep.subr.mxu0 0.0
        %1485 = vmatpush1.xpose.msra.mxu0 0.0
        %1486 = vmatprep.subr.mxu0 0.0
        %1487 = vmatpush1.xpose.msra.mxu0 0.0
        %1488 = vmatprep.subr.mxu0 0.0
        %1489 = vmatpush1.xpose.msra.mxu0 0.0
        %1490 = vmatprep.subr.mxu0 0.0
        %1491 = vmatpush1.xpose.msra.mxu0 0.0
        %1492 = vmatprep.subr.mxu0 0.0
        %1493 = vmatpush1.xpose.msra.mxu0 0.0
        %1494 = vmatprep.subr.mxu0 0.0
        %1495 = vmatpush1.xpose.msra.mxu0 0.0
        %1496 = vmatprep.subr.mxu0 0.0
        %1497 = vmatpush1.xpose.msra.mxu0 0.0
        %1498 = vmatprep.subr.mxu0 0.0
        %1499 = vmatpush1.xpose.msra.mxu0 0.0
        %1500 = vmatprep.subr.mxu0 0.0
        %1501 = vmatpush1.xpose.msra.mxu0 0.0
        %1502 = vmatprep.subr.mxu0 0.0
        %1503 = vmatpush1.xpose.msra.mxu0 0.0
        %1504 = vmatprep.subr.mxu0 0.0
        %1505 = vmatpush1.xpose.msra.mxu0 0.0
        %1506 = vmatprep.subr.mxu0 0.0
        %1507 = vmatpush1.xpose.msra.mxu0 0.0
        %1508 = vmatprep.subr.mxu0 0.0
        %1509 = vmatpush1.xpose.msra.mxu0 0.0
        %1510 = vmatprep.subr.mxu0 0.0
        %1511 = vmatpush1.xpose.msra.mxu0 0.0
        %1512 = vmatprep.subr.mxu0 0.0
        %1513 = vmatpush1.xpose.msra.mxu0 0.0
        %1514 = vmatprep.subr.mxu0 0.0
        %1515 = vmatpush1.xpose.msra.mxu0 0.0
        %1516 = vmatprep.subr.mxu0 0.0
        %1517 = vmatpush1.xpose.msra.mxu0 0.0
        %1518 = vmatprep.subr.mxu0 0.0
        %1519 = vmatpush1.xpose.msra.mxu0 0.0
        %1520 = vmatprep.subr.mxu0 0.0
        %1521 = vmatpush1.xpose.msra.mxu0 0.0
        %1522 = vmatprep.subr.mxu0 0.0
        %1523 = vmatpush1.xpose.msra.mxu0 0.0
        %1524 = vmatprep.subr.mxu0 0.0
        %1525 = vmatpush1.xpose.msra.mxu0 0.0
        %1526 = vmatprep.subr.mxu0 0.0
        %1527 = vmatpush1.xpose.msra.mxu0 0.0
        %1528 = vmatprep.subr.mxu0 0.0
        %1529 = vmatpush1.xpose.msra.mxu0 0.0
        %1530 = vmatprep.subr.mxu0 0.0
        %1531 = vmatpush1.xpose.msra.mxu0 0.0
        %1532 = vmatprep.subr.mxu0 0.0
        %1533 = vmatpush1.xpose.msra.mxu0 0.0
        %1534 = vmatprep.mubr.f32.mxu0 0.0
        %1535 = vmatmul.mubr.f32.gmra.mrb[0].mxu0 %v1466
        %v1536 = vpop.f32.mrb[0].mxu0
        %v1537 = vadd.f32 %v1126, %v1536
        %v1538 = vpop.f32.mrb[0].mxu0
        %1539 = vdwg.mxu0
        %1540 = vrot.lane.b32.xlu0 %v1118, 104
        %v1541 = vpop.permute.xlu0 %1540
        %1542 = vrot.lane.b32.xlu0 %v1118, 96
        %v1543 = vpop.permute.xlu0 %1542
        %v1544 = vsel %vm1136, %v1541, 0
        %v1546 = vsel %vm1136, %v1543, 0
        %1548 = vmatprep.subr.mxu0 0.0
        %1549 = vmatpush1.xpose.msra.mxu0 %v1546
        %1550 = vmatprep.subr.mxu0 0.0
        %1551 = vmatpush1.xpose.msra.mxu0 0.0
        %1552 = vmatprep.subr.mxu0 0.0
        %1553 = vmatpush1.xpose.msra.mxu0 0.0
        %1554 = vmatprep.subr.mxu0 0.0
        %1555 = vmatpush1.xpose.msra.mxu0 0.0
        %1556 = vmatprep.subr.mxu0 0.0
        %1557 = vmatpush1.xpose.msra.mxu0 0.0
        %1558 = vmatprep.subr.mxu0 0.0
        %1559 = vmatpush1.xpose.msra.mxu0 0.0
        %1560 = vmatprep.subr.mxu0 0.0
        %1561 = vmatpush1.xpose.msra.mxu0 0.0
        %1562 = vmatprep.subr.mxu0 0.0
        %1563 = vmatpush1.xpose.msra.mxu0 0.0
        %1564 = vmatprep.subr.mxu0 0.0
        %1565 = vmatpush1.xpose.msra.mxu0 0.0
        %1566 = vmatprep.subr.mxu0 0.0
        %1567 = vmatpush1.xpose.msra.mxu0 0.0
        %1568 = vmatprep.subr.mxu0 0.0
        %1569 = vmatpush1.xpose.msra.mxu0 0.0
        %1570 = vmatprep.subr.mxu0 0.0
        %1571 = vmatpush1.xpose.msra.mxu0 0.0
        %1572 = vmatprep.subr.mxu0 0.0
        %1573 = vmatpush1.xpose.msra.mxu0 0.0
        %1574 = vmatprep.subr.mxu0 0.0
        %1575 = vmatpush1.xpose.msra.mxu0 0.0
        %1576 = vmatprep.subr.mxu0 0.0
        %1577 = vmatpush1.xpose.msra.mxu0 0.0
        %1578 = vmatprep.subr.mxu0 0.0
        %1579 = vmatpush1.xpose.msra.mxu0 0.0
        %1580 = vmatprep.subr.mxu0 0.0
        %1581 = vmatpush1.xpose.msra.mxu0 0.0
        %1582 = vmatprep.subr.mxu0 0.0
        %1583 = vmatpush1.xpose.msra.mxu0 0.0
        %1584 = vmatprep.subr.mxu0 0.0
        %1585 = vmatpush1.xpose.msra.mxu0 0.0
        %1586 = vmatprep.subr.mxu0 0.0
        %1587 = vmatpush1.xpose.msra.mxu0 0.0
        %1588 = vmatprep.subr.mxu0 0.0
        %1589 = vmatpush1.xpose.msra.mxu0 0.0
        %1590 = vmatprep.subr.mxu0 0.0
        %1591 = vmatpush1.xpose.msra.mxu0 0.0
        %1592 = vmatprep.subr.mxu0 0.0
        %1593 = vmatpush1.xpose.msra.mxu0 0.0
        %1594 = vmatprep.subr.mxu0 0.0
        %1595 = vmatpush1.xpose.msra.mxu0 0.0
        %1596 = vmatprep.subr.mxu0 0.0
        %1597 = vmatpush1.xpose.msra.mxu0 0.0
        %1598 = vmatprep.subr.mxu0 0.0
        %1599 = vmatpush1.xpose.msra.mxu0 0.0
        %1600 = vmatprep.subr.mxu0 0.0
        %1601 = vmatpush1.xpose.msra.mxu0 0.0
        %1602 = vmatprep.subr.mxu0 0.0
        %1603 = vmatpush1.xpose.msra.mxu0 0.0
        %1604 = vmatprep.subr.mxu0 0.0
        %1605 = vmatpush1.xpose.msra.mxu0 0.0
        %1606 = vmatprep.subr.mxu0 0.0
        %1607 = vmatpush1.xpose.msra.mxu0 0.0
        %1608 = vmatprep.subr.mxu0 0.0
        %1609 = vmatpush1.xpose.msra.mxu0 0.0
        %1610 = vmatprep.subr.mxu0 0.0
        %1611 = vmatpush1.xpose.msra.mxu0 0.0
        %1612 = vmatprep.mubr.f32.mxu0 0.0
        %1613 = vmatmul.mubr.f32.gmra.mrb[0].mxu0 %v1544
        %v1614 = vpop.f32.mrb[0].mxu0
        %v1615 = vadd.f32 %v1130, %v1614
        %v1616 = vpop.f32.mrb[0].mxu0
        %1617 = vdwg.mxu0
        %v1618 = vsel %vm1136, %v1537, -inf
        %1619 = vmax.xlane.f32.xlu0 %v1618
        %v1620 = vpop.xlane.xlu0 %1619
        %v1621 = vsel %vm1136, %v1615, -inf
        %1622 = vmax.xlane.f32.xlu0 %v1621
        %v1623 = vpop.xlane.xlu0 %1622
        %v1624 = vsub.f32 %v1537, %v1620
        %v1625 = vsub.f32 %v1615, %v1623
        %v1626 = vmul.f32 %v1624, 1.442695
        %v1627 = vpow.pop %v1626
        %v1628 = vmul.f32 %v1625, 1.442695
        %v1629 = vpow.pop %v1628
        %v1630 = vsel %vm1136, %v1627, 0.0
        %1631 = vadd.xlane.f32.xlu0 %v1630
        %v1632 = vpop.xlane.xlu0 %1631
        %v1633 = vsel %vm1136, %v1629, 0.0
        %1634 = vadd.xlane.f32.xlu0 %v1633
        %v1635 = vpop.xlane.xlu0 %1634
        %v1636 = vrcp.pop %v1632
        %v1637 = vrcp.pop %v1635
        %v1638 = vmul.f32 %v1627, %v1636
        %v1639 = vmul.f32 %v1629, %v1637
        %1640 = vrot.lane.b32.xlu0 %v1113, 88
        %v1641 = vpop.permute.xlu0 %1640
        %v1644 = vsel %vm1136, %v1638, 0
        %1646 = vmatprep.subr.mxu0 0.0
        %1647 = vmatpush1.msra.mxu0 %v1641
        %1648 = vmatprep.subr.mxu0 0.0
        %1649 = vmatpush1.msra.mxu0 0.0
        %1650 = vmatprep.subr.mxu0 0.0
        %1651 = vmatpush1.msra.mxu0 0.0
        %1652 = vmatprep.subr.mxu0 0.0
        %1653 = vmatpush1.msra.mxu0 0.0
        %1654 = vmatprep.subr.mxu0 0.0
        %1655 = vmatpush1.msra.mxu0 0.0
        %1656 = vmatprep.subr.mxu0 0.0
        %1657 = vmatpush1.msra.mxu0 0.0
        %1658 = vmatprep.subr.mxu0 0.0
        %1659 = vmatpush1.msra.mxu0 0.0
        %1660 = vmatprep.subr.mxu0 0.0
        %1661 = vmatpush1.msra.mxu0 0.0
        %1662 = vmatprep.subr.mxu0 0.0
        %1663 = vmatpush1.msra.mxu0 0.0
        %1664 = vmatprep.subr.mxu0 0.0
        %1665 = vmatpush1.msra.mxu0 0.0
        %1666 = vmatprep.subr.mxu0 0.0
        %1667 = vmatpush1.msra.mxu0 0.0
        %1668 = vmatprep.subr.mxu0 0.0
        %1669 = vmatpush1.msra.mxu0 0.0
        %1670 = vmatprep.subr.mxu0 0.0
        %1671 = vmatpush1.msra.mxu0 0.0
        %1672 = vmatprep.subr.mxu0 0.0
        %1673 = vmatpush1.msra.mxu0 0.0
        %1674 = vmatprep.subr.mxu0 0.0
        %1675 = vmatpush1.msra.mxu0 0.0
        %1676 = vmatprep.subr.mxu0 0.0
        %1677 = vmatpush1.msra.mxu0 0.0
        %1678 = vmatprep.subr.mxu0 0.0
        %1679 = vmatpush1.msra.mxu0 0.0
        %1680 = vmatprep.subr.mxu0 0.0
        %1681 = vmatpush1.msra.mxu0 0.0
        %1682 = vmatprep.subr.mxu0 0.0
        %1683 = vmatpush1.msra.mxu0 0.0
        %1684 = vmatprep.subr.mxu0 0.0
        %1685 = vmatpush1.msra.mxu0 0.0
        %1686 = vmatprep.subr.mxu0 0.0
        %1687 = vmatpush1.msra.mxu0 0.0
        %1688 = vmatprep.subr.mxu0 0.0
        %1689 = vmatpush1.msra.mxu0 0.0
        %1690 = vmatprep.subr.mxu0 0.0
        %1691 = vmatpush1.msra.mxu0 0.0
        %1692 = vmatprep.subr.mxu0 0.0
        %1693 = vmatpush1.msra.mxu0 0.0
        %1694 = vmatprep.subr.mxu0 0.0
        %1695 = vmatpush1.msra.mxu0 0.0
        %1696 = vmatprep.subr.mxu0 0.0
        %1697 = vmatpush1.msra.mxu0 0.0
        %1698 = vmatprep.subr.mxu0 0.0
        %1699 = vmatpush1.msra.mxu0 0.0
        %1700 = vmatprep.subr.mxu0 0.0
        %1701 = vmatpush1.msra.mxu0 0.0
        %1702 = vmatprep.subr.mxu0 0.0
        %1703 = vmatpush1.msra.mxu0 0.0
        %1704 = vmatprep.subr.mxu0 0.0
        %1705 = vmatpush1.msra.mxu0 0.0
        %1706 = vmatprep.subr.mxu0 0.0
        %1707 = vmatpush1.msra.mxu0 0.0
        %1708 = vmatprep.subr.mxu0 0.0
        %1709 = vmatpush1.msra.mxu0 0.0
        %1710 = vmatprep.mubr.f32.mxu0 0.0
        %1711 = vmatmul.mubr.f32.gmra.mrb[0].mxu0 %v1644
        %v1712 = vpop.f32.mrb[0].mxu0
        %v1713 = vadd.f32 0.0, %v1712
        %v1714 = vpop.f32.mrb[0].mxu0
        %1715 = vdwg.mxu0
        %1716 = vrot.lane.b32.xlu0 %v1118, 88
        %v1717 = vpop.permute.xlu0 %1716
        %v1720 = vsel %vm1136, %v1639, 0
        %1722 = vmatprep.subr.mxu0 0.0
        %1723 = vmatpush1.msra.mxu0 %v1717
        %1724 = vmatprep.subr.mxu0 0.0
        %1725 = vmatpush1.msra.mxu0 0.0
        %1726 = vmatprep.subr.mxu0 0.0
        %1727 = vmatpush1.msra.mxu0 0.0
        %1728 = vmatprep.subr.mxu0 0.0
        %1729 = vmatpush1.msra.mxu0 0.0
        %1730 = vmatprep.subr.mxu0 0.0
        %1731 = vmatpush1.msra.mxu0 0.0
        %1732 = vmatprep.subr.mxu0 0.0
        %1733 = vmatpush1.msra.mxu0 0.0
        %1734 = vmatprep.subr.mxu0 0.0
        %1735 = vmatpush1.msra.mxu0 0.0
        %1736 = vmatprep.subr.mxu0 0.0
        %1737 = vmatpush1.msra.mxu0 0.0
        %1738 = vmatprep.subr.mxu0 0.0
        %1739 = vmatpush1.msra.mxu0 0.0
        %1740 = vmatprep.subr.mxu0 0.0
        %1741 = vmatpush1.msra.mxu0 0.0
        %1742 = vmatprep.subr.mxu0 0.0
        %1743 = vmatpush1.msra.mxu0 0.0
        %1744 = vmatprep.subr.mxu0 0.0
        %1745 = vmatpush1.msra.mxu0 0.0
        %1746 = vmatprep.subr.mxu0 0.0
        %1747 = vmatpush1.msra.mxu0 0.0
        %1748 = vmatprep.subr.mxu0 0.0
        %1749 = vmatpush1.msra.mxu0 0.0
        %1750 = vmatprep.subr.mxu0 0.0
        %1751 = vmatpush1.msra.mxu0 0.0
        %1752 = vmatprep.subr.mxu0 0.0
        %1753 = vmatpush1.msra.mxu0 0.0
        %1754 = vmatprep.subr.mxu0 0.0
        %1755 = vmatpush1.msra.mxu0 0.0
        %1756 = vmatprep.subr.mxu0 0.0
        %1757 = vmatpush1.msra.mxu0 0.0
        %1758 = vmatprep.subr.mxu0 0.0
        %1759 = vmatpush1.msra.mxu0 0.0
        %1760 = vmatprep.subr.mxu0 0.0
        %1761 = vmatpush1.msra.mxu0 0.0
        %1762 = vmatprep.subr.mxu0 0.0
        %1763 = vmatpush1.msra.mxu0 0.0
        %1764 = vmatprep.subr.mxu0 0.0
        %1765 = vmatpush1.msra.mxu0 0.0
        %1766 = vmatprep.subr.mxu0 0.0
        %1767 = vmatpush1.msra.mxu0 0.0
        %1768 = vmatprep.subr.mxu0 0.0
        %1769 = vmatpush1.msra.mxu0 0.0
        %1770 = vmatprep.subr.mxu0 0.0
        %1771 = vmatpush1.msra.mxu0 0.0
        %1772 = vmatprep.subr.mxu0 0.0
        %1773 = vmatpush1.msra.mxu0 0.0
        %1774 = vmatprep.subr.mxu0 0.0
        %1775 = vmatpush1.msra.mxu0 0.0
        %1776 = vmatprep.subr.mxu0 0.0
        %1777 = vmatpush1.msra.mxu0 0.0
        %1778 = vmatprep.subr.mxu0 0.0
        %1779 = vmatpush1.msra.mxu0 0.0
        %1780 = vmatprep.subr.mxu0 0.0
        %1781 = vmatpush1.msra.mxu0 0.0
        %1782 = vmatprep.subr.mxu0 0.0
        %1783 = vmatpush1.msra.mxu0 0.0
        %1784 = vmatprep.subr.mxu0 0.0
        %1785 = vmatpush1.msra.mxu0 0.0
        %1786 = vmatprep.mubr.f32.mxu0 0.0
        %1787 = vmatmul.mubr.f32.gmra.mrb[0].mxu0 %v1720
        %v1788 = vpop.f32.mrb[0].mxu0
        %v1789 = vadd.f32 0.0, %v1788
        %v1790 = vpop.f32.mrb[0].mxu0
        %1791 = vdwg.mxu0
        %1792 = vrot.lane.b32.xlu0 %v1113, 80
        %v1793 = vpop.permute.xlu0 %1792
        %1794 = vrot.lane.b32.xlu0 %v1113, 72
        %v1795 = vpop.permute.xlu0 %1794
        %v1796 = vsel %vm1136, %v1793, 0
        %v1798 = vsel %vm1136, %v1795, 0
        %1800 = vmatprep.subr.mxu0 0.0
        %1801 = vmatpush1.xpose.msra.mxu0 %v1798
        %1802 = vmatprep.subr.mxu0 0.0
        %1803 = vmatpush1.xpose.msra.mxu0 0.0
        %1804 = vmatprep.subr.mxu0 0.0
        %1805 = vmatpush1.xpose.msra.mxu0 0.0
        %1806 = vmatprep.subr.mxu0 0.0
        %1807 = vmatpush1.xpose.msra.mxu0 0.0
        %1808 = vmatprep.subr.mxu0 0.0
        %1809 = vmatpush1.xpose.msra.mxu0 0.0
        %1810 = vmatprep.subr.mxu0 0.0
        %1811 = vmatpush1.xpose.msra.mxu0 0.0
        %1812 = vmatprep.subr.mxu0 0.0
        %1813 = vmatpush1.xpose.msra.mxu0 0.0
        %1814 = vmatprep.subr.mxu0 0.0
        %1815 = vmatpush1.xpose.msra.mxu0 0.0
        %1816 = vmatprep.subr.mxu0 0.0
        %1817 = vmatpush1.xpose.msra.mxu0 0.0
        %1818 = vmatprep.subr.mxu0 0.0
        %1819 = vmatpush1.xpose.msra.mxu0 0.0
        %1820 = vmatprep.subr.mxu0 0.0
        %1821 = vmatpush1.xpose.msra.mxu0 0.0
        %1822 = vmatprep.subr.mxu0 0.0
        %1823 = vmatpush1.xpose.msra.mxu0 0.0
        %1824 = vmatprep.subr.mxu0 0.0
        %1825 = vmatpush1.xpose.msra.mxu0 0.0
        %1826 = vmatprep.subr.mxu0 0.0
        %1827 = vmatpush1.xpose.msra.mxu0 0.0
        %1828 = vmatprep.subr.mxu0 0.0
        %1829 = vmatpush1.xpose.msra.mxu0 0.0
        %1830 = vmatprep.subr.mxu0 0.0
        %1831 = vmatpush1.xpose.msra.mxu0 0.0
        %1832 = vmatprep.subr.mxu0 0.0
        %1833 = vmatpush1.xpose.msra.mxu0 0.0
        %1834 = vmatprep.subr.mxu0 0.0
        %1835 = vmatpush1.xpose.msra.mxu0 0.0
        %1836 = vmatprep.subr.mxu0 0.0
        %1837 = vmatpush1.xpose.msra.mxu0 0.0
        %1838 = vmatprep.subr.mxu0 0.0
        %1839 = vmatpush1.xpose.msra.mxu0 0.0
        %1840 = vmatprep.subr.mxu0 0.0
        %1841 = vmatpush1.xpose.msra.mxu0 0.0
        %1842 = vmatprep.subr.mxu0 0.0
        %1843 = vmatpush1.xpose.msra.mxu0 0.0
        %1844 = vmatprep.subr.mxu0 0.0
        %1845 = vmatpush1.xpose.msra.mxu0 0.0
        %1846 = vmatprep.subr.mxu0 0.0
        %1847 = vmatpush1.xpose.msra.mxu0 0.0
        %1848 = vmatprep.subr.mxu0 0.0
        %1849 = vmatpush1.xpose.msra.mxu0 0.0
        %1850 = vmatprep.subr.mxu0 0.0
        %1851 = vmatpush1.xpose.msra.mxu0 0.0
        %1852 = vmatprep.subr.mxu0 0.0
        %1853 = vmatpush1.xpose.msra.mxu0 0.0
        %1854 = vmatprep.subr.mxu0 0.0
        %1855 = vmatpush1.xpose.msra.mxu0 0.0
        %1856 = vmatprep.subr.mxu0 0.0
        %1857 = vmatpush1.xpose.msra.mxu0 0.0
        %1858 = vmatprep.subr.mxu0 0.0
        %1859 = vmatpush1.xpose.msra.mxu0 0.0
        %1860 = vmatprep.subr.mxu0 0.0
        %1861 = vmatpush1.xpose.msra.mxu0 0.0
        %1862 = vmatprep.subr.mxu0 0.0
        %1863 = vmatpush1.xpose.msra.mxu0 0.0
        %1864 = vmatprep.mubr.f32.mxu0 0.0
        %1865 = vmatmul.mubr.f32.gmra.mrb[0].mxu0 %v1796
        %v1866 = vpop.f32.mrb[0].mxu0
        %v1867 = vadd.f32 %v1126, %v1866
        %v1868 = vpop.f32.mrb[0].mxu0
        %1869 = vdwg.mxu0
        %1870 = vrot.lane.b32.xlu0 %v1118, 80
        %v1871 = vpop.permute.xlu0 %1870
        %1872 = vrot.lane.b32.xlu0 %v1118, 72
        %v1873 = vpop.permute.xlu0 %1872
        %v1874 = vsel %vm1136, %v1871, 0
        %v1876 = vsel %vm1136, %v1873, 0
        %1878 = vmatprep.subr.mxu0 0.0
        %1879 = vmatpush1.xpose.msra.mxu0 %v1876
        %1880 = vmatprep.subr.mxu0 0.0
        %1881 = vmatpush1.xpose.msra.mxu0 0.0
        %1882 = vmatprep.subr.mxu0 0.0
        %1883 = vmatpush1.xpose.msra.mxu0 0.0
        %1884 = vmatprep.subr.mxu0 0.0
        %1885 = vmatpush1.xpose.msra.mxu0 0.0
        %1886 = vmatprep.subr.mxu0 0.0
        %1887 = vmatpush1.xpose.msra.mxu0 0.0
        %1888 = vmatprep.subr.mxu0 0.0
        %1889 = vmatpush1.xpose.msra.mxu0 0.0
        %1890 = vmatprep.subr.mxu0 0.0
        %1891 = vmatpush1.xpose.msra.mxu0 0.0
        %1892 = vmatprep.subr.mxu0 0.0
        %1893 = vmatpush1.xpose.msra.mxu0 0.0
        %1894 = vmatprep.subr.mxu0 0.0
        %1895 = vmatpush1.xpose.msra.mxu0 0.0
        %1896 = vmatprep.subr.mxu0 0.0
        %1897 = vmatpush1.xpose.msra.mxu0 0.0
        %1898 = vmatprep.subr.mxu0 0.0
        %1899 = vmatpush1.xpose.msra.mxu0 0.0
        %1900 = vmatprep.subr.mxu0 0.0
        %1901 = vmatpush1.xpose.msra.mxu0 0.0
        %1902 = vmatprep.subr.mxu0 0.0
        %1903 = vmatpush1.xpose.msra.mxu0 0.0
        %1904 = vmatprep.subr.mxu0 0.0
        %1905 = vmatpush1.xpose.msra.mxu0 0.0
        %1906 = vmatprep.subr.mxu0 0.0
        %1907 = vmatpush1.xpose.msra.mxu0 0.0
        %1908 = vmatprep.subr.mxu0 0.0
        %1909 = vmatpush1.xpose.msra.mxu0 0.0
        %1910 = vmatprep.subr.mxu0 0.0
        %1911 = vmatpush1.xpose.msra.mxu0 0.0
        %1912 = vmatprep.subr.mxu0 0.0
        %1913 = vmatpush1.xpose.msra.mxu0 0.0
        %1914 = vmatprep.subr.mxu0 0.0
        %1915 = vmatpush1.xpose.msra.mxu0 0.0
        %1916 = vmatprep.subr.mxu0 0.0
        %1917 = vmatpush1.xpose.msra.mxu0 0.0
        %1918 = vmatprep.subr.mxu0 0.0
        %1919 = vmatpush1.xpose.msra.mxu0 0.0
        %1920 = vmatprep.subr.mxu0 0.0
        %1921 = vmatpush1.xpose.msra.mxu0 0.0
        %1922 = vmatprep.subr.mxu0 0.0
        %1923 = vmatpush1.xpose.msra.mxu0 0.0
        %1924 = vmatprep.subr.mxu0 0.0
        %1925 = vmatpush1.xpose.msra.mxu0 0.0
        %1926 = vmatprep.subr.mxu0 0.0
        %1927 = vmatpush1.xpose.msra.mxu0 0.0
        %1928 = vmatprep.subr.mxu0 0.0
        %1929 = vmatpush1.xpose.msra.mxu0 0.0
        %1930 = vmatprep.subr.mxu0 0.0
        %1931 = vmatpush1.xpose.msra.mxu0 0.0
        %1932 = vmatprep.subr.mxu0 0.0
        %1933 = vmatpush1.xpose.msra.mxu0 0.0
        %1934 = vmatprep.subr.mxu0 0.0
        %1935 = vmatpush1.xpose.msra.mxu0 0.0
        %1936 = vmatprep.subr.mxu0 0.0
        %1937 = vmatpush1.xpose.msra.mxu0 0.0
        %1938 = vmatprep.subr.mxu0 0.0
        %1939 = vmatpush1.xpose.msra.mxu0 0.0
        %1940 = vmatprep.subr.mxu0 0.0
        %1941 = vmatpush1.xpose.msra.mxu0 0.0
        %1942 = vmatprep.mubr.f32.mxu0 0.0
        %1943 = vmatmul.mubr.f32.gmra.mrb[0].mxu0 %v1874
        %v1944 = vpop.f32.mrb[0].mxu0
        %v1945 = vadd.f32 %v1130, %v1944
        %v1946 = vpop.f32.mrb[0].mxu0
        %1947 = vdwg.mxu0
        %v1948 = vsel %vm1136, %v1867, -inf
        %1949 = vmax.xlane.f32.xlu0 %v1948
        %v1950 = vpop.xlane.xlu0 %1949
        %v1951 = vsel %vm1136, %v1945, -inf
        %1952 = vmax.xlane.f32.xlu0 %v1951
        %v1953 = vpop.xlane.xlu0 %1952
        %v1954 = vsub.f32 %v1867, %v1950
        %v1955 = vsub.f32 %v1945, %v1953
        %v1956 = vmul.f32 %v1954, 1.442695
        %v1957 = vpow.pop %v1956
        %v1958 = vmul.f32 %v1955, 1.442695
        %v1959 = vpow.pop %v1958
        %v1960 = vsel %vm1136, %v1957, 0.0
        %1961 = vadd.xlane.f32.xlu0 %v1960
        %v1962 = vpop.xlane.xlu0 %1961
        %v1963 = vsel %vm1136, %v1959, 0.0
        %1964 = vadd.xlane.f32.xlu0 %v1963
        %v1965 = vpop.xlane.xlu0 %1964
        %v1966 = vrcp.pop %v1962
        %v1967 = vrcp.pop %v1965
        %v1968 = vmul.f32 %v1957, %v1966
        %v1969 = vmul.f32 %v1959, %v1967
        %1970 = vrot.lane.b32.xlu0 %v1113, 64
        %v1971 = vpop.permute.xlu0 %1970
        %v1974 = vsel %vm1136, %v1968, 0
        %1976 = vmatprep.subr.mxu0 0.0
        %1977 = vmatpush1.msra.mxu0 %v1971
        %1978 = vmatprep.subr.mxu0 0.0
        %1979 = vmatpush1.msra.mxu0 0.0
        %1980 = vmatprep.subr.mxu0 0.0
        %1981 = vmatpush1.msra.mxu0 0.0
        %1982 = vmatprep.subr.mxu0 0.0
        %1983 = vmatpush1.msra.mxu0 0.0
        %1984 = vmatprep.subr.mxu0 0.0
        %1985 = vmatpush1.msra.mxu0 0.0
        %1986 = vmatprep.subr.mxu0 0.0
        %1987 = vmatpush1.msra.mxu0 0.0
        %1988 = vmatprep.subr.mxu0 0.0
        %1989 = vmatpush1.msra.mxu0 0.0
        %1990 = vmatprep.subr.mxu0 0.0
        %1991 = vmatpush1.msra.mxu0 0.0
        %1992 = vmatprep.subr.mxu0 0.0
        %1993 = vmatpush1.msra.mxu0 0.0
        %1994 = vmatprep.subr.mxu0 0.0
        %1995 = vmatpush1.msra.mxu0 0.0
        %1996 = vmatprep.subr.mxu0 0.0
        %1997 = vmatpush1.msra.mxu0 0.0
        %1998 = vmatprep.subr.mxu0 0.0
        %1999 = vmatpush1.msra.mxu0 0.0
        %2000 = vmatprep.subr.mxu0 0.0
        %2001 = vmatpush1.msra.mxu0 0.0
        %2002 = vmatprep.subr.mxu0 0.0
        %2003 = vmatpush1.msra.mxu0 0.0
        %2004 = vmatprep.subr.mxu0 0.0
        %2005 = vmatpush1.msra.mxu0 0.0
        %2006 = vmatprep.subr.mxu0 0.0
        %2007 = vmatpush1.msra.mxu0 0.0
        %2008 = vmatprep.subr.mxu0 0.0
        %2009 = vmatpush1.msra.mxu0 0.0
        %2010 = vmatprep.subr.mxu0 0.0
        %2011 = vmatpush1.msra.mxu0 0.0
        %2012 = vmatprep.subr.mxu0 0.0
        %2013 = vmatpush1.msra.mxu0 0.0
        %2014 = vmatprep.subr.mxu0 0.0
        %2015 = vmatpush1.msra.mxu0 0.0
        %2016 = vmatprep.subr.mxu0 0.0
        %2017 = vmatpush1.msra.mxu0 0.0
        %2018 = vmatprep.subr.mxu0 0.0
        %2019 = vmatpush1.msra.mxu0 0.0
        %2020 = vmatprep.subr.mxu0 0.0
        %2021 = vmatpush1.msra.mxu0 0.0
        %2022 = vmatprep.subr.mxu0 0.0
        %2023 = vmatpush1.msra.mxu0 0.0
        %2024 = vmatprep.subr.mxu0 0.0
        %2025 = vmatpush1.msra.mxu0 0.0
        %2026 = vmatprep.subr.mxu0 0.0
        %2027 = vmatpush1.msra.mxu0 0.0
        %2028 = vmatprep.subr.mxu0 0.0
        %2029 = vmatpush1.msra.mxu0 0.0
        %2030 = vmatprep.subr.mxu0 0.0
        %2031 = vmatpush1.msra.mxu0 0.0
        %2032 = vmatprep.subr.mxu0 0.0
        %2033 = vmatpush1.msra.mxu0 0.0
        %2034 = vmatprep.subr.mxu0 0.0
        %2035 = vmatpush1.msra.mxu0 0.0
        %2036 = vmatprep.subr.mxu0 0.0
        %2037 = vmatpush1.msra.mxu0 0.0
        %2038 = vmatprep.subr.mxu0 0.0
        %2039 = vmatpush1.msra.mxu0 0.0
        %2040 = vmatprep.mubr.f32.mxu0 0.0
        %2041 = vmatmul.mubr.f32.gmra.mrb[0].mxu0 %v1974
        %v2042 = vpop.f32.mrb[0].mxu0
        %v2043 = vadd.f32 0.0, %v2042
        %v2044 = vpop.f32.mrb[0].mxu0
        %2045 = vdwg.mxu0
        %2046 = vrot.lane.b32.xlu0 %v1118, 64
        %v2047 = vpop.permute.xlu0 %2046
        %v2050 = vsel %vm1136, %v1969, 0
        %2052 = vmatprep.subr.mxu0 0.0
        %2053 = vmatpush1.msra.mxu0 %v2047
        %2054 = vmatprep.subr.mxu0 0.0
        %2055 = vmatpush1.msra.mxu0 0.0
        %2056 = vmatprep.subr.mxu0 0.0
        %2057 = vmatpush1.msra.mxu0 0.0
        %2058 = vmatprep.subr.mxu0 0.0
        %2059 = vmatpush1.msra.mxu0 0.0
        %2060 = vmatprep.subr.mxu0 0.0
        %2061 = vmatpush1.msra.mxu0 0.0
        %2062 = vmatprep.subr.mxu0 0.0
        %2063 = vmatpush1.msra.mxu0 0.0
        %2064 = vmatprep.subr.mxu0 0.0
        %2065 = vmatpush1.msra.mxu0 0.0
        %2066 = vmatprep.subr.mxu0 0.0
        %2067 = vmatpush1.msra.mxu0 0.0
        %2068 = vmatprep.subr.mxu0 0.0
        %2069 = vmatpush1.msra.mxu0 0.0
        %2070 = vmatprep.subr.mxu0 0.0
        %2071 = vmatpush1.msra.mxu0 0.0
        %2072 = vmatprep.subr.mxu0 0.0
        %2073 = vmatpush1.msra.mxu0 0.0
        %2074 = vmatprep.subr.mxu0 0.0
        %2075 = vmatpush1.msra.mxu0 0.0
        %2076 = vmatprep.subr.mxu0 0.0
        %2077 = vmatpush1.msra.mxu0 0.0
        %2078 = vmatprep.subr.mxu0 0.0
        %2079 = vmatpush1.msra.mxu0 0.0
        %2080 = vmatprep.subr.mxu0 0.0
        %2081 = vmatpush1.msra.mxu0 0.0
        %2082 = vmatprep.subr.mxu0 0.0
        %2083 = vmatpush1.msra.mxu0 0.0
        %2084 = vmatprep.subr.mxu0 0.0
        %2085 = vmatpush1.msra.mxu0 0.0
        %2086 = vmatprep.subr.mxu0 0.0
        %2087 = vmatpush1.msra.mxu0 0.0
        %2088 = vmatprep.subr.mxu0 0.0
        %2089 = vmatpush1.msra.mxu0 0.0
        %2090 = vmatprep.subr.mxu0 0.0
        %2091 = vmatpush1.msra.mxu0 0.0
        %2092 = vmatprep.subr.mxu0 0.0
        %2093 = vmatpush1.msra.mxu0 0.0
        %2094 = vmatprep.subr.mxu0 0.0
        %2095 = vmatpush1.msra.mxu0 0.0
        %2096 = vmatprep.subr.mxu0 0.0
        %2097 = vmatpush1.msra.mxu0 0.0
        %2098 = vmatprep.subr.mxu0 0.0
        %2099 = vmatpush1.msra.mxu0 0.0
        %2100 = vmatprep.subr.mxu0 0.0
        %2101 = vmatpush1.msra.mxu0 0.0
        %2102 = vmatprep.subr.mxu0 0.0
        %2103 = vmatpush1.msra.mxu0 0.0
        %2104 = vmatprep.subr.mxu0 0.0
        %2105 = vmatpush1.msra.mxu0 0.0
        %2106 = vmatprep.subr.mxu0 0.0
        %2107 = vmatpush1.msra.mxu0 0.0
        %2108 = vmatprep.subr.mxu0 0.0
        %2109 = vmatpush1.msra.mxu0 0.0
        %2110 = vmatprep.subr.mxu0 0.0
        %2111 = vmatpush1.msra.mxu0 0.0
        %2112 = vmatprep.subr.mxu0 0.0
        %2113 = vmatpush1.msra.mxu0 0.0
        %2114 = vmatprep.subr.mxu0 0.0
        %2115 = vmatpush1.msra.mxu0 0.0
        %2116 = vmatprep.mubr.f32.mxu0 0.0
        %2117 = vmatmul.mubr.f32.gmra.mrb[0].mxu0 %v2050
        %v2118 = vpop.f32.mrb[0].mxu0
        %v2119 = vadd.f32 0.0, %v2118
        %v2120 = vpop.f32.mrb[0].mxu0
        %2121 = vdwg.mxu0
        %2122 = vrot.lane.b32.xlu0 %v1113, 56
        %v2123 = vpop.permute.xlu0 %2122
        %2124 = vrot.lane.b32.xlu0 %v1113, 48
        %v2125 = vpop.permute.xlu0 %2124
        %v2126 = vsel %vm1136, %v2123, 0
        %v2128 = vsel %vm1136, %v2125, 0
        %2130 = vmatprep.subr.mxu0 0.0
        %2131 = vmatpush1.xpose.msra.mxu0 %v2128
        %2132 = vmatprep.subr.mxu0 0.0
        %2133 = vmatpush1.xpose.msra.mxu0 0.0
        %2134 = vmatprep.subr.mxu0 0.0
        %2135 = vmatpush1.xpose.msra.mxu0 0.0
        %2136 = vmatprep.subr.mxu0 0.0
        %2137 = vmatpush1.xpose.msra.mxu0 0.0
        %2138 = vmatprep.subr.mxu0 0.0
        %2139 = vmatpush1.xpose.msra.mxu0 0.0
        %2140 = vmatprep.subr.mxu0 0.0
        %2141 = vmatpush1.xpose.msra.mxu0 0.0
        %2142 = vmatprep.subr.mxu0 0.0
        %2143 = vmatpush1.xpose.msra.mxu0 0.0
        %2144 = vmatprep.subr.mxu0 0.0
        %2145 = vmatpush1.xpose.msra.mxu0 0.0
        %2146 = vmatprep.subr.mxu0 0.0
        %2147 = vmatpush1.xpose.msra.mxu0 0.0
        %2148 = vmatprep.subr.mxu0 0.0
        %2149 = vmatpush1.xpose.msra.mxu0 0.0
        %2150 = vmatprep.subr.mxu0 0.0
        %2151 = vmatpush1.xpose.msra.mxu0 0.0
        %2152 = vmatprep.subr.mxu0 0.0
        %2153 = vmatpush1.xpose.msra.mxu0 0.0
        %2154 = vmatprep.subr.mxu0 0.0
        %2155 = vmatpush1.xpose.msra.mxu0 0.0
        %2156 = vmatprep.subr.mxu0 0.0
        %2157 = vmatpush1.xpose.msra.mxu0 0.0
        %2158 = vmatprep.subr.mxu0 0.0
        %2159 = vmatpush1.xpose.msra.mxu0 0.0
        %2160 = vmatprep.subr.mxu0 0.0
        %2161 = vmatpush1.xpose.msra.mxu0 0.0
        %2162 = vmatprep.subr.mxu0 0.0
        %2163 = vmatpush1.xpose.msra.mxu0 0.0
        %2164 = vmatprep.subr.mxu0 0.0
        %2165 = vmatpush1.xpose.msra.mxu0 0.0
        %2166 = vmatprep.subr.mxu0 0.0
        %2167 = vmatpush1.xpose.msra.mxu0 0.0
        %2168 = vmatprep.subr.mxu0 0.0
        %2169 = vmatpush1.xpose.msra.mxu0 0.0
        %2170 = vmatprep.subr.mxu0 0.0
        %2171 = vmatpush1.xpose.msra.mxu0 0.0
        %2172 = vmatprep.subr.mxu0 0.0
        %2173 = vmatpush1.xpose.msra.mxu0 0.0
        %2174 = vmatprep.subr.mxu0 0.0
        %2175 = vmatpush1.xpose.msra.mxu0 0.0
        %2176 = vmatprep.subr.mxu0 0.0
        %2177 = vmatpush1.xpose.msra.mxu0 0.0
        %2178 = vmatprep.subr.mxu0 0.0
        %2179 = vmatpush1.xpose.msra.mxu0 0.0
        %2180 = vmatprep.subr.mxu0 0.0
        %2181 = vmatpush1.xpose.msra.mxu0 0.0
        %2182 = vmatprep.subr.mxu0 0.0
        %2183 = vmatpush1.xpose.msra.mxu0 0.0
        %2184 = vmatprep.subr.mxu0 0.0
        %2185 = vmatpush1.xpose.msra.mxu0 0.0
        %2186 = vmatprep.subr.mxu0 0.0
        %2187 = vmatpush1.xpose.msra.mxu0 0.0
        %2188 = vmatprep.subr.mxu0 0.0
        %2189 = vmatpush1.xpose.msra.mxu0 0.0
        %2190 = vmatprep.subr.mxu0 0.0
        %2191 = vmatpush1.xpose.msra.mxu0 0.0
        %2192 = vmatprep.subr.mxu0 0.0
        %2193 = vmatpush1.xpose.msra.mxu0 0.0
        %2194 = vmatprep.mubr.f32.mxu0 0.0
        %2195 = vmatmul.mubr.f32.gmra.mrb[0].mxu0 %v2126
        %v2196 = vpop.f32.mrb[0].mxu0
        %v2197 = vadd.f32 %v1126, %v2196
        %v2198 = vpop.f32.mrb[0].mxu0
        %2199 = vdwg.mxu0
        %2200 = vrot.lane.b32.xlu0 %v1118, 56
        %v2201 = vpop.permute.xlu0 %2200
        %2202 = vrot.lane.b32.xlu0 %v1118, 48
        %v2203 = vpop.permute.xlu0 %2202
        %v2204 = vsel %vm1136, %v2201, 0
        %v2206 = vsel %vm1136, %v2203, 0
        %2208 = vmatprep.subr.mxu0 0.0
        %2209 = vmatpush1.xpose.msra.mxu0 %v2206
        %2210 = vmatprep.subr.mxu0 0.0
        %2211 = vmatpush1.xpose.msra.mxu0 0.0
        %2212 = vmatprep.subr.mxu0 0.0
        %2213 = vmatpush1.xpose.msra.mxu0 0.0
        %2214 = vmatprep.subr.mxu0 0.0
        %2215 = vmatpush1.xpose.msra.mxu0 0.0
        %2216 = vmatprep.subr.mxu0 0.0
        %2217 = vmatpush1.xpose.msra.mxu0 0.0
        %2218 = vmatprep.subr.mxu0 0.0
        %2219 = vmatpush1.xpose.msra.mxu0 0.0
        %2220 = vmatprep.subr.mxu0 0.0
        %2221 = vmatpush1.xpose.msra.mxu0 0.0
        %2222 = vmatprep.subr.mxu0 0.0
        %2223 = vmatpush1.xpose.msra.mxu0 0.0
        %2224 = vmatprep.subr.mxu0 0.0
        %2225 = vmatpush1.xpose.msra.mxu0 0.0
        %2226 = vmatprep.subr.mxu0 0.0
        %2227 = vmatpush1.xpose.msra.mxu0 0.0
        %2228 = vmatprep.subr.mxu0 0.0
        %2229 = vmatpush1.xpose.msra.mxu0 0.0
        %2230 = vmatprep.subr.mxu0 0.0
        %2231 = vmatpush1.xpose.msra.mxu0 0.0
        %2232 = vmatprep.subr.mxu0 0.0
        %2233 = vmatpush1.xpose.msra.mxu0 0.0
        %2234 = vmatprep.subr.mxu0 0.0
        %2235 = vmatpush1.xpose.msra.mxu0 0.0
        %2236 = vmatprep.subr.mxu0 0.0
        %2237 = vmatpush1.xpose.msra.mxu0 0.0
        %2238 = vmatprep.subr.mxu0 0.0
        %2239 = vmatpush1.xpose.msra.mxu0 0.0
        %2240 = vmatprep.subr.mxu0 0.0
        %2241 = vmatpush1.xpose.msra.mxu0 0.0
        %2242 = vmatprep.subr.mxu0 0.0
        %2243 = vmatpush1.xpose.msra.mxu0 0.0
        %2244 = vmatprep.subr.mxu0 0.0
        %2245 = vmatpush1.xpose.msra.mxu0 0.0
        %2246 = vmatprep.subr.mxu0 0.0
        %2247 = vmatpush1.xpose.msra.mxu0 0.0
        %2248 = vmatprep.subr.mxu0 0.0
        %2249 = vmatpush1.xpose.msra.mxu0 0.0
        %2250 = vmatprep.subr.mxu0 0.0
        %2251 = vmatpush1.xpose.msra.mxu0 0.0
        %2252 = vmatprep.subr.mxu0 0.0
        %2253 = vmatpush1.xpose.msra.mxu0 0.0
        %2254 = vmatprep.subr.mxu0 0.0
        %2255 = vmatpush1.xpose.msra.mxu0 0.0
        %2256 = vmatprep.subr.mxu0 0.0
        %2257 = vmatpush1.xpose.msra.mxu0 0.0
        %2258 = vmatprep.subr.mxu0 0.0
        %2259 = vmatpush1.xpose.msra.mxu0 0.0
        %2260 = vmatprep.subr.mxu0 0.0
        %2261 = vmatpush1.xpose.msra.mxu0 0.0
        %2262 = vmatprep.subr.mxu0 0.0
        %2263 = vmatpush1.xpose.msra.mxu0 0.0
        %2264 = vmatprep.subr.mxu0 0.0
        %2265 = vmatpush1.xpose.msra.mxu0 0.0
        %2266 = vmatprep.subr.mxu0 0.0
        %2267 = vmatpush1.xpose.msra.mxu0 0.0
        %2268 = vmatprep.subr.mxu0 0.0
        %2269 = vmatpush1.xpose.msra.mxu0 0.0
        %2270 = vmatprep.subr.mxu0 0.0
        %2271 = vmatpush1.xpose.msra.mxu0 0.0
        %2272 = vmatprep.mubr.f32.mxu0 0.0
        %2273 = vmatmul.mubr.f32.gmra.mrb[0].mxu0 %v2204
        %v2274 = vpop.f32.mrb[0].mxu0
        %v2275 = vadd.f32 %v1130, %v2274
        %v2276 = vpop.f32.mrb[0].mxu0
        %2277 = vdwg.mxu0
        %v2278 = vsel %vm1136, %v2197, -inf
        %2279 = vmax.xlane.f32.xlu0 %v2278
        %v2280 = vpop.xlane.xlu0 %2279
        %v2281 = vsel %vm1136, %v2275, -inf
        %2282 = vmax.xlane.f32.xlu0 %v2281
        %v2283 = vpop.xlane.xlu0 %2282
        %v2284 = vsub.f32 %v2197, %v2280
        %v2285 = vsub.f32 %v2275, %v2283
        %v2286 = vmul.f32 %v2284, 1.442695
        %v2287 = vpow.pop %v2286
        %v2288 = vmul.f32 %v2285, 1.442695
        %v2289 = vpow.pop %v2288
        %v2290 = vsel %vm1136, %v2287, 0.0
        %2291 = vadd.xlane.f32.xlu0 %v2290
        %v2292 = vpop.xlane.xlu0 %2291
        %v2293 = vsel %vm1136, %v2289, 0.0
        %2294 = vadd.xlane.f32.xlu0 %v2293
        %v2295 = vpop.xlane.xlu0 %2294
        %v2296 = vrcp.pop %v2292
        %v2297 = vrcp.pop %v2295
        %v2298 = vmul.f32 %v2287, %v2296
        %v2299 = vmul.f32 %v2289, %v2297
        %2300 = vrot.lane.b32.xlu0 %v1113, 40
        %v2301 = vpop.permute.xlu0 %2300
        %v2304 = vsel %vm1136, %v2298, 0
        %2306 = vmatprep.subr.mxu0 0.0
        %2307 = vmatpush1.msra.mxu0 %v2301
        %2308 = vmatprep.subr.mxu0 0.0
        %2309 = vmatpush1.msra.mxu0 0.0
        %2310 = vmatprep.subr.mxu0 0.0
        %2311 = vmatpush1.msra.mxu0 0.0
        %2312 = vmatprep.subr.mxu0 0.0
        %2313 = vmatpush1.msra.mxu0 0.0
        %2314 = vmatprep.subr.mxu0 0.0
        %2315 = vmatpush1.msra.mxu0 0.0
        %2316 = vmatprep.subr.mxu0 0.0
        %2317 = vmatpush1.msra.mxu0 0.0
        %2318 = vmatprep.subr.mxu0 0.0
        %2319 = vmatpush1.msra.mxu0 0.0
        %2320 = vmatprep.subr.mxu0 0.0
        %2321 = vmatpush1.msra.mxu0 0.0
        %2322 = vmatprep.subr.mxu0 0.0
        %2323 = vmatpush1.msra.mxu0 0.0
        %2324 = vmatprep.subr.mxu0 0.0
        %2325 = vmatpush1.msra.mxu0 0.0
        %2326 = vmatprep.subr.mxu0 0.0
        %2327 = vmatpush1.msra.mxu0 0.0
        %2328 = vmatprep.subr.mxu0 0.0
        %2329 = vmatpush1.msra.mxu0 0.0
        %2330 = vmatprep.subr.mxu0 0.0
        %2331 = vmatpush1.msra.mxu0 0.0
        %2332 = vmatprep.subr.mxu0 0.0
        %2333 = vmatpush1.msra.mxu0 0.0
        %2334 = vmatprep.subr.mxu0 0.0
        %2335 = vmatpush1.msra.mxu0 0.0
        %2336 = vmatprep.subr.mxu0 0.0
        %2337 = vmatpush1.msra.mxu0 0.0
        %2338 = vmatprep.subr.mxu0 0.0
        %2339 = vmatpush1.msra.mxu0 0.0
        %2340 = vmatprep.subr.mxu0 0.0
        %2341 = vmatpush1.msra.mxu0 0.0
        %2342 = vmatprep.subr.mxu0 0.0
        %2343 = vmatpush1.msra.mxu0 0.0
        %2344 = vmatprep.subr.mxu0 0.0
        %2345 = vmatpush1.msra.mxu0 0.0
        %2346 = vmatprep.subr.mxu0 0.0
        %2347 = vmatpush1.msra.mxu0 0.0
        %2348 = vmatprep.subr.mxu0 0.0
        %2349 = vmatpush1.msra.mxu0 0.0
        %2350 = vmatprep.subr.mxu0 0.0
        %2351 = vmatpush1.msra.mxu0 0.0
        %2352 = vmatprep.subr.mxu0 0.0
        %2353 = vmatpush1.msra.mxu0 0.0
        %2354 = vmatprep.subr.mxu0 0.0
        %2355 = vmatpush1.msra.mxu0 0.0
        %2356 = vmatprep.subr.mxu0 0.0
        %2357 = vmatpush1.msra.mxu0 0.0
        %2358 = vmatprep.subr.mxu0 0.0
        %2359 = vmatpush1.msra.mxu0 0.0
        %2360 = vmatprep.subr.mxu0 0.0
        %2361 = vmatpush1.msra.mxu0 0.0
        %2362 = vmatprep.subr.mxu0 0.0
        %2363 = vmatpush1.msra.mxu0 0.0
        %2364 = vmatprep.subr.mxu0 0.0
        %2365 = vmatpush1.msra.mxu0 0.0
        %2366 = vmatprep.subr.mxu0 0.0
        %2367 = vmatpush1.msra.mxu0 0.0
        %2368 = vmatprep.subr.mxu0 0.0
        %2369 = vmatpush1.msra.mxu0 0.0
        %2370 = vmatprep.mubr.f32.mxu0 0.0
        %2371 = vmatmul.mubr.f32.gmra.mrb[0].mxu0 %v2304
        %v2372 = vpop.f32.mrb[0].mxu0
        %v2373 = vadd.f32 0.0, %v2372
        %v2374 = vpop.f32.mrb[0].mxu0
        %2375 = vdwg.mxu0
        %2376 = vrot.lane.b32.xlu0 %v1118, 40
        %v2377 = vpop.permute.xlu0 %2376
        %v2380 = vsel %vm1136, %v2299, 0
        %2382 = vmatprep.subr.mxu0 0.0
        %2383 = vmatpush1.msra.mxu0 %v2377
        %2384 = vmatprep.subr.mxu0 0.0
        %2385 = vmatpush1.msra.mxu0 0.0
        %2386 = vmatprep.subr.mxu0 0.0
        %2387 = vmatpush1.msra.mxu0 0.0
        %2388 = vmatprep.subr.mxu0 0.0
        %2389 = vmatpush1.msra.mxu0 0.0
        %2390 = vmatprep.subr.mxu0 0.0
        %2391 = vmatpush1.msra.mxu0 0.0
        %2392 = vmatprep.subr.mxu0 0.0
        %2393 = vmatpush1.msra.mxu0 0.0
        %2394 = vmatprep.subr.mxu0 0.0
        %2395 = vmatpush1.msra.mxu0 0.0
        %2396 = vmatprep.subr.mxu0 0.0
        %2397 = vmatpush1.msra.mxu0 0.0
        %2398 = vmatprep.subr.mxu0 0.0
        %2399 = vmatpush1.msra.mxu0 0.0
        %2400 = vmatprep.subr.mxu0 0.0
        %2401 = vmatpush1.msra.mxu0 0.0
        %2402 = vmatprep.subr.mxu0 0.0
        %2403 = vmatpush1.msra.mxu0 0.0
        %2404 = vmatprep.subr.mxu0 0.0
        %2405 = vmatpush1.msra.mxu0 0.0
        %2406 = vmatprep.subr.mxu0 0.0
        %2407 = vmatpush1.msra.mxu0 0.0
        %2408 = vmatprep.subr.mxu0 0.0
        %2409 = vmatpush1.msra.mxu0 0.0
        %2410 = vmatprep.subr.mxu0 0.0
        %2411 = vmatpush1.msra.mxu0 0.0
        %2412 = vmatprep.subr.mxu0 0.0
        %2413 = vmatpush1.msra.mxu0 0.0
        %2414 = vmatprep.subr.mxu0 0.0
        %2415 = vmatpush1.msra.mxu0 0.0
        %2416 = vmatprep.subr.mxu0 0.0
        %2417 = vmatpush1.msra.mxu0 0.0
        %2418 = vmatprep.subr.mxu0 0.0
        %2419 = vmatpush1.msra.mxu0 0.0
        %2420 = vmatprep.subr.mxu0 0.0
        %2421 = vmatpush1.msra.mxu0 0.0
        %2422 = vmatprep.subr.mxu0 0.0
        %2423 = vmatpush1.msra.mxu0 0.0
        %2424 = vmatprep.subr.mxu0 0.0
        %2425 = vmatpush1.msra.mxu0 0.0
        %2426 = vmatprep.subr.mxu0 0.0
        %2427 = vmatpush1.msra.mxu0 0.0
        %2428 = vmatprep.subr.mxu0 0.0
        %2429 = vmatpush1.msra.mxu0 0.0
        %2430 = vmatprep.subr.mxu0 0.0
        %2431 = vmatpush1.msra.mxu0 0.0
        %2432 = vmatprep.subr.mxu0 0.0
        %2433 = vmatpush1.msra.mxu0 0.0
        %2434 = vmatprep.subr.mxu0 0.0
        %2435 = vmatpush1.msra.mxu0 0.0
        %2436 = vmatprep.subr.mxu0 0.0
        %2437 = vmatpush1.msra.mxu0 0.0
        %2438 = vmatprep.subr.mxu0 0.0
        %2439 = vmatpush1.msra.mxu0 0.0
        %2440 = vmatprep.subr.mxu0 0.0
        %2441 = vmatpush1.msra.mxu0 0.0
        %2442 = vmatprep.subr.mxu0 0.0
        %2443 = vmatpush1.msra.mxu0 0.0
        %2444 = vmatprep.subr.mxu0 0.0
        %2445 = vmatpush1.msra.mxu0 0.0
        %2446 = vmatprep.mubr.f32.mxu0 0.0
        %2447 = vmatmul.mubr.f32.gmra.mrb[0].mxu0 %v2380
        %v2448 = vpop.f32.mrb[0].mxu0
        %v2449 = vadd.f32 0.0, %v2448
        %v2450 = vpop.f32.mrb[0].mxu0
        %2451 = vdwg.mxu0
        %2454 = vrot.lane.b32.xlu0 %v1713, 8
        %v2455 = vpop.permute.xlu0 %2454
        %2456 = vrot.lane.b32.xlu0 %v1789, 8
        %v2457 = vpop.permute.xlu0 %2456
        %2462 = vrot.lane.b32.xlu0 %v2043, 16
        %v2463 = vpop.permute.xlu0 %2462
        %2464 = vrot.lane.b32.xlu0 %v2119, 16
        %v2465 = vpop.permute.xlu0 %2464
        %2470 = vrot.lane.b32.xlu0 %v2373, 24
        %v2471 = vpop.permute.xlu0 %2470
        %2472 = vrot.lane.b32.xlu0 %v2449, 24
        %v2473 = vpop.permute.xlu0 %2472
        %v2476 = vsel %vm1136, %v1383, %v2455
        %v2477 = vsel %vm1136, %v1459, %v2457
        %vm2478 = vcmask 130048
        %v2479 = vsel %vm2478, %v2476, %v2463
        %v2480 = vsel %vm2478, %v2477, %v2465
        %vm2481 = vcmask 195584
        %v2482 = vsel %vm2481, %v2479, %v2471
        %v2483 = vsel %vm2481, %v2480, %v2473
        %v2484 = vld [vmem:[%s927] sm:$0xff]
        %v2485 = vld [vmem:[%s927 + $0x8] sm:$0xff]
        %v2486 = vld [vmem:[%s927 + $0x10] sm:$0xff]
        %v2487 = vld [vmem:[%s927 + $0x18] sm:$0xff]
        %v2489 = vsel %vm970, %v2482, 0
        %v2492 = vsel %vm970, %v2483, 0
        %2494 = vmatprep.subr.mxu0 0.0
        %2495 = vmatpush1.msra.mxu0 %v2484
        %2496 = vmatprep.subr.mxu0 0.0
        %2497 = vmatpush1.msra.mxu0 %v2485
        %2498 = vmatprep.subr.mxu0 0.0
        %2499 = vmatpush1.msra.mxu0 %v2486
        %2500 = vmatprep.subr.mxu0 0.0
        %2501 = vmatpush1.msra.mxu0 %v2487
        %2502 = vmatprep.subr.mxu0 0.0
        %2503 = vmatpush1.msra.mxu0 0.0
        %2504 = vmatprep.subr.mxu0 0.0
        %2505 = vmatpush1.msra.mxu0 0.0
        %2506 = vmatprep.subr.mxu0 0.0
        %2507 = vmatpush1.msra.mxu0 0.0
        %2508 = vmatprep.subr.mxu0 0.0
        %2509 = vmatpush1.msra.mxu0 0.0
        %2510 = vmatprep.subr.mxu0 0.0
        %2511 = vmatpush1.msra.mxu0 0.0
        %2512 = vmatprep.subr.mxu0 0.0
        %2513 = vmatpush1.msra.mxu0 0.0
        %2514 = vmatprep.subr.mxu0 0.0
        %2515 = vmatpush1.msra.mxu0 0.0
        %2516 = vmatprep.subr.mxu0 0.0
        %2517 = vmatpush1.msra.mxu0 0.0
        %2518 = vmatprep.subr.mxu0 0.0
        %2519 = vmatpush1.msra.mxu0 0.0
        %2520 = vmatprep.subr.mxu0 0.0
        %2521 = vmatpush1.msra.mxu0 0.0
        %2522 = vmatprep.subr.mxu0 0.0
        %2523 = vmatpush1.msra.mxu0 0.0
        %2524 = vmatprep.subr.mxu0 0.0
        %2525 = vmatpush1.msra.mxu0 0.0
        %2526 = vmatprep.subr.mxu0 0.0
        %2527 = vmatpush1.msra.mxu0 0.0
        %2528 = vmatprep.subr.mxu0 0.0
        %2529 = vmatpush1.msra.mxu0 0.0
        %2530 = vmatprep.subr.mxu0 0.0
        %2531 = vmatpush1.msra.mxu0 0.0
        %2532 = vmatprep.subr.mxu0 0.0
        %2533 = vmatpush1.msra.mxu0 0.0
        %2534 = vmatprep.subr.mxu0 0.0
        %2535 = vmatpush1.msra.mxu0 0.0
        %2536 = vmatprep.subr.mxu0 0.0
        %2537 = vmatpush1.msra.mxu0 0.0
        %2538 = vmatprep.subr.mxu0 0.0
        %2539 = vmatpush1.msra.mxu0 0.0
        %2540 = vmatprep.subr.mxu0 0.0
        %2541 = vmatpush1.msra.mxu0 0.0
        %2542 = vmatprep.subr.mxu0 0.0
        %2543 = vmatpush1.msra.mxu0 0.0
        %2544 = vmatprep.subr.mxu0 0.0
        %2545 = vmatpush1.msra.mxu0 0.0
        %2546 = vmatprep.subr.mxu0 0.0
        %2547 = vmatpush1.msra.mxu0 0.0
        %2548 = vmatprep.subr.mxu0 0.0
        %2549 = vmatpush1.msra.mxu0 0.0
        %2550 = vmatprep.subr.mxu0 0.0
        %2551 = vmatpush1.msra.mxu0 0.0
        %2552 = vmatprep.subr.mxu0 0.0
        %2553 = vmatpush1.msra.mxu0 0.0
        %2554 = vmatprep.subr.mxu0 0.0
        %2555 = vmatpush1.msra.mxu0 0.0
        %2556 = vmatprep.subr.mxu0 0.0
        %2557 = vmatpush1.msra.mxu0 0.0
        %2558 = vmatprep.mubr.f32.mxu0 0.0
        %2559 = vmatmul.mubr.f32.gmra.mrb[0].mxu0 %v2489
        %v2560 = vpop.f32.mrb[0].mxu0
        %v2561 = vadd.f32 0.0, %v2560
        %v2562 = vpop.f32.mrb[0].mxu0
        %2563 = vmatprep.mubr.f32.mxu0 0.0
        %2564 = vmatmul.mubr.f32.gmra.mrb[0].mxu0 %v2492
        %v2565 = vpop.f32.mrb[0].mxu0
        %v2566 = vadd.f32 0.0, %v2565
        %v2567 = vpop.f32.mrb[0].mxu0
        %2568 = vdwg.mxu0
        %v2569 = vadd.f32 %v966, %v2561
        %v2570 = vadd.f32 %v967, %v2566
        %v2571 = vld [vmem:[%s800] sm:$0x1]
        %v2573 = vlaneseq
        %v2574 = vshrl.u32 %v2573, 7
        %v2575 = vsub.s32 0, %v2574
        %v2576 = vrot.slane %v2571, %v2575
        %v2578 = vadd.f32 %v2569, %v2576
        %v2579 = vadd.f32 %v2570, %v2576
        %v2580 = vld [vmem:[%s808] sm:$0x1]
        %v2581 = vld [vmem:[%s930] sm:$0x1]
        %v2582 = vsel %vm970, %v2578, 0.0
        %2583 = vadd.xlane.f32.xlu0 %v2582
        %v2584 = vpop.xlane.xlu0 %2583
        %v2585 = vsel %vm970, %v2579, 0.0
        %2586 = vadd.xlane.f32.xlu0 %v2585
        %v2587 = vpop.xlane.xlu0 %2586
        %v2588 = vmul.f32 %v2584, %v977
        %v2589 = vmul.f32 %v2587, %v977
        %v2590 = vsub.f32 %v2578, %v2588
        %v2591 = vsub.f32 %v2579, %v2589
        %v2592 = vmul.f32 %v2590, %v2590
        %v2593 = vmul.f32 %v2591, %v2591
        %v2594 = vsel %vm970, %v2592, 0.0
        %2595 = vadd.xlane.f32.xlu0 %v2594
        %v2596 = vpop.xlane.xlu0 %2595
        %v2597 = vsel %vm970, %v2593, 0.0
        %2598 = vadd.xlane.f32.xlu0 %v2597
        %v2599 = vpop.xlane.xlu0 %2598
        %v2600 = vmul.f32 %v2596, %v990
        %v2601 = vmul.f32 %v2599, %v990
        %v2603 = vlaneseq
        %v2604 = vshrl.u32 %v2603, 7
        %v2605 = vsub.s32 0, %v2604
        %v2606 = vrot.slane %v2580, %v2605
        %v2608 = vmul.f32 %v2606, %v2590
        %v2609 = vmul.f32 %v2606, %v2591
        %v2610 = vrsqrt.pop %v2600
        %v2611 = vmul.f32 %v2600, %v2610
        %vm2612 = vcmp.eq.f32.partialorder %v2600, inf
        %v2613 = vsel %vm2612, %v2600, %v2611
        %vm2614 = vcmp.eq.f32.partialorder %v2600, 0.0
        %v2615 = vand.u32 %v2600, 2147483648
        %v2616 = vsel %vm2614, %v2615, %v2613
        %v2617 = vrsqrt.pop %v2601
        %v2618 = vmul.f32 %v2601, %v2617
        %vm2619 = vcmp.eq.f32.partialorder %v2601, inf
        %v2620 = vsel %vm2619, %v2601, %v2618
        %vm2621 = vcmp.eq.f32.partialorder %v2601, 0.0
        %v2622 = vand.u32 %v2601, 2147483648
        %v2623 = vsel %vm2621, %v2622, %v2620
        %v2624 = vadd.f32 %v2616, 1e-06
        %v2625 = vadd.f32 %v2623, 1e-06
        %v2626 = vrcp.pop %v2624
        %v2627 = vmul.f32 %v2608, %v2626
        %v2628 = vrcp.pop %v2625
        %v2629 = vmul.f32 %v2609, %v2628
        %v2631 = vlaneseq
        %v2632 = vshrl.u32 %v2631, 7
        %v2633 = vsub.s32 0, %v2632
        %v2634 = vrot.slane %v2581, %v2633
        %v2636 = vadd.f32 %v2627, %v2634
        %v2637 = vadd.f32 %v2629, %v2634
        %v2638 = vld [vmem:[%s935] sm:$0xff]
        %v2639 = vld [vmem:[%s935 + $0x8] sm:$0xff]
        %v2640 = vld [vmem:[%s935 + $0x10] sm:$0xff]
        %v2641 = vld [vmem:[%s935 + $0x18] sm:$0xff]
        %v2642 = vld [vmem:[%s938] sm:$0x1]
        %v2644 = vlaneseq
        %v2645 = vshrl.u32 %v2644, 7
        %v2646 = vsub.s32 0, %v2645
        %v2647 = vrot.slane %v2642, %v2646
        %v2650 = vsel %vm970, %v2636, 0
        %v2653 = vsel %vm970, %v2637, 0
        %2655 = vmatprep.subr.mxu0 0.0
        %2656 = vmatpush1.msra.mxu0 %v2638
        %2657 = vmatprep.subr.mxu0 0.0
        %2658 = vmatpush1.msra.mxu0 %v2639
        %2659 = vmatprep.subr.mxu0 0.0
        %2660 = vmatpush1.msra.mxu0 %v2640
        %2661 = vmatprep.subr.mxu0 0.0
        %2662 = vmatpush1.msra.mxu0 %v2641
        %2663 = vmatprep.subr.mxu0 0.0
        %2664 = vmatpush1.msra.mxu0 0.0
        %2665 = vmatprep.subr.mxu0 0.0
        %2666 = vmatpush1.msra.mxu0 0.0
        %2667 = vmatprep.subr.mxu0 0.0
        %2668 = vmatpush1.msra.mxu0 0.0
        %2669 = vmatprep.subr.mxu0 0.0
        %2670 = vmatpush1.msra.mxu0 0.0
        %2671 = vmatprep.subr.mxu0 0.0
        %2672 = vmatpush1.msra.mxu0 0.0
        %2673 = vmatprep.subr.mxu0 0.0
        %2674 = vmatpush1.msra.mxu0 0.0
        %2675 = vmatprep.subr.mxu0 0.0
        %2676 = vmatpush1.msra.mxu0 0.0
        %2677 = vmatprep.subr.mxu0 0.0
        %2678 = vmatpush1.msra.mxu0 0.0
        %2679 = vmatprep.subr.mxu0 0.0
        %2680 = vmatpush1.msra.mxu0 0.0
        %2681 = vmatprep.subr.mxu0 0.0
        %2682 = vmatpush1.msra.mxu0 0.0
        %2683 = vmatprep.subr.mxu0 0.0
        %2684 = vmatpush1.msra.mxu0 0.0
        %2685 = vmatprep.subr.mxu0 0.0
        %2686 = vmatpush1.msra.mxu0 0.0
        %2687 = vmatprep.subr.mxu0 0.0
        %2688 = vmatpush1.msra.mxu0 0.0
        %2689 = vmatprep.subr.mxu0 0.0
        %2690 = vmatpush1.msra.mxu0 0.0
        %2691 = vmatprep.subr.mxu0 0.0
        %2692 = vmatpush1.msra.mxu0 0.0
        %2693 = vmatprep.subr.mxu0 0.0
        %2694 = vmatpush1.msra.mxu0 0.0
        %2695 = vmatprep.subr.mxu0 0.0
        %2696 = vmatpush1.msra.mxu0 0.0
        %2697 = vmatprep.subr.mxu0 0.0
        %2698 = vmatpush1.msra.mxu0 0.0
        %2699 = vmatprep.subr.mxu0 0.0
        %2700 = vmatpush1.msra.mxu0 0.0
        %2701 = vmatprep.subr.mxu0 0.0
        %2702 = vmatpush1.msra.mxu0 0.0
        %2703 = vmatprep.subr.mxu0 0.0
        %2704 = vmatpush1.msra.mxu0 0.0
        %2705 = vmatprep.subr.mxu0 0.0
        %2706 = vmatpush1.msra.mxu0 0.0
        %2707 = vmatprep.subr.mxu0 0.0
        %2708 = vmatpush1.msra.mxu0 0.0
        %2709 = vmatprep.subr.mxu0 0.0
        %2710 = vmatpush1.msra.mxu0 0.0
        %2711 = vmatprep.subr.mxu0 0.0
        %2712 = vmatpush1.msra.mxu0 0.0
        %2713 = vmatprep.subr.mxu0 0.0
        %2714 = vmatpush1.msra.mxu0 0.0
        %2715 = vmatprep.subr.mxu0 0.0
        %2716 = vmatpush1.msra.mxu0 0.0
        %2717 = vmatprep.subr.mxu0 0.0
        %2718 = vmatpush1.msra.mxu0 0.0
        %2719 = vmatprep.mubr.f32.mxu0 0.0
        %2720 = vmatmul.mubr.f32.gmra.mrb[0].mxu0 %v2650
        %v2721 = vpop.f32.mrb[0].mxu0
        %v2722 = vadd.f32 %v2647, %v2721
        %v2723 = vpop.f32.mrb[0].mxu0
        %2724 = vmatprep.mubr.f32.mxu0 0.0
        %2725 = vmatmul.mubr.f32.gmra.mrb[0].mxu0 %v2653
        %v2726 = vpop.f32.mrb[0].mxu0
        %v2727 = vadd.f32 %v2647, %v2726
        %v2728 = vpop.f32.mrb[0].mxu0
        %2729 = vdwg.mxu0
        %v2730 = vmax.f32 %v2722, 0.0
        %v2731 = vmax.f32 %v2727, 0.0
        %v2732 = vld [vmem:[%s943] sm:$0xff]
        %v2733 = vld [vmem:[%s943 + $0x8] sm:$0xff]
        %v2734 = vld [vmem:[%s943 + $0x10] sm:$0xff]
        %v2735 = vld [vmem:[%s943 + $0x18] sm:$0xff]
        %v2736 = vld [vmem:[%s943 + $0x20] sm:$0xff]
        %v2737 = vld [vmem:[%s943 + $0x28] sm:$0xff]
        %v2738 = vld [vmem:[%s943 + $0x30] sm:$0xff]
        %v2739 = vld [vmem:[%s943 + $0x38] sm:$0xff]
        %vm2740 = vcmask 523264
        %v2742 = vsel %vm2740, %v2730, 0
        %v2745 = vsel %vm2740, %v2731, 0
        %2747 = vmatprep.subr.mxu0 0.0
        %2748 = vmatpush1.msra.mxu0 %v2732
        %2749 = vmatprep.subr.mxu0 0.0
        %2750 = vmatpush1.msra.mxu0 %v2733
        %2751 = vmatprep.subr.mxu0 0.0
        %2752 = vmatpush1.msra.mxu0 %v2734
        %2753 = vmatprep.subr.mxu0 0.0
        %2754 = vmatpush1.msra.mxu0 %v2735
        %2755 = vmatprep.subr.mxu0 0.0
        %2756 = vmatpush1.msra.mxu0 %v2736
        %2757 = vmatprep.subr.mxu0 0.0
        %2758 = vmatpush1.msra.mxu0 %v2737
        %2759 = vmatprep.subr.mxu0 0.0
        %2760 = vmatpush1.msra.mxu0 %v2738
        %2761 = vmatprep.subr.mxu0 0.0
        %2762 = vmatpush1.msra.mxu0 %v2739
        %2763 = vmatprep.subr.mxu0 0.0
        %2764 = vmatpush1.msra.mxu0 0.0
        %2765 = vmatprep.subr.mxu0 0.0
        %2766 = vmatpush1.msra.mxu0 0.0
        %2767 = vmatprep.subr.mxu0 0.0
        %2768 = vmatpush1.msra.mxu0 0.0
        %2769 = vmatprep.subr.mxu0 0.0
        %2770 = vmatpush1.msra.mxu0 0.0
        %2771 = vmatprep.subr.mxu0 0.0
        %2772 = vmatpush1.msra.mxu0 0.0
        %2773 = vmatprep.subr.mxu0 0.0
        %2774 = vmatpush1.msra.mxu0 0.0
        %2775 = vmatprep.subr.mxu0 0.0
        %2776 = vmatpush1.msra.mxu0 0.0
        %2777 = vmatprep.subr.mxu0 0.0
        %2778 = vmatpush1.msra.mxu0 0.0
        %2779 = vmatprep.subr.mxu0 0.0
        %2780 = vmatpush1.msra.mxu0 0.0
        %2781 = vmatprep.subr.mxu0 0.0
        %2782 = vmatpush1.msra.mxu0 0.0
        %2783 = vmatprep.subr.mxu0 0.0
        %2784 = vmatpush1.msra.mxu0 0.0
        %2785 = vmatprep.subr.mxu0 0.0
        %2786 = vmatpush1.msra.mxu0 0.0
        %2787 = vmatprep.subr.mxu0 0.0
        %2788 = vmatpush1.msra.mxu0 0.0
        %2789 = vmatprep.subr.mxu0 0.0
        %2790 = vmatpush1.msra.mxu0 0.0
        %2791 = vmatprep.subr.mxu0 0.0
        %2792 = vmatpush1.msra.mxu0 0.0
        %2793 = vmatprep.subr.mxu0 0.0
        %2794 = vmatpush1.msra.mxu0 0.0
        %2795 = vmatprep.subr.mxu0 0.0
        %2796 = vmatpush1.msra.mxu0 0.0
        %2797 = vmatprep.subr.mxu0 0.0
        %2798 = vmatpush1.msra.mxu0 0.0
        %2799 = vmatprep.subr.mxu0 0.0
        %2800 = vmatpush1.msra.mxu0 0.0
        %2801 = vmatprep.subr.mxu0 0.0
        %2802 = vmatpush1.msra.mxu0 0.0
        %2803 = vmatprep.subr.mxu0 0.0
        %2804 = vmatpush1.msra.mxu0 0.0
        %2805 = vmatprep.subr.mxu0 0.0
        %2806 = vmatpush1.msra.mxu0 0.0
        %2807 = vmatprep.subr.mxu0 0.0
        %2808 = vmatpush1.msra.mxu0 0.0
        %2809 = vmatprep.subr.mxu0 0.0
        %2810 = vmatpush1.msra.mxu0 0.0
        %2811 = vmatprep.mubr.f32.mxu0 0.0
        %2812 = vmatmul.mubr.f32.gmra.mrb[0].mxu0 %v2742
        %v2813 = vpop.f32.mrb[0].mxu0
        %v2814 = vadd.f32 0.0, %v2813
        %v2815 = vpop.f32.mrb[0].mxu0
        %2816 = vmatprep.mubr.f32.mxu0 0.0
        %2817 = vmatmul.mubr.f32.gmra.mrb[0].mxu0 %v2745
        %v2818 = vpop.f32.mrb[0].mxu0
        %v2819 = vadd.f32 0.0, %v2818
        %v2820 = vpop.f32.mrb[0].mxu0
        %2821 = vdwg.mxu0
        %v2822 = vadd.f32 %v2578, %v2814
        %v2823 = vadd.f32 %v2579, %v2819
        %v2824 = vld [vmem:[%s946] sm:$0x1]
        %v2826 = vlaneseq
        %v2827 = vshrl.u32 %v2826, 7
        %v2828 = vsub.s32 0, %v2827
        %v2829 = vrot.slane %v2824, %v2828
        %v2831 = vadd.f32 %v2822, %v2829
        %v2832 = vadd.f32 %v2823, %v2829
        %2833 = vst.msk [vmem:[#allocation2] sm:$0xff] %vm970, %v2831
        %2834 = vst.msk [vmem:[#allocation2 + $0x8] sm:$0xff] %vm970, %v2832
        %p2835 = scmp.eq.s32.totalorder %s48, 1
        // Predicated region
        $region129: #{tpu_custom_call.1} parent=99 // pred_check
          %p2836 = pneg %p2835
        $region130: #{tpu_custom_call.1} parent=99 // pred_check_branch
          %2838 = sbr.rel (%p2836) target = $region132
        $region131: #{tpu_custom_call.1} parent=99 // pred_region
          %v2839 = vld [vmem:[%s14] sm:$0x1]
          %v2840 = vld [vmem:[%s15] sm:$0x1]
          %v2841 = vsel %vm970, %v2831, 0.0
          %2842 = vadd.xlane.f32.xlu0 %v2841
          %v2843 = vpop.xlane.xlu0 %2842
          %v2844 = vsel %vm970, %v2832, 0.0
          %2845 = vadd.xlane.f32.xlu0 %v2844
          %v2846 = vpop.xlane.xlu0 %2845
          %v2847 = vmul.f32 %v2843, %v977
          %v2848 = vmul.f32 %v2846, %v977
          %v2849 = vsub.f32 %v2831, %v2847
          %v2850 = vsub.f32 %v2832, %v2848
          %v2851 = vmul.f32 %v2849, %v2849
          %v2852 = vmul.f32 %v2850, %v2850
          %v2853 = vsel %vm970, %v2851, 0.0
          %2854 = vadd.xlane.f32.xlu0 %v2853
          %v2855 = vpop.xlane.xlu0 %2854
          %v2856 = vsel %vm970, %v2852, 0.0
          %2857 = vadd.xlane.f32.xlu0 %v2856
          %v2858 = vpop.xlane.xlu0 %2857
          %v2859 = vmul.f32 %v2855, %v990
          %v2860 = vmul.f32 %v2858, %v990
          %v2862 = vlaneseq
          %v2863 = vshrl.u32 %v2862, 7
          %v2864 = vsub.s32 0, %v2863
          %v2865 = vrot.slane %v2839, %v2864
          %v2867 = vmul.f32 %v2865, %v2849
          %v2868 = vmul.f32 %v2865, %v2850
          %v2869 = vrsqrt.pop %v2859
          %v2870 = vmul.f32 %v2859, %v2869
          %vm2871 = vcmp.eq.f32.partialorder %v2859, inf
          %v2872 = vsel %vm2871, %v2859, %v2870
          %vm2873 = vcmp.eq.f32.partialorder %v2859, 0.0
          %v2874 = vand.u32 %v2859, 2147483648
          %v2875 = vsel %vm2873, %v2874, %v2872
          %v2876 = vrsqrt.pop %v2860
          %v2877 = vmul.f32 %v2860, %v2876
          %vm2878 = vcmp.eq.f32.partialorder %v2860, inf
          %v2879 = vsel %vm2878, %v2860, %v2877
          %vm2880 = vcmp.eq.f32.partialorder %v2860, 0.0
          %v2881 = vand.u32 %v2860, 2147483648
          %v2882 = vsel %vm2880, %v2881, %v2879
          %v2883 = vadd.f32 %v2875, 1e-06
          %v2884 = vadd.f32 %v2882, 1e-06
          %v2885 = vrcp.pop %v2883
          %v2886 = vmul.f32 %v2867, %v2885
          %v2887 = vrcp.pop %v2884
          %v2888 = vmul.f32 %v2868, %v2887
          %v2890 = vlaneseq
          %v2891 = vshrl.u32 %v2890, 7
          %v2892 = vsub.s32 0, %v2891
          %v2893 = vrot.slane %v2840, %v2892
          %v2895 = vadd.f32 %v2886, %v2893
          %v2896 = vadd.f32 %v2888, %v2893
          %v2898 = vsel %vm1136, %v960, 0
          %2900 = vmatprep.subr.mxu0 0.0
          %2901 = vmatpush1.msra.mxu0 %v2895
          %2902 = vmatprep.subr.mxu0 0.0
          %2903 = vmatpush1.msra.mxu0 0.0
          %2904 = vmatprep.subr.mxu0 0.0
          %2905 = vmatpush1.msra.mxu0 0.0
          %2906 = vmatprep.subr.mxu0 0.0
          %2907 = vmatpush1.msra.mxu0 0.0
          %2908 = vmatprep.subr.mxu0 0.0
          %2909 = vmatpush1.msra.mxu0 0.0
          %2910 = vmatprep.subr.mxu0 0.0
          %2911 = vmatpush1.msra.mxu0 0.0
          %2912 = vmatprep.subr.mxu0 0.0
          %2913 = vmatpush1.msra.mxu0 0.0
          %2914 = vmatprep.subr.mxu0 0.0
          %2915 = vmatpush1.msra.mxu0 0.0
          %2916 = vmatprep.subr.mxu0 0.0
          %2917 = vmatpush1.msra.mxu0 0.0
          %2918 = vmatprep.subr.mxu0 0.0
          %2919 = vmatpush1.msra.mxu0 0.0
          %2920 = vmatprep.subr.mxu0 0.0
          %2921 = vmatpush1.msra.mxu0 0.0
          %2922 = vmatprep.subr.mxu0 0.0
          %2923 = vmatpush1.msra.mxu0 0.0
          %2924 = vmatprep.subr.mxu0 0.0
          %2925 = vmatpush1.msra.mxu0 0.0
          %2926 = vmatprep.subr.mxu0 0.0
          %2927 = vmatpush1.msra.mxu0 0.0
          %2928 = vmatprep.subr.mxu0 0.0
          %2929 = vmatpush1.msra.mxu0 0.0
          %2930 = vmatprep.subr.mxu0 0.0
          %2931 = vmatpush1.msra.mxu0 0.0
          %2932 = vmatprep.subr.mxu0 0.0
          %2933 = vmatpush1.msra.mxu0 0.0
          %2934 = vmatprep.subr.mxu0 0.0
          %2935 = vmatpush1.msra.mxu0 0.0
          %2936 = vmatprep.subr.mxu0 0.0
          %2937 = vmatpush1.msra.mxu0 0.0
          %2938 = vmatprep.subr.mxu0 0.0
          %2939 = vmatpush1.msra.mxu0 0.0
          %2940 = vmatprep.subr.mxu0 0.0
          %2941 = vmatpush1.msra.mxu0 0.0
          %2942 = vmatprep.subr.mxu0 0.0
          %2943 = vmatpush1.msra.mxu0 0.0
          %2944 = vmatprep.subr.mxu0 0.0
          %2945 = vmatpush1.msra.mxu0 0.0
          %2946 = vmatprep.subr.mxu0 0.0
          %2947 = vmatpush1.msra.mxu0 0.0
          %2948 = vmatprep.subr.mxu0 0.0
          %2949 = vmatpush1.msra.mxu0 0.0
          %2950 = vmatprep.subr.mxu0 0.0
          %2951 = vmatpush1.msra.mxu0 0.0
          %2952 = vmatprep.subr.mxu0 0.0
          %2953 = vmatpush1.msra.mxu0 0.0
          %2954 = vmatprep.subr.mxu0 0.0
          %2955 = vmatpush1.msra.mxu0 0.0
          %2956 = vmatprep.subr.mxu0 0.0
          %2957 = vmatpush1.msra.mxu0 0.0
          %2958 = vmatprep.subr.mxu0 0.0
          %2959 = vmatpush1.msra.mxu0 0.0
          %2960 = vmatprep.subr.mxu0 0.0
          %2961 = vmatpush1.msra.mxu0 0.0
          %2962 = vmatprep.subr.mxu0 0.0
          %2963 = vmatpush1.msra.mxu0 0.0
          %2964 = vmatprep.mubr.f32.mxu0 0.0
          %2965 = vmatmul.mubr.f32.gmra.mrb[0].mxu0 %v2898
          %v2966 = vpop.f32.mrb[0].mxu0
          %v2967 = vadd.f32 0.0, %v2966
          %v2968 = vpop.f32.mrb[0].mxu0
          %2969 = vdwg.mxu0
          %v2971 = vsel %vm1136, %v961, 0
          %2973 = vmatprep.subr.mxu0 0.0
          %2974 = vmatpush1.msra.mxu0 %v2896
          %2975 = vmatprep.subr.mxu0 0.0
          %2976 = vmatpush1.msra.mxu0 0.0
          %2977 = vmatprep.subr.mxu0 0.0
          %2978 = vmatpush1.msra.mxu0 0.0
          %2979 = vmatprep.subr.mxu0 0.0
          %2980 = vmatpush1.msra.mxu0 0.0
          %2981 = vmatprep.subr.mxu0 0.0
          %2982 = vmatpush1.msra.mxu0 0.0
          %2983 = vmatprep.subr.mxu0 0.0
          %2984 = vmatpush1.msra.mxu0 0.0
          %2985 = vmatprep.subr.mxu0 0.0
          %2986 = vmatpush1.msra.mxu0 0.0
          %2987 = vmatprep.subr.mxu0 0.0
          %2988 = vmatpush1.msra.mxu0 0.0
          %2989 = vmatprep.subr.mxu0 0.0
          %2990 = vmatpush1.msra.mxu0 0.0
          %2991 = vmatprep.subr.mxu0 0.0
          %2992 = vmatpush1.msra.mxu0 0.0
          %2993 = vmatprep.subr.mxu0 0.0
          %2994 = vmatpush1.msra.mxu0 0.0
          %2995 = vmatprep.subr.mxu0 0.0
          %2996 = vmatpush1.msra.mxu0 0.0
          %2997 = vmatprep.subr.mxu0 0.0
          %2998 = vmatpush1.msra.mxu0 0.0
          %2999 = vmatprep.subr.mxu0 0.0
          %3000 = vmatpush1.msra.mxu0 0.0
          %3001 = vmatprep.subr.mxu0 0.0
          %3002 = vmatpush1.msra.mxu0 0.0
          %3003 = vmatprep.subr.mxu0 0.0
          %3004 = vmatpush1.msra.mxu0 0.0
          %3005 = vmatprep.subr.mxu0 0.0
          %3006 = vmatpush1.msra.mxu0 0.0
          %3007 = vmatprep.subr.mxu0 0.0
          %3008 = vmatpush1.msra.mxu0 0.0
          %3009 = vmatprep.subr.mxu0 0.0
          %3010 = vmatpush1.msra.mxu0 0.0
          %3011 = vmatprep.subr.mxu0 0.0
          %3012 = vmatpush1.msra.mxu0 0.0
          %3013 = vmatprep.subr.mxu0 0.0
          %3014 = vmatpush1.msra.mxu0 0.0
          %3015 = vmatprep.subr.mxu0 0.0
          %3016 = vmatpush1.msra.mxu0 0.0
          %3017 = vmatprep.subr.mxu0 0.0
          %3018 = vmatpush1.msra.mxu0 0.0
          %3019 = vmatprep.subr.mxu0 0.0
          %3020 = vmatpush1.msra.mxu0 0.0
          %3021 = vmatprep.subr.mxu0 0.0
          %3022 = vmatpush1.msra.mxu0 0.0
          %3023 = vmatprep.subr.mxu0 0.0
          %3024 = vmatpush1.msra.mxu0 0.0
          %3025 = vmatprep.subr.mxu0 0.0
          %3026 = vmatpush1.msra.mxu0 0.0
          %3027 = vmatprep.subr.mxu0 0.0
          %3028 = vmatpush1.msra.mxu0 0.0
          %3029 = vmatprep.subr.mxu0 0.0
          %3030 = vmatpush1.msra.mxu0 0.0
          %3031 = vmatprep.subr.mxu0 0.0
          %3032 = vmatpush1.msra.mxu0 0.0
          %3033 = vmatprep.subr.mxu0 0.0
          %3034 = vmatpush1.msra.mxu0 0.0
          %3035 = vmatprep.subr.mxu0 0.0
          %3036 = vmatpush1.msra.mxu0 0.0
          %3037 = vmatprep.mubr.f32.mxu0 0.0
          %3038 = vmatmul.mubr.f32.gmra.mrb[0].mxu0 %v2971
          %v3039 = vpop.f32.mrb[0].mxu0
          %v3040 = vadd.f32 0.0, %v3039
          %v3041 = vpop.f32.mrb[0].mxu0
          %3042 = vdwg.mxu0
          %vm3043 = vcmask 57344
          %v3044 = vsel %vm3043, %v960, 0.0
          %3045 = vadd.xlane.f32.xlu0 %v3044
          %v3046 = vpop.xlane.xlu0 %3045
          %v3047 = vsel %vm3043, %v961, 0.0
          %3048 = vadd.xlane.f32.xlu0 %v3047
          %v3049 = vpop.xlane.xlu0 %3048
          %v3050 = vlaneseq
          %v3051 = vshrl.u32 %v3050, 7
          %v3052 = vsub.s32 0, %v3051
          %v3053 = vrot.slane %v3046, %v3052
          %v3054 = vlaneseq
          %v3055 = vshrl.u32 %v3054, 7
          %v3056 = vsub.s32 0, %v3055
          %v3057 = vrot.slane %v3049, %v3056
          %v3058 = vrcp.pop %v3053
          %v3059 = vmul.f32 %v2967, %v3058
          %v3060 = vrcp.pop %v3057
          %v3061 = vmul.f32 %v3040, %v3060
          %v3062 = vld [vmem:[%s16] sm:$0xff]
          %v3063 = vld [vmem:[%s16 + $0x8] sm:$0xff]
          %v3064 = vld [vmem:[%s16 + $0x10] sm:$0xff]
          %v3065 = vld [vmem:[%s16 + $0x18] sm:$0xff]
          %v3066 = vld [vmem:[%s17] sm:$0x1]
          %v3068 = vlaneseq
          %v3069 = vshrl.u32 %v3068, 7
          %v3070 = vsub.s32 0, %v3069
          %v3071 = vrot.slane %v3066, %v3070
          %v3075 = vrot.slane %v3061, 7
          %vm3076 = vcmask 1041409
          %v3077 = vsel %vm3076, %v3075, %v3059
          %v3078 = vsel %vm970, %v3077, 0
          %3080 = vmatprep.subr.mxu0 0.0
          %3081 = vmatpush1.msra.mxu0 %v3062
          %3082 = vmatprep.subr.mxu0 0.0
          %3083 = vmatpush1.msra.mxu0 %v3063
          %3084 = vmatprep.subr.mxu0 0.0
          %3085 = vmatpush1.msra.mxu0 %v3064
          %3086 = vmatprep.subr.mxu0 0.0
          %3087 = vmatpush1.msra.mxu0 %v3065
          %3088 = vmatprep.subr.mxu0 0.0
          %3089 = vmatpush1.msra.mxu0 0.0
          %3090 = vmatprep.subr.mxu0 0.0
          %3091 = vmatpush1.msra.mxu0 0.0
          %3092 = vmatprep.subr.mxu0 0.0
          %3093 = vmatpush1.msra.mxu0 0.0
          %3094 = vmatprep.subr.mxu0 0.0
          %3095 = vmatpush1.msra.mxu0 0.0
          %3096 = vmatprep.subr.mxu0 0.0
          %3097 = vmatpush1.msra.mxu0 0.0
          %3098 = vmatprep.subr.mxu0 0.0
          %3099 = vmatpush1.msra.mxu0 0.0
          %3100 = vmatprep.subr.mxu0 0.0
          %3101 = vmatpush1.msra.mxu0 0.0
          %3102 = vmatprep.subr.mxu0 0.0
          %3103 = vmatpush1.msra.mxu0 0.0
          %3104 = vmatprep.subr.mxu0 0.0
          %3105 = vmatpush1.msra.mxu0 0.0
          %3106 = vmatprep.subr.mxu0 0.0
          %3107 = vmatpush1.msra.mxu0 0.0
          %3108 = vmatprep.subr.mxu0 0.0
          %3109 = vmatpush1.msra.mxu0 0.0
          %3110 = vmatprep.subr.mxu0 0.0
          %3111 = vmatpush1.msra.mxu0 0.0
          %3112 = vmatprep.subr.mxu0 0.0
          %3113 = vmatpush1.msra.mxu0 0.0
          %3114 = vmatprep.subr.mxu0 0.0
          %3115 = vmatpush1.msra.mxu0 0.0
          %3116 = vmatprep.subr.mxu0 0.0
          %3117 = vmatpush1.msra.mxu0 0.0
          %3118 = vmatprep.subr.mxu0 0.0
          %3119 = vmatpush1.msra.mxu0 0.0
          %3120 = vmatprep.subr.mxu0 0.0
          %3121 = vmatpush1.msra.mxu0 0.0
          %3122 = vmatprep.subr.mxu0 0.0
          %3123 = vmatpush1.msra.mxu0 0.0
          %3124 = vmatprep.subr.mxu0 0.0
          %3125 = vmatpush1.msra.mxu0 0.0
          %3126 = vmatprep.subr.mxu0 0.0
          %3127 = vmatpush1.msra.mxu0 0.0
          %3128 = vmatprep.subr.mxu0 0.0
          %3129 = vmatpush1.msra.mxu0 0.0
          %3130 = vmatprep.subr.mxu0 0.0
          %3131 = vmatpush1.msra.mxu0 0.0
          %3132 = vmatprep.subr.mxu0 0.0
          %3133 = vmatpush1.msra.mxu0 0.0
          %3134 = vmatprep.subr.mxu0 0.0
          %3135 = vmatpush1.msra.mxu0 0.0
          %3136 = vmatprep.subr.mxu0 0.0
          %3137 = vmatpush1.msra.mxu0 0.0
          %3138 = vmatprep.subr.mxu0 0.0
          %3139 = vmatpush1.msra.mxu0 0.0
          %3140 = vmatprep.subr.mxu0 0.0
          %3141 = vmatpush1.msra.mxu0 0.0
          %3142 = vmatprep.subr.mxu0 0.0
          %3143 = vmatpush1.msra.mxu0 0.0
          %3144 = vmatprep.mubr.f32.mxu0 0.0
          %3145 = vmatmul.mubr.f32.gmra.mrb[0].mxu0 %v3078
          %v3146 = vpop.f32.mrb[0].mxu0
          %v3147 = vadd.f32 %v3071, %v3146
          %v3148 = vpop.f32.mrb[0].mxu0
          %3149 = vdwg.mxu0
          %v3150 = vmax.f32 %v3147, 0.0
          %v3151 = vld [vmem:[%s18] sm:$0x1]
          %v3153 = vlaneseq
          %v3154 = vshrl.u32 %v3153, 7
          %v3155 = vsub.s32 0, %v3154
          %v3156 = vrot.slane %v3151, %v3155
          %v3158 = vmul.f32 %v3150, %v3156
          %vm3159 = vcmask 254976
          %v3160 = vsel %vm3159, %v3158, 0.0
          %3161 = vadd.xlane.f32.xlu0 %v3160
          %v3162 = vpop.xlane.xlu0 %3161
          %v3163 = vld [vmem:[#allocation3] sm:$0x1]
          %v3165 = vlaneseq
          %v3166 = vshrl.u32 %v3165, 7
          %v3167 = vsub.s32 0, %v3166
          %v3168 = vrot.slane %v3163, %v3167
          %v3170 = vadd.f32 %v3162, %v3168
          %vm3171 = vcmask 1024
          %3172 = vst.msk [vmem:[%s950] sm:$0x3] %vm3171, %v3170
        $region132: #{tpu_custom_call.1} parent=99 // pred_fallthru
          _
        %p3173 = scmp.lt.s32.totalorder %s47, 0
        %s3174 = scalar_select %p3173, %s47, 0
        %s3175 = smul.addr %s3174, 2
        %s3176 = scalar_lea.vmem %s20, %s3175
        // Predicated region
        $region133: #{tpu_custom_call.1} parent=99 // pred_check
          %p3177 = pneg %p563
        $region134: #{tpu_custom_call.1} parent=99 // pred_check_branch
          %3179 = sbr.rel (%p3177) target = $region136
        $region135: #{tpu_custom_call.1} parent=99 // pred_region
          _
        $region136: #{tpu_custom_call.1} parent=99 // pred_fallthru
          _
        // Predicated region
        $region137: #{tpu_custom_call.1} parent=99 // pred_check
          %p3180 = pneg %p563
        $region138: #{tpu_custom_call.1} parent=99 // pred_check_branch
          %3182 = sbr.rel (%p3180) target = $region140
        $region139: #{tpu_custom_call.1} parent=99 // pred_region
          %p3183 = scmp.lt.s32.totalorder %s47, 0
          %s3184 = scalar_select %p3183, %s47, 0
          %s3185 = smul.addr %s3184, 2
          %s3186 = scalar_lea.vmem %s20, %s3185
        $region140: #{tpu_custom_call.1} parent=99 // pred_fallthru
          _
      $region100: #{tpu_custom_call.1} parent=5 // pred_fallthru
        _
      %p3187 = scmp.le.s32.totalorder 2, %s38
      // Predicated region
      $region141: #{tpu_custom_call.1} parent=5 // pred_check
        %p3188 = pneg %p3187
      $region142: #{tpu_custom_call.1} parent=5 // pred_check_branch
        %3190 = sbr.rel (%p3188) target = $region144
      $region143: #{tpu_custom_call.1} parent=5 // pred_region
        %s3191 = ssub.s32 %s38, 2
      $region144: #{tpu_custom_call.1} parent=5 // pred_fallthru
        _
    $region6: #{tpu_custom_call.1} parent=1 // loop_footer
      %s42 = sadd.s32 1, %s38
    $region7: #{tpu_custom_call.1} parent=1 // loop_footer_branch
      %37 = sbr.rel target = $region3
    $region8: #{tpu_custom_call.1} parent=1 // loop_exit
      _
    %3192 = vsyncpa [#allocation5], 1
    %s3193 = scalar_lea.sflag [#allocation5], 1
    %3194 = vsyncpa %s3193, 1
    %3195 = vsyncpa [#allocation7], 1
    %s3196 = scalar_lea.sflag [#allocation7], 1
    %3197 = vsyncpa %s3196, 1
    %3198 = vsyncpa [#allocation10], 1
    %s3199 = scalar_lea.sflag [#allocation10], 1
    %3200 = vsyncpa %s3199, 1
    %3201 = vsyncpa [#allocation13], 1
    %s3202 = scalar_lea.sflag [#allocation13], 1
    %3203 = vsyncpa %s3202, 1

</llo_original>
